<compile_context>
chip_gen: v5e
topology: v5e:2x2
jax: 0.10.0
libtpu: 0.0.40
codegen_flags: <defaults>
</compile_context>

<pallas_src>
import functools
import math

import jax
import jax.numpy as jnp
from jax.experimental import pallas as pl
from jax.experimental.pallas import tpu as pltpu

# ---- small, shape-consistent stand-in config for bert-base-chinese ----
VOCAB = 256          # stands in for 21128
HIDDEN = 256         # stands in for 768 (multiple of 128 => lane-dense)
N_LAYERS = 2         # stands in for 12
N_HEADS = 2
HEAD_DIM = HIDDEN // N_HEADS   # 128: every head slice is a full lane slab
INTERMEDIATE = 512   # stands in for 3072
MAX_POS = 32
TYPE_VOCAB = 2
CLASSES = 34
C_PAD = 128          # classifier output padded to one full 128-lane block
LN_EPS = 1e-12


def _gelu(x):
    # TODO(synk): HF BERT uses exact erf-GELU; tanh approximation used here.
    c = math.sqrt(2.0 / math.pi)
    return 0.5 * x * (1.0 + jnp.tanh(c * (x + 0.044715 * x * x * x)))


def _ln(x, g, b):
    mean = jnp.mean(x, axis=-1, keepdims=True)
    xc = x - mean
    var = jnp.mean(xc * xc, axis=-1, keepdims=True)
    return xc * jax.lax.rsqrt(var + LN_EPS) * g + b


# --------------------------------------------------- single fused model kernel
def _bert_kernel(x_ref, mask_ref, emb_g_ref, emb_b_ref,
                 wqkv_ref, bqkv_ref, wo_ref, bo_ref, g1_ref, b1_ref,
                 wf1_ref, bf1_ref, wf2_ref, bf2_ref, g2_ref, b2_ref,
                 tw_ref, tb_ref, mg_ref, mb_ref, dw_ref, db_ref,
                 fw_ref, fb_ref, o_ref,
                 *, n_layers, n_heads, head_dim, batch, seq):
    hidden = n_heads * head_dim
    rows = batch * seq
    scale = 1.0 / math.sqrt(head_dim)

    # ---- embedding LayerNorm over the collapsed (B*S, H) row block ----
    h = _ln(x_ref[...], emb_g_ref[...], emb_b_ref[...])

    # additive key mask: broadcast ONCE to (B, S, S), reused by all layers/heads
    mask_bss = jnp.broadcast_to(mask_ref[...], (batch, seq, seq))

    # ---- fused transformer encoder stack (all intermediates stay in VMEM) ----
    for l in range(n_layers):
        hb = h.astype(jnp.bfloat16)
        qkv = jnp.dot(hb, wqkv_ref[l],
                      preferred_element_type=jnp.float32) + bqkv_ref[l]   # (B*S,3H)

        # fold 1/sqrt(head_dim) into q once (not per-head on the (S,S) scores)
        q_all = (qkv[:, :hidden] * scale).reshape(batch, seq, hidden)
        k_all = qkv[:, hidden:2 * hidden].reshape(batch, seq, hidden)
        v_all = qkv[:, 2 * hidden:].reshape(batch, seq, hidden)

        ctx_heads = []
        for hd in range(n_heads):
            lo = hd * head_dim
            q = q_all[:, :, lo:lo + head_dim].astype(jnp.bfloat16)
            k = k_all[:, :, lo:lo + head_dim].astype(jnp.bfloat16)
            v = v_all[:, :, lo:lo + head_dim].astype(jnp.bfloat16)
            # q . k^T via batched contraction (no materialized transpose)
            s = jnp.einsum('bqd,bkd->bqk', q, k,
                           preferred_element_type=jnp.float32) + mask_bss
            s = s - jnp.max(s, axis=-1, keepdims=True)
            p = jnp.exp(s)
            p = p / jnp.sum(p, axis=-1, keepdims=True)      # exact softmax
            ctx_heads.append(
                jnp.einsum('bqk,bkd->bqd', p.astype(jnp.bfloat16), v,
                           preferred_element_type=jnp.float32))
        # heads are full 128-lane slabs -> concat, then ONE full-width out-proj
        ctx = jnp.concatenate(ctx_heads, axis=-1).reshape(rows, hidden)
        attn = jnp.dot(ctx.astype(jnp.bfloat16), wo_ref[l],
                       preferred_element_type=jnp.float32) + bo_ref[l]

        h1 = _ln(attn + h, g1_ref[l], b1_ref[l])

        ffn = jnp.dot(h1.astype(jnp.bfloat16), wf1_ref[l],
                      preferred_element_type=jnp.float32) + bf1_ref[l]
        ffn = _gelu(ffn)
        ffn = jnp.dot(ffn.astype(jnp.bfloat16), wf2_ref[l],
                      preferred_element_type=jnp.float32) + bf2_ref[l]

        h = _ln(ffn + h1, g2_ref[l], b2_ref[l])

    # ---- CLS rows only: the MLM head is row-wise, so outputs.logits[:, 0, :]
    #      equals applying it to row 0 of every batch; slicing first shrinks
    #      the vocab-sized matmuls by a factor of S ----
    h_cls = h.reshape(batch, seq, hidden)[:, 0:1, :].reshape(batch, hidden)

    t = jnp.dot(h_cls.astype(jnp.bfloat16), tw_ref[...],
                preferred_element_type=jnp.float32) + tb_ref[...]
    t = _ln(_gelu(t), mg_ref[...], mb_ref[...])
    logits = jnp.dot(t.astype(jnp.bfloat16), dw_ref[...],
                     preferred_element_type=jnp.float32) + db_ref[...]    # (B,VOCAB)

    # classifier fc padded to 128 lanes; padded columns carry a -1e30 bias so
    # they contribute ~0 probability mass (lane-dense, unmasked stores)
    out = jnp.dot(logits.astype(jnp.bfloat16), fw_ref[...],
                  preferred_element_type=jnp.float32) + fb_ref[...]       # (B,C_PAD)
    sh = out - jnp.max(out, axis=-1, keepdims=True)
    lse = jnp.log(jnp.sum(jnp.exp(sh), axis=-1, keepdims=True))
    o_ref[...] = sh - lse


def bert_fused(emb, addmask, p, *, batch, seq):
    kern = functools.partial(_bert_kernel, n_layers=N_LAYERS, n_heads=N_HEADS,
                             head_dim=HEAD_DIM, batch=batch, seq=seq)
    # Whole model in ONE pallas_call: every weight/activation fits VMEM at this
    # scale (<3 MiB total), so there is a single launch and no inter-layer HBM
    # traffic.
    # TODO(synk): at real BERT-base scale (H=768, I=3072, VOCAB=21128) the
    # vocab-sized decoder/fc matmuls must be tiled over a lane grid and the
    # constant weights single-buffered (pl.Buffered(1)) to fit scoped VMEM.
    return pl.pallas_call(
        kern,
        out_shape=jax.ShapeDtypeStruct((batch, C_PAD), jnp.float32),
        compiler_params=pltpu.CompilerParams(vmem_limit_bytes=64 * 1024 * 1024),
    )(emb, addmask,
      p["emb_ln_g"], p["emb_ln_b"],
      p["w_qkv"], p["b_qkv"], p["w_o"], p["b_o"], p["ln1_g"], p["ln1_b"],
      p["w_f1"], p["b_f1"], p["w_f2"], p["b_f2"], p["ln2_g"], p["ln2_b"],
      p["mlm_t_w"], p["mlm_t_b"], p["mlm_ln_g"], p["mlm_ln_b"],
      p["mlm_dec_w"], p["mlm_dec_b"],
      p["fc_w"], p["fc_b"])


# ------------------------------------------------------------------ parameters
def init_params(key):
    std = 0.02
    keys = iter(jax.random.split(key, 32))

    def nrm(shape, dtype=jnp.bfloat16):
        return (jax.random.normal(next(keys), shape, jnp.float32) * std).astype(dtype)

    def zeros(shape):
        return jnp.zeros(shape, jnp.float32)

    def ones(shape):
        return jnp.ones(shape, jnp.float32)

    L = N_LAYERS
    fc_w = nrm((VOCAB, CLASSES))
    fc_b = zeros((1, CLASSES))

    return {
        # embeddings stay f32 (gathered in the wrapper, never MXU operands)
        "word_emb": nrm((VOCAB, HIDDEN), jnp.float32),
        "pos_emb": nrm((MAX_POS, HIDDEN), jnp.float32),
        "type_emb": nrm((TYPE_VOCAB, HIDDEN), jnp.float32),
        "emb_ln_g": ones((1, HIDDEN)), "emb_ln_b": zeros((1, HIDDEN)),
        # encoder weights stacked over the layer axis
        # (bf16 matmul operands, f32 biases / LN params)
        "w_qkv": nrm((L, HIDDEN, 3 * HIDDEN)), "b_qkv": zeros((L, 1, 3 * HIDDEN)),
        "w_o": nrm((L, HIDDEN, HIDDEN)), "b_o": zeros((L, 1, HIDDEN)),
        "ln1_g": ones((L, 1, HIDDEN)), "ln1_b": zeros((L, 1, HIDDEN)),
        "w_f1": nrm((L, HIDDEN, INTERMEDIATE)), "b_f1": zeros((L, 1, INTERMEDIATE)),
        "w_f2": nrm((L, INTERMEDIATE, HIDDEN)), "b_f2": zeros((L, 1, HIDDEN)),
        "ln2_g": ones((L, 1, HIDDEN)), "ln2_b": zeros((L, 1, HIDDEN)),
        # MLM head (transform + LN + decoder to vocab)
        "mlm_t_w": nrm((HIDDEN, HIDDEN)), "mlm_t_b": zeros((1, HIDDEN)),
        "mlm_ln_g": ones((1, HIDDEN)), "mlm_ln_b": zeros((1, HIDDEN)),
        "mlm_dec_w": nrm((HIDDEN, VOCAB)), "mlm_dec_b": zeros((1, VOCAB)),
        # classifier nn.Linear(vocab, classes) padded to a full 128-lane block;
        # padded columns get a -1e30 bias so log_softmax ignores them
        "fc_w": jnp.pad(fc_w, ((0, 0), (0, C_PAD - CLASSES))),
        "fc_b": jnp.pad(fc_b, ((0, 0), (0, C_PAD - CLASSES)),
                        constant_values=-1e30),
    }


# --------------------------------------------------------------------- forward
def bert_forward(params, input_ids, attention_mask=None, token_type_ids=None):
    B, S = input_ids.shape
    if attention_mask is None:
        attention_mask = jnp.ones((B, S), jnp.float32)
    if token_type_ids is None:
        token_type_ids = jnp.zeros((B, S), jnp.int32)

    # embedding gathers + sum stay in XLA (data-dependent gathers); everything
    # downstream (LN -> encoder stack -> MLM head -> fc -> log_softmax) is one
    # fused Pallas kernel.
    we = jnp.take(params["word_emb"], input_ids, axis=0)              # (B,S,H)
    pe = params["pos_emb"][:S][None, :, :]                            # (1,S,H)
    te = jnp.take(params["type_emb"], token_type_ids, axis=0)         # (B,S,H)
    emb = (we + pe + te).reshape(B * S, HIDDEN)

    # additive key mask, shape (B, 1, S)
    addmask = ((1.0 - attention_mask.astype(jnp.float32)) * -1e9
               ).reshape(B, 1, S)

    out_pad = bert_fused(emb, addmask, params, batch=B, seq=S)        # (B,C_PAD)
    return out_pad[:, :CLASSES]                                       # (B,34)


if __name__ == "__main__":
    key = jax.random.PRNGKey(0)
    pkey, ikey = jax.random.split(key)
    params = init_params(pkey)

    B, S = 2, 8
    input_ids = jax.random.randint(ikey, (B, S), 0, VOCAB, dtype=jnp.int32)
    attention_mask = jnp.ones((B, S), jnp.float32)
    token_type_ids = jnp.zeros((B, S), jnp.int32)

    fwd = jax.jit(bert_forward)
    out = fwd(params, input_ids, attention_mask, token_type_ids)
    out = jax.block_until_ready(out)

    assert out.shape == (B, CLASSES)
    # rows of log_softmax must sum to ~1 in prob space
    assert bool(jnp.allclose(jnp.exp(out).sum(-1), 1.0, atol=1e-4))
    print("KERNEL_OK")
</pallas_src>

<mosaic_0001>
module attributes {stable_mosaic.version = 11 : i64} {
  func.func @_bert_kernel(%arg0: memref<16x256xf32, #tpu.memory_space<vmem>>, %arg1: memref<2x1x8xf32, #tpu.memory_space<vmem>>, %arg2: memref<1x256xf32, #tpu.memory_space<vmem>>, %arg3: memref<1x256xf32, #tpu.memory_space<vmem>>, %arg4: memref<2x256x768xbf16, #tpu.memory_space<vmem>>, %arg5: memref<2x1x768xf32, #tpu.memory_space<vmem>>, %arg6: memref<2x256x256xbf16, #tpu.memory_space<vmem>>, %arg7: memref<2x1x256xf32, #tpu.memory_space<vmem>>, %arg8: memref<2x1x256xf32, #tpu.memory_space<vmem>>, %arg9: memref<2x1x256xf32, #tpu.memory_space<vmem>>, %arg10: memref<2x256x512xbf16, #tpu.memory_space<vmem>>, %arg11: memref<2x1x512xf32, #tpu.memory_space<vmem>>, %arg12: memref<2x512x256xbf16, #tpu.memory_space<vmem>>, %arg13: memref<2x1x256xf32, #tpu.memory_space<vmem>>, %arg14: memref<2x1x256xf32, #tpu.memory_space<vmem>>, %arg15: memref<2x1x256xf32, #tpu.memory_space<vmem>>, %arg16: memref<256x256xbf16, #tpu.memory_space<vmem>>, %arg17: memref<1x256xf32, #tpu.memory_space<vmem>>, %arg18: memref<1x256xf32, #tpu.memory_space<vmem>>, %arg19: memref<1x256xf32, #tpu.memory_space<vmem>>, %arg20: memref<256x256xbf16, #tpu.memory_space<vmem>>, %arg21: memref<1x256xf32, #tpu.memory_space<vmem>>, %arg22: memref<256x128xbf16, #tpu.memory_space<vmem>>, %arg23: memref<1x128xf32, #tpu.memory_space<vmem>>, %arg24: memref<2x128xf32, #tpu.memory_space<vmem>>) attributes {dimension_semantics = [], scalar_prefetch = 0 : i64, scratch_operands = 0 : i64, tpu.core_type = #tpu.core_type<tc>} {
    %c0 = arith.constant 0 : index
    %c0_0 = arith.constant 0 : index
    %0 = vector.load %arg0[%c0, %c0_0] : memref<16x256xf32, #tpu.memory_space<vmem>>, vector<16x256xf32>
    %c0_1 = arith.constant 0 : index
    %c0_2 = arith.constant 0 : index
    %1 = vector.load %arg2[%c0_1, %c0_2] : memref<1x256xf32, #tpu.memory_space<vmem>>, vector<1x256xf32>
    %c0_3 = arith.constant 0 : index
    %c0_4 = arith.constant 0 : index
    %2 = vector.load %arg3[%c0_3, %c0_4] : memref<1x256xf32, #tpu.memory_space<vmem>>, vector<1x256xf32>
    %cst = arith.constant dense<0.000000e+00> : vector<16xf32>
    %3 = vector.multi_reduction <add>, %0, %cst [1] : vector<16x256xf32> to vector<16xf32>
    %4 = vector.shape_cast %3 : vector<16xf32> to vector<16x1xf32>
    %cst_5 = arith.constant 2.560000e+02 : f32
    %5 = vector.broadcast %cst_5 : f32 to vector<16x1xf32>
    %6 = arith.divf %4, %5 : vector<16x1xf32>
    %7 = vector.broadcast %6 : vector<16x1xf32> to vector<16x256xf32>
    %8 = arith.subf %0, %7 : vector<16x256xf32>
    %9 = arith.mulf %8, %8 : vector<16x256xf32>
    %cst_6 = arith.constant dense<0.000000e+00> : vector<16xf32>
    %10 = vector.multi_reduction <add>, %9, %cst_6 [1] : vector<16x256xf32> to vector<16xf32>
    %11 = vector.shape_cast %10 : vector<16xf32> to vector<16x1xf32>
    %cst_7 = arith.constant 2.560000e+02 : f32
    %12 = vector.broadcast %cst_7 : f32 to vector<16x1xf32>
    %13 = arith.divf %11, %12 : vector<16x1xf32>
    %cst_8 = arith.constant 9.99999996E-13 : f32
    %14 = vector.broadcast %cst_8 : f32 to vector<16x1xf32>
    %15 = arith.addf %13, %14 : vector<16x1xf32>
    %16 = math.rsqrt %15 : vector<16x1xf32>
    %17 = vector.broadcast %16 : vector<16x1xf32> to vector<16x256xf32>
    %18 = arith.mulf %8, %17 : vector<16x256xf32>
    %19 = vector.broadcast %1 : vector<1x256xf32> to vector<16x256xf32>
    %20 = arith.mulf %18, %19 : vector<16x256xf32>
    %21 = vector.broadcast %2 : vector<1x256xf32> to vector<16x256xf32>
    %22 = arith.addf %20, %21 : vector<16x256xf32>
    %c0_9 = arith.constant 0 : index
    %c0_10 = arith.constant 0 : index
    %c0_11 = arith.constant 0 : index
    %23 = vector.load %arg1[%c0_9, %c0_10, %c0_11] : memref<2x1x8xf32, #tpu.memory_space<vmem>>, vector<2x1x8xf32>
    %24 = vector.shape_cast %23 : vector<2x1x8xf32> to vector<2x1x8xf32>
    %25 = vector.broadcast %24 : vector<2x1x8xf32> to vector<2x8x8xf32>
    %26 = arith.truncf %22 : vector<16x256xf32> to vector<16x256xbf16>
    %c0_12 = arith.constant 0 : index
    %c0_13 = arith.constant 0 : index
    %c0_14 = arith.constant 0 : index
    %27 = vector.load %arg4[%c0_12, %c0_13, %c0_14] : memref<2x256x768xbf16, #tpu.memory_space<vmem>>, vector<1x256x768xbf16>
    %28 = vector.shape_cast %27 : vector<1x256x768xbf16> to vector<256x768xbf16>
    %cst_15 = arith.constant dense<0.000000e+00> : vector<16x768xf32>
    %29 = tpu.matmul %26, %28, %cst_15 {dimension_numbers = #tpu.dot_dimension_numbers<[1], [0], [0], [1], [0, 0, 1, 1], [], []>} : vector<16x256xbf16>, vector<256x768xbf16>, vector<16x768xf32> -> vector<16x768xf32>
    %c0_16 = arith.constant 0 : index
    %c0_17 = arith.constant 0 : index
    %c0_18 = arith.constant 0 : index
    %30 = vector.load %arg5[%c0_16, %c0_17, %c0_18] : memref<2x1x768xf32, #tpu.memory_space<vmem>>, vector<1x1x768xf32>
    %31 = vector.shape_cast %30 : vector<1x1x768xf32> to vector<1x768xf32>
    %32 = vector.broadcast %31 : vector<1x768xf32> to vector<16x768xf32>
    %33 = arith.addf %29, %32 : vector<16x768xf32>
    %34 = vector.extract_strided_slice %33 {offsets = [0, 0], sizes = [16, 256], strides = [1, 1]} : vector<16x768xf32> to vector<16x256xf32>
    %cst_19 = arith.constant 0.0883883461 : f32
    %35 = vector.broadcast %cst_19 : f32 to vector<16x256xf32>
    %36 = arith.mulf %34, %35 : vector<16x256xf32>
    %37 = vector.shape_cast %36 : vector<16x256xf32> to vector<2x8x256xf32>
    %38 = vector.extract_strided_slice %33 {offsets = [0, 256], sizes = [16, 256], strides = [1, 1]} : vector<16x768xf32> to vector<16x256xf32>
    %39 = vector.shape_cast %38 : vector<16x256xf32> to vector<2x8x256xf32>
    %40 = vector.extract_strided_slice %33 {offsets = [0, 512], sizes = [16, 256], strides = [1, 1]} : vector<16x768xf32> to vector<16x256xf32>
    %41 = vector.shape_cast %40 : vector<16x256xf32> to vector<2x8x256xf32>
    %42 = vector.extract_strided_slice %37 {offsets = [0, 0, 0], sizes = [2, 8, 128], strides = [1, 1, 1]} : vector<2x8x256xf32> to vector<2x8x128xf32>
    %43 = arith.truncf %42 : vector<2x8x128xf32> to vector<2x8x128xbf16>
    %44 = vector.extract_strided_slice %39 {offsets = [0, 0, 0], sizes = [2, 8, 128], strides = [1, 1, 1]} : vector<2x8x256xf32> to vector<2x8x128xf32>
    %45 = arith.truncf %44 : vector<2x8x128xf32> to vector<2x8x128xbf16>
    %46 = vector.extract_strided_slice %41 {offsets = [0, 0, 0], sizes = [2, 8, 128], strides = [1, 1, 1]} : vector<2x8x256xf32> to vector<2x8x128xf32>
    %47 = arith.truncf %46 : vector<2x8x128xf32> to vector<2x8x128xbf16>
    "tpu.trace_start"() <{level = 10 : i32, message = "bqd,bkd->bqk"}> : () -> ()
    %cst_20 = arith.constant dense<0.000000e+00> : vector<2x8x8xf32>
    %48 = tpu.matmul %43, %45, %cst_20 {dimension_numbers = #tpu.dot_dimension_numbers<[2], [2], [1], [1], [0, 0, 0, 1, 1, 1], [0], [0]>} : vector<2x8x128xbf16>, vector<2x8x128xbf16>, vector<2x8x8xf32> -> vector<2x8x8xf32>
    "tpu.trace_stop"() : () -> ()
    %49 = arith.addf %48, %25 : vector<2x8x8xf32>
    %cst_21 = arith.constant dense<0xFF800000> : vector<2x8xf32>
    %50 = vector.multi_reduction <maximumf>, %49, %cst_21 [2] : vector<2x8x8xf32> to vector<2x8xf32>
    %51 = vector.shape_cast %50 : vector<2x8xf32> to vector<2x8x1xf32>
    %52 = vector.broadcast %51 : vector<2x8x1xf32> to vector<2x8x8xf32>
    %53 = arith.subf %49, %52 : vector<2x8x8xf32>
    %54 = math.exp %53 : vector<2x8x8xf32>
    %cst_22 = arith.constant dense<0.000000e+00> : vector<2x8xf32>
    %55 = vector.multi_reduction <add>, %54, %cst_22 [2] : vector<2x8x8xf32> to vector<2x8xf32>
    %56 = vector.shape_cast %55 : vector<2x8xf32> to vector<2x8x1xf32>
    %57 = vector.broadcast %56 : vector<2x8x1xf32> to vector<2x8x8xf32>
    %58 = arith.divf %54, %57 : vector<2x8x8xf32>
    %59 = arith.truncf %58 : vector<2x8x8xf32> to vector<2x8x8xbf16>
    "tpu.trace_start"() <{level = 10 : i32, message = "bqk,bkd->bqd"}> : () -> ()
    %cst_23 = arith.constant dense<0.000000e+00> : vector<2x8x128xf32>
    %60 = tpu.matmul %59, %47, %cst_23 {dimension_numbers = #tpu.dot_dimension_numbers<[2], [1], [1], [2], [0, 0, 0, 1, 1, 2], [0], [0]>} : vector<2x8x8xbf16>, vector<2x8x128xbf16>, vector<2x8x128xf32> -> vector<2x8x128xf32>
    "tpu.trace_stop"() : () -> ()
    %61 = vector.extract_strided_slice %37 {offsets = [0, 0, 128], sizes = [2, 8, 128], strides = [1, 1, 1]} : vector<2x8x256xf32> to vector<2x8x128xf32>
    %62 = arith.truncf %61 : vector<2x8x128xf32> to vector<2x8x128xbf16>
    %63 = vector.extract_strided_slice %39 {offsets = [0, 0, 128], sizes = [2, 8, 128], strides = [1, 1, 1]} : vector<2x8x256xf32> to vector<2x8x128xf32>
    %64 = arith.truncf %63 : vector<2x8x128xf32> to vector<2x8x128xbf16>
    %65 = vector.extract_strided_slice %41 {offsets = [0, 0, 128], sizes = [2, 8, 128], strides = [1, 1, 1]} : vector<2x8x256xf32> to vector<2x8x128xf32>
    %66 = arith.truncf %65 : vector<2x8x128xf32> to vector<2x8x128xbf16>
    "tpu.trace_start"() <{level = 10 : i32, message = "bqd,bkd->bqk"}> : () -> ()
    %cst_24 = arith.constant dense<0.000000e+00> : vector<2x8x8xf32>
    %67 = tpu.matmul %62, %64, %cst_24 {dimension_numbers = #tpu.dot_dimension_numbers<[2], [2], [1], [1], [0, 0, 0, 1, 1, 1], [0], [0]>} : vector<2x8x128xbf16>, vector<2x8x128xbf16>, vector<2x8x8xf32> -> vector<2x8x8xf32>
    "tpu.trace_stop"() : () -> ()
    %68 = arith.addf %67, %25 : vector<2x8x8xf32>
    %cst_25 = arith.constant dense<0xFF800000> : vector<2x8xf32>
    %69 = vector.multi_reduction <maximumf>, %68, %cst_25 [2] : vector<2x8x8xf32> to vector<2x8xf32>
    %70 = vector.shape_cast %69 : vector<2x8xf32> to vector<2x8x1xf32>
    %71 = vector.broadcast %70 : vector<2x8x1xf32> to vector<2x8x8xf32>
    %72 = arith.subf %68, %71 : vector<2x8x8xf32>
    %73 = math.exp %72 : vector<2x8x8xf32>
    %cst_26 = arith.constant dense<0.000000e+00> : vector<2x8xf32>
    %74 = vector.multi_reduction <add>, %73, %cst_26 [2] : vector<2x8x8xf32> to vector<2x8xf32>
    %75 = vector.shape_cast %74 : vector<2x8xf32> to vector<2x8x1xf32>
    %76 = vector.broadcast %75 : vector<2x8x1xf32> to vector<2x8x8xf32>
    %77 = arith.divf %73, %76 : vector<2x8x8xf32>
    %78 = arith.truncf %77 : vector<2x8x8xf32> to vector<2x8x8xbf16>
    "tpu.trace_start"() <{level = 10 : i32, message = "bqk,bkd->bqd"}> : () -> ()
    %cst_27 = arith.constant dense<0.000000e+00> : vector<2x8x128xf32>
    %79 = tpu.matmul %78, %66, %cst_27 {dimension_numbers = #tpu.dot_dimension_numbers<[2], [1], [1], [2], [0, 0, 0, 1, 1, 2], [0], [0]>} : vector<2x8x8xbf16>, vector<2x8x128xbf16>, vector<2x8x128xf32> -> vector<2x8x128xf32>
    "tpu.trace_stop"() : () -> ()
    %80 = tpu.concatenate %60, %79 in 2 : vector<2x8x128xf32>, vector<2x8x128xf32> -> vector<2x8x256xf32>
    %81 = vector.shape_cast %80 : vector<2x8x256xf32> to vector<16x256xf32>
    %82 = arith.truncf %81 : vector<16x256xf32> to vector<16x256xbf16>
    %c0_28 = arith.constant 0 : index
    %c0_29 = arith.constant 0 : index
    %c0_30 = arith.constant 0 : index
    %83 = vector.load %arg6[%c0_28, %c0_29, %c0_30] : memref<2x256x256xbf16, #tpu.memory_space<vmem>>, vector<1x256x256xbf16>
    %84 = vector.shape_cast %83 : vector<1x256x256xbf16> to vector<256x256xbf16>
    %cst_31 = arith.constant dense<0.000000e+00> : vector<16x256xf32>
    %85 = tpu.matmul %82, %84, %cst_31 {dimension_numbers = #tpu.dot_dimension_numbers<[1], [0], [0], [1], [0, 0, 1, 1], [], []>} : vector<16x256xbf16>, vector<256x256xbf16>, vector<16x256xf32> -> vector<16x256xf32>
    %c0_32 = arith.constant 0 : index
    %c0_33 = arith.constant 0 : index
    %c0_34 = arith.constant 0 : index
    %86 = vector.load %arg7[%c0_32, %c0_33, %c0_34] : memref<2x1x256xf32, #tpu.memory_space<vmem>>, vector<1x1x256xf32>
    %87 = vector.shape_cast %86 : vector<1x1x256xf32> to vector<1x256xf32>
    %88 = vector.broadcast %87 : vector<1x256xf32> to vector<16x256xf32>
    %89 = arith.addf %85, %88 : vector<16x256xf32>
    %90 = arith.addf %89, %22 : vector<16x256xf32>
    %c0_35 = arith.constant 0 : index
    %c0_36 = arith.constant 0 : index
    %c0_37 = arith.constant 0 : index
    %91 = vector.load %arg8[%c0_35, %c0_36, %c0_37] : memref<2x1x256xf32, #tpu.memory_space<vmem>>, vector<1x1x256xf32>
    %92 = vector.shape_cast %91 : vector<1x1x256xf32> to vector<1x256xf32>
    %c0_38 = arith.constant 0 : index
    %c0_39 = arith.constant 0 : index
    %c0_40 = arith.constant 0 : index
    %93 = vector.load %arg9[%c0_38, %c0_39, %c0_40] : memref<2x1x256xf32, #tpu.memory_space<vmem>>, vector<1x1x256xf32>
    %94 = vector.shape_cast %93 : vector<1x1x256xf32> to vector<1x256xf32>
    %cst_41 = arith.constant dense<0.000000e+00> : vector<16xf32>
    %95 = vector.multi_reduction <add>, %90, %cst_41 [1] : vector<16x256xf32> to vector<16xf32>
    %96 = vector.shape_cast %95 : vector<16xf32> to vector<16x1xf32>
    %cst_42 = arith.constant 2.560000e+02 : f32
    %97 = vector.broadcast %cst_42 : f32 to vector<16x1xf32>
    %98 = arith.divf %96, %97 : vector<16x1xf32>
    %99 = vector.broadcast %98 : vector<16x1xf32> to vector<16x256xf32>
    %100 = arith.subf %90, %99 : vector<16x256xf32>
    %101 = arith.mulf %100, %100 : vector<16x256xf32>
    %cst_43 = arith.constant dense<0.000000e+00> : vector<16xf32>
    %102 = vector.multi_reduction <add>, %101, %cst_43 [1] : vector<16x256xf32> to vector<16xf32>
    %103 = vector.shape_cast %102 : vector<16xf32> to vector<16x1xf32>
    %cst_44 = arith.constant 2.560000e+02 : f32
    %104 = vector.broadcast %cst_44 : f32 to vector<16x1xf32>
    %105 = arith.divf %103, %104 : vector<16x1xf32>
    %cst_45 = arith.constant 9.99999996E-13 : f32
    %106 = vector.broadcast %cst_45 : f32 to vector<16x1xf32>
    %107 = arith.addf %105, %106 : vector<16x1xf32>
    %108 = math.rsqrt %107 : vector<16x1xf32>
    %109 = vector.broadcast %108 : vector<16x1xf32> to vector<16x256xf32>
    %110 = arith.mulf %100, %109 : vector<16x256xf32>
    %111 = vector.broadcast %92 : vector<1x256xf32> to vector<16x256xf32>
    %112 = arith.mulf %110, %111 : vector<16x256xf32>
    %113 = vector.broadcast %94 : vector<1x256xf32> to vector<16x256xf32>
    %114 = arith.addf %112, %113 : vector<16x256xf32>
    %115 = arith.truncf %114 : vector<16x256xf32> to vector<16x256xbf16>
    %c0_46 = arith.constant 0 : index
    %c0_47 = arith.constant 0 : index
    %c0_48 = arith.constant 0 : index
    %116 = vector.load %arg10[%c0_46, %c0_47, %c0_48] : memref<2x256x512xbf16, #tpu.memory_space<vmem>>, vector<1x256x512xbf16>
    %117 = vector.shape_cast %116 : vector<1x256x512xbf16> to vector<256x512xbf16>
    %cst_49 = arith.constant dense<0.000000e+00> : vector<16x512xf32>
    %118 = tpu.matmul %115, %117, %cst_49 {dimension_numbers = #tpu.dot_dimension_numbers<[1], [0], [0], [1], [0, 0, 1, 1], [], []>} : vector<16x256xbf16>, vector<256x512xbf16>, vector<16x512xf32> -> vector<16x512xf32>
    %c0_50 = arith.constant 0 : index
    %c0_51 = arith.constant 0 : index
    %c0_52 = arith.constant 0 : index
    %119 = vector.load %arg11[%c0_50, %c0_51, %c0_52] : memref<2x1x512xf32, #tpu.memory_space<vmem>>, vector<1x1x512xf32>
    %120 = vector.shape_cast %119 : vector<1x1x512xf32> to vector<1x512xf32>
    %121 = vector.broadcast %120 : vector<1x512xf32> to vector<16x512xf32>
    %122 = arith.addf %118, %121 : vector<16x512xf32>
    %cst_53 = arith.constant 5.000000e-01 : f32
    %123 = vector.broadcast %cst_53 : f32 to vector<16x512xf32>
    %124 = arith.mulf %123, %122 : vector<16x512xf32>
    %cst_54 = arith.constant 4.471500e-02 : f32
    %125 = vector.broadcast %cst_54 : f32 to vector<16x512xf32>
    %126 = arith.mulf %125, %122 : vector<16x512xf32>
    %127 = arith.mulf %126, %122 : vector<16x512xf32>
    %128 = arith.mulf %127, %122 : vector<16x512xf32>
    %129 = arith.addf %122, %128 : vector<16x512xf32>
    %cst_55 = arith.constant 0.797884583 : f32
    %130 = vector.broadcast %cst_55 : f32 to vector<16x512xf32>
    %131 = arith.mulf %130, %129 : vector<16x512xf32>
    %132 = math.tanh %131 : vector<16x512xf32>
    %cst_56 = arith.constant 1.000000e+00 : f32
    %133 = vector.broadcast %cst_56 : f32 to vector<16x512xf32>
    %134 = arith.addf %133, %132 : vector<16x512xf32>
    %135 = arith.mulf %124, %134 : vector<16x512xf32>
    %136 = arith.truncf %135 : vector<16x512xf32> to vector<16x512xbf16>
    %c0_57 = arith.constant 0 : index
    %c0_58 = arith.constant 0 : index
    %c0_59 = arith.constant 0 : index
    %137 = vector.load %arg12[%c0_57, %c0_58, %c0_59] : memref<2x512x256xbf16, #tpu.memory_space<vmem>>, vector<1x512x256xbf16>
    %138 = vector.shape_cast %137 : vector<1x512x256xbf16> to vector<512x256xbf16>
    %cst_60 = arith.constant dense<0.000000e+00> : vector<16x256xf32>
    %139 = tpu.matmul %136, %138, %cst_60 {dimension_numbers = #tpu.dot_dimension_numbers<[1], [0], [0], [1], [0, 0, 1, 1], [], []>} : vector<16x512xbf16>, vector<512x256xbf16>, vector<16x256xf32> -> vector<16x256xf32>
    %c0_61 = arith.constant 0 : index
    %c0_62 = arith.constant 0 : index
    %c0_63 = arith.constant 0 : index
    %140 = vector.load %arg13[%c0_61, %c0_62, %c0_63] : memref<2x1x256xf32, #tpu.memory_space<vmem>>, vector<1x1x256xf32>
    %141 = vector.shape_cast %140 : vector<1x1x256xf32> to vector<1x256xf32>
    %142 = vector.broadcast %141 : vector<1x256xf32> to vector<16x256xf32>
    %143 = arith.addf %139, %142 : vector<16x256xf32>
    %144 = arith.addf %143, %114 : vector<16x256xf32>
    %c0_64 = arith.constant 0 : index
    %c0_65 = arith.constant 0 : index
    %c0_66 = arith.constant 0 : index
    %145 = vector.load %arg14[%c0_64, %c0_65, %c0_66] : memref<2x1x256xf32, #tpu.memory_space<vmem>>, vector<1x1x256xf32>
    %146 = vector.shape_cast %145 : vector<1x1x256xf32> to vector<1x256xf32>
    %c0_67 = arith.constant 0 : index
    %c0_68 = arith.constant 0 : index
    %c0_69 = arith.constant 0 : index
    %147 = vector.load %arg15[%c0_67, %c0_68, %c0_69] : memref<2x1x256xf32, #tpu.memory_space<vmem>>, vector<1x1x256xf32>
    %148 = vector.shape_cast %147 : vector<1x1x256xf32> to vector<1x256xf32>
    %cst_70 = arith.constant dense<0.000000e+00> : vector<16xf32>
    %149 = vector.multi_reduction <add>, %144, %cst_70 [1] : vector<16x256xf32> to vector<16xf32>
    %150 = vector.shape_cast %149 : vector<16xf32> to vector<16x1xf32>
    %cst_71 = arith.constant 2.560000e+02 : f32
    %151 = vector.broadcast %cst_71 : f32 to vector<16x1xf32>
    %152 = arith.divf %150, %151 : vector<16x1xf32>
    %153 = vector.broadcast %152 : vector<16x1xf32> to vector<16x256xf32>
    %154 = arith.subf %144, %153 : vector<16x256xf32>
    %155 = arith.mulf %154, %154 : vector<16x256xf32>
    %cst_72 = arith.constant dense<0.000000e+00> : vector<16xf32>
    %156 = vector.multi_reduction <add>, %155, %cst_72 [1] : vector<16x256xf32> to vector<16xf32>
    %157 = vector.shape_cast %156 : vector<16xf32> to vector<16x1xf32>
    %cst_73 = arith.constant 2.560000e+02 : f32
    %158 = vector.broadcast %cst_73 : f32 to vector<16x1xf32>
    %159 = arith.divf %157, %158 : vector<16x1xf32>
    %cst_74 = arith.constant 9.99999996E-13 : f32
    %160 = vector.broadcast %cst_74 : f32 to vector<16x1xf32>
    %161 = arith.addf %159, %160 : vector<16x1xf32>
    %162 = math.rsqrt %161 : vector<16x1xf32>
    %163 = vector.broadcast %162 : vector<16x1xf32> to vector<16x256xf32>
    %164 = arith.mulf %154, %163 : vector<16x256xf32>
    %165 = vector.broadcast %146 : vector<1x256xf32> to vector<16x256xf32>
    %166 = arith.mulf %164, %165 : vector<16x256xf32>
    %167 = vector.broadcast %148 : vector<1x256xf32> to vector<16x256xf32>
    %168 = arith.addf %166, %167 : vector<16x256xf32>
    %169 = arith.truncf %168 : vector<16x256xf32> to vector<16x256xbf16>
    %c1 = arith.constant 1 : index
    %c0_75 = arith.constant 0 : index
    %c0_76 = arith.constant 0 : index
    %170 = vector.load %arg4[%c1, %c0_75, %c0_76] : memref<2x256x768xbf16, #tpu.memory_space<vmem>>, vector<1x256x768xbf16>
    %171 = vector.shape_cast %170 : vector<1x256x768xbf16> to vector<256x768xbf16>
    %cst_77 = arith.constant dense<0.000000e+00> : vector<16x768xf32>
    %172 = tpu.matmul %169, %171, %cst_77 {dimension_numbers = #tpu.dot_dimension_numbers<[1], [0], [0], [1], [0, 0, 1, 1], [], []>} : vector<16x256xbf16>, vector<256x768xbf16>, vector<16x768xf32> -> vector<16x768xf32>
    %c1_78 = arith.constant 1 : index
    %c0_79 = arith.constant 0 : index
    %c0_80 = arith.constant 0 : index
    %173 = vector.load %arg5[%c1_78, %c0_79, %c0_80] : memref<2x1x768xf32, #tpu.memory_space<vmem>>, vector<1x1x768xf32>
    %174 = vector.shape_cast %173 : vector<1x1x768xf32> to vector<1x768xf32>
    %175 = vector.broadcast %174 : vector<1x768xf32> to vector<16x768xf32>
    %176 = arith.addf %172, %175 : vector<16x768xf32>
    %177 = vector.extract_strided_slice %176 {offsets = [0, 0], sizes = [16, 256], strides = [1, 1]} : vector<16x768xf32> to vector<16x256xf32>
    %cst_81 = arith.constant 0.0883883461 : f32
    %178 = vector.broadcast %cst_81 : f32 to vector<16x256xf32>
    %179 = arith.mulf %177, %178 : vector<16x256xf32>
    %180 = vector.shape_cast %179 : vector<16x256xf32> to vector<2x8x256xf32>
    %181 = vector.extract_strided_slice %176 {offsets = [0, 256], sizes = [16, 256], strides = [1, 1]} : vector<16x768xf32> to vector<16x256xf32>
    %182 = vector.shape_cast %181 : vector<16x256xf32> to vector<2x8x256xf32>
    %183 = vector.extract_strided_slice %176 {offsets = [0, 512], sizes = [16, 256], strides = [1, 1]} : vector<16x768xf32> to vector<16x256xf32>
    %184 = vector.shape_cast %183 : vector<16x256xf32> to vector<2x8x256xf32>
    %185 = vector.extract_strided_slice %180 {offsets = [0, 0, 0], sizes = [2, 8, 128], strides = [1, 1, 1]} : vector<2x8x256xf32> to vector<2x8x128xf32>
    %186 = arith.truncf %185 : vector<2x8x128xf32> to vector<2x8x128xbf16>
    %187 = vector.extract_strided_slice %182 {offsets = [0, 0, 0], sizes = [2, 8, 128], strides = [1, 1, 1]} : vector<2x8x256xf32> to vector<2x8x128xf32>
    %188 = arith.truncf %187 : vector<2x8x128xf32> to vector<2x8x128xbf16>
    %189 = vector.extract_strided_slice %184 {offsets = [0, 0, 0], sizes = [2, 8, 128], strides = [1, 1, 1]} : vector<2x8x256xf32> to vector<2x8x128xf32>
    %190 = arith.truncf %189 : vector<2x8x128xf32> to vector<2x8x128xbf16>
    "tpu.trace_start"() <{level = 10 : i32, message = "bqd,bkd->bqk"}> : () -> ()
    %cst_82 = arith.constant dense<0.000000e+00> : vector<2x8x8xf32>
    %191 = tpu.matmul %186, %188, %cst_82 {dimension_numbers = #tpu.dot_dimension_numbers<[2], [2], [1], [1], [0, 0, 0, 1, 1, 1], [0], [0]>} : vector<2x8x128xbf16>, vector<2x8x128xbf16>, vector<2x8x8xf32> -> vector<2x8x8xf32>
    "tpu.trace_stop"() : () -> ()
    %192 = arith.addf %191, %25 : vector<2x8x8xf32>
    %cst_83 = arith.constant dense<0xFF800000> : vector<2x8xf32>
    %193 = vector.multi_reduction <maximumf>, %192, %cst_83 [2] : vector<2x8x8xf32> to vector<2x8xf32>
    %194 = vector.shape_cast %193 : vector<2x8xf32> to vector<2x8x1xf32>
    %195 = vector.broadcast %194 : vector<2x8x1xf32> to vector<2x8x8xf32>
    %196 = arith.subf %192, %195 : vector<2x8x8xf32>
    %197 = math.exp %196 : vector<2x8x8xf32>
    %cst_84 = arith.constant dense<0.000000e+00> : vector<2x8xf32>
    %198 = vector.multi_reduction <add>, %197, %cst_84 [2] : vector<2x8x8xf32> to vector<2x8xf32>
    %199 = vector.shape_cast %198 : vector<2x8xf32> to vector<2x8x1xf32>
    %200 = vector.broadcast %199 : vector<2x8x1xf32> to vector<2x8x8xf32>
    %201 = arith.divf %197, %200 : vector<2x8x8xf32>
    %202 = arith.truncf %201 : vector<2x8x8xf32> to vector<2x8x8xbf16>
    "tpu.trace_start"() <{level = 10 : i32, message = "bqk,bkd->bqd"}> : () -> ()
    %cst_85 = arith.constant dense<0.000000e+00> : vector<2x8x128xf32>
    %203 = tpu.matmul %202, %190, %cst_85 {dimension_numbers = #tpu.dot_dimension_numbers<[2], [1], [1], [2], [0, 0, 0, 1, 1, 2], [0], [0]>} : vector<2x8x8xbf16>, vector<2x8x128xbf16>, vector<2x8x128xf32> -> vector<2x8x128xf32>
    "tpu.trace_stop"() : () -> ()
    %204 = vector.extract_strided_slice %180 {offsets = [0, 0, 128], sizes = [2, 8, 128], strides = [1, 1, 1]} : vector<2x8x256xf32> to vector<2x8x128xf32>
    %205 = arith.truncf %204 : vector<2x8x128xf32> to vector<2x8x128xbf16>
    %206 = vector.extract_strided_slice %182 {offsets = [0, 0, 128], sizes = [2, 8, 128], strides = [1, 1, 1]} : vector<2x8x256xf32> to vector<2x8x128xf32>
    %207 = arith.truncf %206 : vector<2x8x128xf32> to vector<2x8x128xbf16>
    %208 = vector.extract_strided_slice %184 {offsets = [0, 0, 128], sizes = [2, 8, 128], strides = [1, 1, 1]} : vector<2x8x256xf32> to vector<2x8x128xf32>
    %209 = arith.truncf %208 : vector<2x8x128xf32> to vector<2x8x128xbf16>
    "tpu.trace_start"() <{level = 10 : i32, message = "bqd,bkd->bqk"}> : () -> ()
    %cst_86 = arith.constant dense<0.000000e+00> : vector<2x8x8xf32>
    %210 = tpu.matmul %205, %207, %cst_86 {dimension_numbers = #tpu.dot_dimension_numbers<[2], [2], [1], [1], [0, 0, 0, 1, 1, 1], [0], [0]>} : vector<2x8x128xbf16>, vector<2x8x128xbf16>, vector<2x8x8xf32> -> vector<2x8x8xf32>
    "tpu.trace_stop"() : () -> ()
    %211 = arith.addf %210, %25 : vector<2x8x8xf32>
    %cst_87 = arith.constant dense<0xFF800000> : vector<2x8xf32>
    %212 = vector.multi_reduction <maximumf>, %211, %cst_87 [2] : vector<2x8x8xf32> to vector<2x8xf32>
    %213 = vector.shape_cast %212 : vector<2x8xf32> to vector<2x8x1xf32>
    %214 = vector.broadcast %213 : vector<2x8x1xf32> to vector<2x8x8xf32>
    %215 = arith.subf %211, %214 : vector<2x8x8xf32>
    %216 = math.exp %215 : vector<2x8x8xf32>
    %cst_88 = arith.constant dense<0.000000e+00> : vector<2x8xf32>
    %217 = vector.multi_reduction <add>, %216, %cst_88 [2] : vector<2x8x8xf32> to vector<2x8xf32>
    %218 = vector.shape_cast %217 : vector<2x8xf32> to vector<2x8x1xf32>
    %219 = vector.broadcast %218 : vector<2x8x1xf32> to vector<2x8x8xf32>
    %220 = arith.divf %216, %219 : vector<2x8x8xf32>
    %221 = arith.truncf %220 : vector<2x8x8xf32> to vector<2x8x8xbf16>
    "tpu.trace_start"() <{level = 10 : i32, message = "bqk,bkd->bqd"}> : () -> ()
    %cst_89 = arith.constant dense<0.000000e+00> : vector<2x8x128xf32>
    %222 = tpu.matmul %221, %209, %cst_89 {dimension_numbers = #tpu.dot_dimension_numbers<[2], [1], [1], [2], [0, 0, 0, 1, 1, 2], [0], [0]>} : vector<2x8x8xbf16>, vector<2x8x128xbf16>, vector<2x8x128xf32> -> vector<2x8x128xf32>
    "tpu.trace_stop"() : () -> ()
    %223 = tpu.concatenate %203, %222 in 2 : vector<2x8x128xf32>, vector<2x8x128xf32> -> vector<2x8x256xf32>
    %224 = vector.shape_cast %223 : vector<2x8x256xf32> to vector<16x256xf32>
    %225 = arith.truncf %224 : vector<16x256xf32> to vector<16x256xbf16>
    %c1_90 = arith.constant 1 : index
    %c0_91 = arith.constant 0 : index
    %c0_92 = arith.constant 0 : index
    %226 = vector.load %arg6[%c1_90, %c0_91, %c0_92] : memref<2x256x256xbf16, #tpu.memory_space<vmem>>, vector<1x256x256xbf16>
    %227 = vector.shape_cast %226 : vector<1x256x256xbf16> to vector<256x256xbf16>
    %cst_93 = arith.constant dense<0.000000e+00> : vector<16x256xf32>
    %228 = tpu.matmul %225, %227, %cst_93 {dimension_numbers = #tpu.dot_dimension_numbers<[1], [0], [0], [1], [0, 0, 1, 1], [], []>} : vector<16x256xbf16>, vector<256x256xbf16>, vector<16x256xf32> -> vector<16x256xf32>
    %c1_94 = arith.constant 1 : index
    %c0_95 = arith.constant 0 : index
    %c0_96 = arith.constant 0 : index
    %229 = vector.load %arg7[%c1_94, %c0_95, %c0_96] : memref<2x1x256xf32, #tpu.memory_space<vmem>>, vector<1x1x256xf32>
    %230 = vector.shape_cast %229 : vector<1x1x256xf32> to vector<1x256xf32>
    %231 = vector.broadcast %230 : vector<1x256xf32> to vector<16x256xf32>
    %232 = arith.addf %228, %231 : vector<16x256xf32>
    %233 = arith.addf %232, %168 : vector<16x256xf32>
    %c1_97 = arith.constant 1 : index
    %c0_98 = arith.constant 0 : index
    %c0_99 = arith.constant 0 : index
    %234 = vector.load %arg8[%c1_97, %c0_98, %c0_99] : memref<2x1x256xf32, #tpu.memory_space<vmem>>, vector<1x1x256xf32>
    %235 = vector.shape_cast %234 : vector<1x1x256xf32> to vector<1x256xf32>
    %c1_100 = arith.constant 1 : index
    %c0_101 = arith.constant 0 : index
    %c0_102 = arith.constant 0 : index
    %236 = vector.load %arg9[%c1_100, %c0_101, %c0_102] : memref<2x1x256xf32, #tpu.memory_space<vmem>>, vector<1x1x256xf32>
    %237 = vector.shape_cast %236 : vector<1x1x256xf32> to vector<1x256xf32>
    %cst_103 = arith.constant dense<0.000000e+00> : vector<16xf32>
    %238 = vector.multi_reduction <add>, %233, %cst_103 [1] : vector<16x256xf32> to vector<16xf32>
    %239 = vector.shape_cast %238 : vector<16xf32> to vector<16x1xf32>
    %cst_104 = arith.constant 2.560000e+02 : f32
    %240 = vector.broadcast %cst_104 : f32 to vector<16x1xf32>
    %241 = arith.divf %239, %240 : vector<16x1xf32>
    %242 = vector.broadcast %241 : vector<16x1xf32> to vector<16x256xf32>
    %243 = arith.subf %233, %242 : vector<16x256xf32>
    %244 = arith.mulf %243, %243 : vector<16x256xf32>
    %cst_105 = arith.constant dense<0.000000e+00> : vector<16xf32>
    %245 = vector.multi_reduction <add>, %244, %cst_105 [1] : vector<16x256xf32> to vector<16xf32>
    %246 = vector.shape_cast %245 : vector<16xf32> to vector<16x1xf32>
    %cst_106 = arith.constant 2.560000e+02 : f32
    %247 = vector.broadcast %cst_106 : f32 to vector<16x1xf32>
    %248 = arith.divf %246, %247 : vector<16x1xf32>
    %cst_107 = arith.constant 9.99999996E-13 : f32
    %249 = vector.broadcast %cst_107 : f32 to vector<16x1xf32>
    %250 = arith.addf %248, %249 : vector<16x1xf32>
    %251 = math.rsqrt %250 : vector<16x1xf32>
    %252 = vector.broadcast %251 : vector<16x1xf32> to vector<16x256xf32>
    %253 = arith.mulf %243, %252 : vector<16x256xf32>
    %254 = vector.broadcast %235 : vector<1x256xf32> to vector<16x256xf32>
    %255 = arith.mulf %253, %254 : vector<16x256xf32>
    %256 = vector.broadcast %237 : vector<1x256xf32> to vector<16x256xf32>
    %257 = arith.addf %255, %256 : vector<16x256xf32>
    %258 = arith.truncf %257 : vector<16x256xf32> to vector<16x256xbf16>
    %c1_108 = arith.constant 1 : index
    %c0_109 = arith.constant 0 : index
    %c0_110 = arith.constant 0 : index
    %259 = vector.load %arg10[%c1_108, %c0_109, %c0_110] : memref<2x256x512xbf16, #tpu.memory_space<vmem>>, vector<1x256x512xbf16>
    %260 = vector.shape_cast %259 : vector<1x256x512xbf16> to vector<256x512xbf16>
    %cst_111 = arith.constant dense<0.000000e+00> : vector<16x512xf32>
    %261 = tpu.matmul %258, %260, %cst_111 {dimension_numbers = #tpu.dot_dimension_numbers<[1], [0], [0], [1], [0, 0, 1, 1], [], []>} : vector<16x256xbf16>, vector<256x512xbf16>, vector<16x512xf32> -> vector<16x512xf32>
    %c1_112 = arith.constant 1 : index
    %c0_113 = arith.constant 0 : index
    %c0_114 = arith.constant 0 : index
    %262 = vector.load %arg11[%c1_112, %c0_113, %c0_114] : memref<2x1x512xf32, #tpu.memory_space<vmem>>, vector<1x1x512xf32>
    %263 = vector.shape_cast %262 : vector<1x1x512xf32> to vector<1x512xf32>
    %264 = vector.broadcast %263 : vector<1x512xf32> to vector<16x512xf32>
    %265 = arith.addf %261, %264 : vector<16x512xf32>
    %cst_115 = arith.constant 5.000000e-01 : f32
    %266 = vector.broadcast %cst_115 : f32 to vector<16x512xf32>
    %267 = arith.mulf %266, %265 : vector<16x512xf32>
    %cst_116 = arith.constant 4.471500e-02 : f32
    %268 = vector.broadcast %cst_116 : f32 to vector<16x512xf32>
    %269 = arith.mulf %268, %265 : vector<16x512xf32>
    %270 = arith.mulf %269, %265 : vector<16x512xf32>
    %271 = arith.mulf %270, %265 : vector<16x512xf32>
    %272 = arith.addf %265, %271 : vector<16x512xf32>
    %cst_117 = arith.constant 0.797884583 : f32
    %273 = vector.broadcast %cst_117 : f32 to vector<16x512xf32>
    %274 = arith.mulf %273, %272 : vector<16x512xf32>
    %275 = math.tanh %274 : vector<16x512xf32>
    %cst_118 = arith.constant 1.000000e+00 : f32
    %276 = vector.broadcast %cst_118 : f32 to vector<16x512xf32>
    %277 = arith.addf %276, %275 : vector<16x512xf32>
    %278 = arith.mulf %267, %277 : vector<16x512xf32>
    %279 = arith.truncf %278 : vector<16x512xf32> to vector<16x512xbf16>
    %c1_119 = arith.constant 1 : index
    %c0_120 = arith.constant 0 : index
    %c0_121 = arith.constant 0 : index
    %280 = vector.load %arg12[%c1_119, %c0_120, %c0_121] : memref<2x512x256xbf16, #tpu.memory_space<vmem>>, vector<1x512x256xbf16>
    %281 = vector.shape_cast %280 : vector<1x512x256xbf16> to vector<512x256xbf16>
    %cst_122 = arith.constant dense<0.000000e+00> : vector<16x256xf32>
    %282 = tpu.matmul %279, %281, %cst_122 {dimension_numbers = #tpu.dot_dimension_numbers<[1], [0], [0], [1], [0, 0, 1, 1], [], []>} : vector<16x512xbf16>, vector<512x256xbf16>, vector<16x256xf32> -> vector<16x256xf32>
    %c1_123 = arith.constant 1 : index
    %c0_124 = arith.constant 0 : index
    %c0_125 = arith.constant 0 : index
    %283 = vector.load %arg13[%c1_123, %c0_124, %c0_125] : memref<2x1x256xf32, #tpu.memory_space<vmem>>, vector<1x1x256xf32>
    %284 = vector.shape_cast %283 : vector<1x1x256xf32> to vector<1x256xf32>
    %285 = vector.broadcast %284 : vector<1x256xf32> to vector<16x256xf32>
    %286 = arith.addf %282, %285 : vector<16x256xf32>
    %287 = arith.addf %286, %257 : vector<16x256xf32>
    %c1_126 = arith.constant 1 : index
    %c0_127 = arith.constant 0 : index
    %c0_128 = arith.constant 0 : index
    %288 = vector.load %arg14[%c1_126, %c0_127, %c0_128] : memref<2x1x256xf32, #tpu.memory_space<vmem>>, vector<1x1x256xf32>
    %289 = vector.shape_cast %288 : vector<1x1x256xf32> to vector<1x256xf32>
    %c1_129 = arith.constant 1 : index
    %c0_130 = arith.constant 0 : index
    %c0_131 = arith.constant 0 : index
    %290 = vector.load %arg15[%c1_129, %c0_130, %c0_131] : memref<2x1x256xf32, #tpu.memory_space<vmem>>, vector<1x1x256xf32>
    %291 = vector.shape_cast %290 : vector<1x1x256xf32> to vector<1x256xf32>
    %cst_132 = arith.constant dense<0.000000e+00> : vector<16xf32>
    %292 = vector.multi_reduction <add>, %287, %cst_132 [1] : vector<16x256xf32> to vector<16xf32>
    %293 = vector.shape_cast %292 : vector<16xf32> to vector<16x1xf32>
    %cst_133 = arith.constant 2.560000e+02 : f32
    %294 = vector.broadcast %cst_133 : f32 to vector<16x1xf32>
    %295 = arith.divf %293, %294 : vector<16x1xf32>
    %296 = vector.broadcast %295 : vector<16x1xf32> to vector<16x256xf32>
    %297 = arith.subf %287, %296 : vector<16x256xf32>
    %298 = arith.mulf %297, %297 : vector<16x256xf32>
    %cst_134 = arith.constant dense<0.000000e+00> : vector<16xf32>
    %299 = vector.multi_reduction <add>, %298, %cst_134 [1] : vector<16x256xf32> to vector<16xf32>
    %300 = vector.shape_cast %299 : vector<16xf32> to vector<16x1xf32>
    %cst_135 = arith.constant 2.560000e+02 : f32
    %301 = vector.broadcast %cst_135 : f32 to vector<16x1xf32>
    %302 = arith.divf %300, %301 : vector<16x1xf32>
    %cst_136 = arith.constant 9.99999996E-13 : f32
    %303 = vector.broadcast %cst_136 : f32 to vector<16x1xf32>
    %304 = arith.addf %302, %303 : vector<16x1xf32>
    %305 = math.rsqrt %304 : vector<16x1xf32>
    %306 = vector.broadcast %305 : vector<16x1xf32> to vector<16x256xf32>
    %307 = arith.mulf %297, %306 : vector<16x256xf32>
    %308 = vector.broadcast %289 : vector<1x256xf32> to vector<16x256xf32>
    %309 = arith.mulf %307, %308 : vector<16x256xf32>
    %310 = vector.broadcast %291 : vector<1x256xf32> to vector<16x256xf32>
    %311 = arith.addf %309, %310 : vector<16x256xf32>
    %312 = vector.shape_cast %311 : vector<16x256xf32> to vector<2x8x256xf32>
    %313 = vector.extract_strided_slice %312 {offsets = [0, 0, 0], sizes = [2, 1, 256], strides = [1, 1, 1]} : vector<2x8x256xf32> to vector<2x1x256xf32>
    %314 = vector.shape_cast %313 : vector<2x1x256xf32> to vector<2x256xf32>
    %315 = arith.truncf %314 : vector<2x256xf32> to vector<2x256xbf16>
    %c0_137 = arith.constant 0 : index
    %c0_138 = arith.constant 0 : index
    %316 = vector.load %arg16[%c0_137, %c0_138] : memref<256x256xbf16, #tpu.memory_space<vmem>>, vector<256x256xbf16>
    %cst_139 = arith.constant dense<0.000000e+00> : vector<2x256xf32>
    %317 = tpu.matmul %315, %316, %cst_139 {dimension_numbers = #tpu.dot_dimension_numbers<[1], [0], [0], [1], [0, 0, 1, 1], [], []>} : vector<2x256xbf16>, vector<256x256xbf16>, vector<2x256xf32> -> vector<2x256xf32>
    %c0_140 = arith.constant 0 : index
    %c0_141 = arith.constant 0 : index
    %318 = vector.load %arg17[%c0_140, %c0_141] : memref<1x256xf32, #tpu.memory_space<vmem>>, vector<1x256xf32>
    %319 = vector.broadcast %318 : vector<1x256xf32> to vector<2x256xf32>
    %320 = arith.addf %317, %319 : vector<2x256xf32>
    %cst_142 = arith.constant 5.000000e-01 : f32
    %321 = vector.broadcast %cst_142 : f32 to vector<2x256xf32>
    %322 = arith.mulf %321, %320 : vector<2x256xf32>
    %cst_143 = arith.constant 4.471500e-02 : f32
    %323 = vector.broadcast %cst_143 : f32 to vector<2x256xf32>
    %324 = arith.mulf %323, %320 : vector<2x256xf32>
    %325 = arith.mulf %324, %320 : vector<2x256xf32>
    %326 = arith.mulf %325, %320 : vector<2x256xf32>
    %327 = arith.addf %320, %326 : vector<2x256xf32>
    %cst_144 = arith.constant 0.797884583 : f32
    %328 = vector.broadcast %cst_144 : f32 to vector<2x256xf32>
    %329 = arith.mulf %328, %327 : vector<2x256xf32>
    %330 = math.tanh %329 : vector<2x256xf32>
    %cst_145 = arith.constant 1.000000e+00 : f32
    %331 = vector.broadcast %cst_145 : f32 to vector<2x256xf32>
    %332 = arith.addf %331, %330 : vector<2x256xf32>
    %333 = arith.mulf %322, %332 : vector<2x256xf32>
    %c0_146 = arith.constant 0 : index
    %c0_147 = arith.constant 0 : index
    %334 = vector.load %arg18[%c0_146, %c0_147] : memref<1x256xf32, #tpu.memory_space<vmem>>, vector<1x256xf32>
    %c0_148 = arith.constant 0 : index
    %c0_149 = arith.constant 0 : index
    %335 = vector.load %arg19[%c0_148, %c0_149] : memref<1x256xf32, #tpu.memory_space<vmem>>, vector<1x256xf32>
    %cst_150 = arith.constant dense<0.000000e+00> : vector<2xf32>
    %336 = vector.multi_reduction <add>, %333, %cst_150 [1] : vector<2x256xf32> to vector<2xf32>
    %337 = vector.shape_cast %336 : vector<2xf32> to vector<2x1xf32>
    %cst_151 = arith.constant 2.560000e+02 : f32
    %338 = vector.broadcast %cst_151 : f32 to vector<2x1xf32>
    %339 = arith.divf %337, %338 : vector<2x1xf32>
    %340 = vector.broadcast %339 : vector<2x1xf32> to vector<2x256xf32>
    %341 = arith.subf %333, %340 : vector<2x256xf32>
    %342 = arith.mulf %341, %341 : vector<2x256xf32>
    %cst_152 = arith.constant dense<0.000000e+00> : vector<2xf32>
    %343 = vector.multi_reduction <add>, %342, %cst_152 [1] : vector<2x256xf32> to vector<2xf32>
    %344 = vector.shape_cast %343 : vector<2xf32> to vector<2x1xf32>
    %cst_153 = arith.constant 2.560000e+02 : f32
    %345 = vector.broadcast %cst_153 : f32 to vector<2x1xf32>
    %346 = arith.divf %344, %345 : vector<2x1xf32>
    %cst_154 = arith.constant 9.99999996E-13 : f32
    %347 = vector.broadcast %cst_154 : f32 to vector<2x1xf32>
    %348 = arith.addf %346, %347 : vector<2x1xf32>
    %349 = math.rsqrt %348 : vector<2x1xf32>
    %350 = vector.broadcast %349 : vector<2x1xf32> to vector<2x256xf32>
    %351 = arith.mulf %341, %350 : vector<2x256xf32>
    %352 = vector.broadcast %334 : vector<1x256xf32> to vector<2x256xf32>
    %353 = arith.mulf %351, %352 : vector<2x256xf32>
    %354 = vector.broadcast %335 : vector<1x256xf32> to vector<2x256xf32>
    %355 = arith.addf %353, %354 : vector<2x256xf32>
    %356 = arith.truncf %355 : vector<2x256xf32> to vector<2x256xbf16>
    %c0_155 = arith.constant 0 : index
    %c0_156 = arith.constant 0 : index
    %357 = vector.load %arg20[%c0_155, %c0_156] : memref<256x256xbf16, #tpu.memory_space<vmem>>, vector<256x256xbf16>
    %cst_157 = arith.constant dense<0.000000e+00> : vector<2x256xf32>
    %358 = tpu.matmul %356, %357, %cst_157 {dimension_numbers = #tpu.dot_dimension_numbers<[1], [0], [0], [1], [0, 0, 1, 1], [], []>} : vector<2x256xbf16>, vector<256x256xbf16>, vector<2x256xf32> -> vector<2x256xf32>
    %c0_158 = arith.constant 0 : index
    %c0_159 = arith.constant 0 : index
    %359 = vector.load %arg21[%c0_158, %c0_159] : memref<1x256xf32, #tpu.memory_space<vmem>>, vector<1x256xf32>
    %360 = vector.broadcast %359 : vector<1x256xf32> to vector<2x256xf32>
    %361 = arith.addf %358, %360 : vector<2x256xf32>
    %362 = arith.truncf %361 : vector<2x256xf32> to vector<2x256xbf16>
    %c0_160 = arith.constant 0 : index
    %c0_161 = arith.constant 0 : index
    %363 = vector.load %arg22[%c0_160, %c0_161] : memref<256x128xbf16, #tpu.memory_space<vmem>>, vector<256x128xbf16>
    %cst_162 = arith.constant dense<0.000000e+00> : vector<2x128xf32>
    %364 = tpu.matmul %362, %363, %cst_162 {dimension_numbers = #tpu.dot_dimension_numbers<[1], [0], [0], [1], [0, 0, 1, 1], [], []>} : vector<2x256xbf16>, vector<256x128xbf16>, vector<2x128xf32> -> vector<2x128xf32>
    %c0_163 = arith.constant 0 : index
    %c0_164 = arith.constant 0 : index
    %365 = vector.load %arg23[%c0_163, %c0_164] : memref<1x128xf32, #tpu.memory_space<vmem>>, vector<1x128xf32>
    %366 = vector.broadcast %365 : vector<1x128xf32> to vector<2x128xf32>
    %367 = arith.addf %364, %366 : vector<2x128xf32>
    %cst_165 = arith.constant dense<0xFF800000> : vector<2xf32>
    %368 = vector.multi_reduction <maximumf>, %367, %cst_165 [1] : vector<2x128xf32> to vector<2xf32>
    %369 = vector.shape_cast %368 : vector<2xf32> to vector<2x1xf32>
    %370 = vector.broadcast %369 : vector<2x1xf32> to vector<2x128xf32>
    %371 = arith.subf %367, %370 : vector<2x128xf32>
    %372 = math.exp %371 : vector<2x128xf32>
    %cst_166 = arith.constant dense<0.000000e+00> : vector<2xf32>
    %373 = vector.multi_reduction <add>, %372, %cst_166 [1] : vector<2x128xf32> to vector<2xf32>
    %374 = vector.shape_cast %373 : vector<2xf32> to vector<2x1xf32>
    %375 = math.log %374 : vector<2x1xf32>
    %376 = vector.broadcast %375 : vector<2x1xf32> to vector<2x128xf32>
    %377 = arith.subf %371, %376 : vector<2x128xf32>
    %c0_167 = arith.constant 0 : index
    %c0_168 = arith.constant 0 : index
    %378 = vector.load %arg24[%c0_167, %c0_168] : memref<2x128xf32, #tpu.memory_space<vmem>>, vector<2x128xf32>
    tpu.vector_store %arg24[%c0_167, %c0_168], %377 {strides = array<i32>} : memref<2x128xf32, #tpu.memory_space<vmem>>, vector<2x128xf32>,
    return
  }
}

</mosaic_0001>

<llo_original>
// kernel: bert_forward.1
$region0: #{bert_forward.1}
  #allocation0 [shape = 'u32[]', space=smem, size = 0x4, offset = 0x4, fixed_abs, tag = 'smem constant byte address 0x4 - core index']
  #allocation1 [shape = 'u32[72,128]{1,0:T(1,128)}', space=vmem, size = 0x9000, scoped, tag = 'internal scratch']
  %s0 = inlined_call_operand.vmem [shape: f32[16,256], index: 0, kind: input, shape index: {}]
  %s1 = inlined_call_operand.vmem [shape: f32[2,1,8], index: 1, kind: input, shape index: {}]
  %s2 = inlined_call_operand.vmem [shape: f32[1,256], index: 2, kind: input, shape index: {}]
  %s3 = inlined_call_operand.vmem [shape: f32[1,256], index: 3, kind: input, shape index: {}]
  %s4 = inlined_call_operand.hbm [shape: bf16[2,256,768], index: 4, kind: input, shape index: {}]
  %s5 = inlined_call_operand.vmem [shape: f32[2,1,768], index: 5, kind: input, shape index: {}]
  %s6 = inlined_call_operand.hbm [shape: bf16[2,256,256], index: 6, kind: input, shape index: {}]
  %s7 = inlined_call_operand.vmem [shape: f32[2,1,256], index: 7, kind: input, shape index: {}]
  %s8 = inlined_call_operand.vmem [shape: f32[2,1,256], index: 8, kind: input, shape index: {}]
  %s9 = inlined_call_operand.vmem [shape: f32[2,1,256], index: 9, kind: input, shape index: {}]
  %s10 = inlined_call_operand.hbm [shape: bf16[2,256,512], index: 10, kind: input, shape index: {}]
  %s11 = inlined_call_operand.vmem [shape: f32[2,1,512], index: 11, kind: input, shape index: {}]
  %s12 = inlined_call_operand.hbm [shape: bf16[2,512,256], index: 12, kind: input, shape index: {}]
  %s13 = inlined_call_operand.vmem [shape: f32[2,1,256], index: 13, kind: input, shape index: {}]
  %s14 = inlined_call_operand.vmem [shape: f32[2,1,256], index: 14, kind: input, shape index: {}]
  %s15 = inlined_call_operand.vmem [shape: f32[2,1,256], index: 15, kind: input, shape index: {}]
  %s16 = inlined_call_operand.vmem [shape: bf16[256,256], index: 16, kind: input, shape index: {}]
  %s17 = inlined_call_operand.vmem [shape: f32[1,256], index: 17, kind: input, shape index: {}]
  %s18 = inlined_call_operand.vmem [shape: f32[1,256], index: 18, kind: input, shape index: {}]
  %s19 = inlined_call_operand.vmem [shape: f32[1,256], index: 19, kind: input, shape index: {}]
  %s20 = inlined_call_operand.vmem [shape: bf16[256,256], index: 20, kind: input, shape index: {}]
  %s21 = inlined_call_operand.vmem [shape: f32[1,256], index: 21, kind: input, shape index: {}]
  %s22 = inlined_call_operand.vmem [shape: bf16[256,128], index: 22, kind: input, shape index: {}]
  %s23 = inlined_call_operand.vmem [shape: f32[1,128], index: 23, kind: input, shape index: {}]
  %s24 = inlined_call_operand.hbm [shape: f32[2,128], index: 24, kind: output, shape index: {}]
  %s25 = sld [smem:[#allocation0]]
  $region122: #{bert_forward.1} parent=0
    _
  %s27 = ssub.s32 1, %s25
  %s28 = scalar_select 0, %s27, %s25
  $region1: #{bert_forward.1} parent=0
    #allocation2 [shape = 'u8[786432]{0}', space=vmem, size = 0xc0000, scoped, tag = 'input window, operand 4, single buffered']
    #allocation3 [shape = 's32[1]{0}', space=sflag, size = 0x4, scoped, tag = 'scoped memory for bert_forward.1']
    #allocation4 [shape = 's32[1]{0}', space=sflag, size = 0x4, scoped, tag = 'scoped memory for bert_forward.1']
    #allocation5 [shape = 'u8[262144]{0}', space=vmem, size = 0x40000, scoped, tag = 'input window, operand 6, single buffered']
    #allocation6 [shape = 's32[1]{0}', space=sflag, size = 0x4, scoped, tag = 'scoped memory for bert_forward.1']
    #allocation7 [shape = 'u8[524288]{0}', space=vmem, size = 0x80000, scoped, tag = 'input window, operand 10, single buffered']
    #allocation8 [shape = 'u8[524288]{0}', space=vmem, size = 0x80000, scoped, tag = 'input window, operand 12, single buffered']
    #allocation9 [shape = 's32[1]{0}', space=sflag, size = 0x4, scoped, tag = 'scoped memory for bert_forward.1']
    #allocation10 [shape = 'u8[1024]{0}', space=vmem, size = 0x400, scoped, tag = 'output window, operand 0, single buffered']
    %29 = vsyncpa [#allocation3], 0
    %30 = vsyncpa [#allocation6], 0
    %31 = vsyncpa [#allocation9], 0
    %32 = vsyncpa [#allocation4], 0
    // Predicated region
    $region2: #{bert_forward.1} parent=1 // pred_check
      _
    $region3: #{bert_forward.1} parent=1 // pred_check_branch
      %34 = sbr.rel (0) target = $region5
    $region4: #{bert_forward.1} parent=1 // pred_region
      _
    $region5: #{bert_forward.1} parent=1 // pred_fallthru
      _
    // Predicated region
    $region6: #{bert_forward.1} parent=1 // pred_check
      _
    $region7: #{bert_forward.1} parent=1 // pred_check_branch
      %36 = sbr.rel (0) target = $region9
    $region8: #{bert_forward.1} parent=1 // pred_region
      _
    $region9: #{bert_forward.1} parent=1 // pred_fallthru
      _
    // Predicated region
    $region10: #{bert_forward.1} parent=1 // pred_check
      _
    $region11: #{bert_forward.1} parent=1 // pred_check_branch
      %38 = sbr.rel (0) target = $region13
    $region12: #{bert_forward.1} parent=1 // pred_region
      _
    $region13: #{bert_forward.1} parent=1 // pred_fallthru
      _
    // Predicated region
    $region14: #{bert_forward.1} parent=1 // pred_check
      _
    $region15: #{bert_forward.1} parent=1 // pred_check_branch
      %40 = sbr.rel (0) target = $region17
    $region16: #{bert_forward.1} parent=1 // pred_region
      _
    $region17: #{bert_forward.1} parent=1 // pred_fallthru
      _
    // Predicated region
    $region18: #{bert_forward.1} parent=1 // pred_check
      _
    $region19: #{bert_forward.1} parent=1 // pred_check_branch
      %42 = sbr.rel (0) target = $region21
    $region20: #{bert_forward.1} parent=1 // pred_region
      %44 = vsyncadd [#allocation3], 0
      %s45 = sshll.u32 %s4, 4
      %s46 = int_to_ptr.hbm [resolvable:$true] %s45
      %s47 = sshll.u32 [#allocation2], 4
      %s48 = int_to_ptr.vmem [resolvable:$true] %s47
      %53 = dma.hbm_to_vmem [thread:$0]  %s46, 24576, %s48, [#allocation3], 384, 384, 24
    $region21: #{bert_forward.1} parent=1 // pred_fallthru
      _
    // Predicated region
    $region22: #{bert_forward.1} parent=1 // pred_check
      _
    $region23: #{bert_forward.1} parent=1 // pred_check_branch
      %55 = sbr.rel (0) target = $region25
    $region24: #{bert_forward.1} parent=1 // pred_region
      _
    $region25: #{bert_forward.1} parent=1 // pred_fallthru
      _
    // Predicated region
    $region26: #{bert_forward.1} parent=1 // pred_check
      _
    $region27: #{bert_forward.1} parent=1 // pred_check_branch
      %57 = sbr.rel (0) target = $region29
    $region28: #{bert_forward.1} parent=1 // pred_region
      %59 = vsyncadd [#allocation6], 0
      %s60 = sshll.u32 %s6, 4
      %s61 = int_to_ptr.hbm [resolvable:$true] %s60
      %s62 = sshll.u32 [#allocation5], 4
      %s63 = int_to_ptr.vmem [resolvable:$true] %s62
      %68 = dma.hbm_to_vmem [thread:$0]  %s61, 8192, %s63, [#allocation6], 128, 128, 8
    $region29: #{bert_forward.1} parent=1 // pred_fallthru
      _
    // Predicated region
    $region30: #{bert_forward.1} parent=1 // pred_check
      _
    $region31: #{bert_forward.1} parent=1 // pred_check_branch
      %70 = sbr.rel (0) target = $region33
    $region32: #{bert_forward.1} parent=1 // pred_region
      _
    $region33: #{bert_forward.1} parent=1 // pred_fallthru
      _
    // Predicated region
    $region34: #{bert_forward.1} parent=1 // pred_check
      _
    $region35: #{bert_forward.1} parent=1 // pred_check_branch
      %72 = sbr.rel (0) target = $region37
    $region36: #{bert_forward.1} parent=1 // pred_region
      _
    $region37: #{bert_forward.1} parent=1 // pred_fallthru
      _
    // Predicated region
    $region38: #{bert_forward.1} parent=1 // pred_check
      _
    $region39: #{bert_forward.1} parent=1 // pred_check_branch
      %74 = sbr.rel (0) target = $region41
    $region40: #{bert_forward.1} parent=1 // pred_region
      _
    $region41: #{bert_forward.1} parent=1 // pred_fallthru
      _
    // Predicated region
    $region42: #{bert_forward.1} parent=1 // pred_check
      _
    $region43: #{bert_forward.1} parent=1 // pred_check_branch
      %76 = sbr.rel (0) target = $region45
    $region44: #{bert_forward.1} parent=1 // pred_region
      %78 = vsyncadd [#allocation6], 0
      %s79 = sshll.u32 %s10, 4
      %s80 = int_to_ptr.hbm [resolvable:$true] %s79
      %s81 = sshll.u32 [#allocation7], 4
      %s82 = int_to_ptr.vmem [resolvable:$true] %s81
      %87 = dma.hbm_to_vmem [thread:$0]  %s80, 16384, %s82, [#allocation6], 256, 256, 16
    $region45: #{bert_forward.1} parent=1 // pred_fallthru
      _
    // Predicated region
    $region46: #{bert_forward.1} parent=1 // pred_check
      _
    $region47: #{bert_forward.1} parent=1 // pred_check_branch
      %89 = sbr.rel (0) target = $region49
    $region48: #{bert_forward.1} parent=1 // pred_region
      _
    $region49: #{bert_forward.1} parent=1 // pred_fallthru
      _
    // Predicated region
    $region50: #{bert_forward.1} parent=1 // pred_check
      _
    $region51: #{bert_forward.1} parent=1 // pred_check_branch
      %91 = sbr.rel (0) target = $region53
    $region52: #{bert_forward.1} parent=1 // pred_region
      %93 = vsyncadd [#allocation9], 0
      %s94 = sshll.u32 %s12, 4
      %s95 = int_to_ptr.hbm [resolvable:$true] %s94
      %s96 = sshll.u32 [#allocation8], 4
      %s97 = int_to_ptr.vmem [resolvable:$true] %s96
      %102 = dma.hbm_to_vmem [thread:$0]  %s95, 16384, %s97, [#allocation9], 128, 128, 8
    $region53: #{bert_forward.1} parent=1 // pred_fallthru
      _
    // Predicated region
    $region54: #{bert_forward.1} parent=1 // pred_check
      _
    $region55: #{bert_forward.1} parent=1 // pred_check_branch
      %104 = sbr.rel (0) target = $region57
    $region56: #{bert_forward.1} parent=1 // pred_region
      _
    $region57: #{bert_forward.1} parent=1 // pred_fallthru
      _
    // Predicated region
    $region58: #{bert_forward.1} parent=1 // pred_check
      _
    $region59: #{bert_forward.1} parent=1 // pred_check_branch
      %106 = sbr.rel (0) target = $region61
    $region60: #{bert_forward.1} parent=1 // pred_region
      _
    $region61: #{bert_forward.1} parent=1 // pred_fallthru
      _
    // Predicated region
    $region62: #{bert_forward.1} parent=1 // pred_check
      _
    $region63: #{bert_forward.1} parent=1 // pred_check_branch
      %108 = sbr.rel (0) target = $region65
    $region64: #{bert_forward.1} parent=1 // pred_region
      _
    $region65: #{bert_forward.1} parent=1 // pred_fallthru
      _
    // Predicated region
    $region66: #{bert_forward.1} parent=1 // pred_check
      _
    $region67: #{bert_forward.1} parent=1 // pred_check_branch
      %110 = sbr.rel (0) target = $region69
    $region68: #{bert_forward.1} parent=1 // pred_region
      _
    $region69: #{bert_forward.1} parent=1 // pred_fallthru
      _
    // Predicated region
    $region70: #{bert_forward.1} parent=1 // pred_check
      _
    $region71: #{bert_forward.1} parent=1 // pred_check_branch
      %112 = sbr.rel (0) target = $region73
    $region72: #{bert_forward.1} parent=1 // pred_region
      _
    $region73: #{bert_forward.1} parent=1 // pred_fallthru
      _
    // Predicated region
    $region74: #{bert_forward.1} parent=1 // pred_check
      _
    $region75: #{bert_forward.1} parent=1 // pred_check_branch
      %114 = sbr.rel (0) target = $region77
    $region76: #{bert_forward.1} parent=1 // pred_region
      _
    $region77: #{bert_forward.1} parent=1 // pred_fallthru
      _
    // Predicated region
    $region78: #{bert_forward.1} parent=1 // pred_check
      _
    $region79: #{bert_forward.1} parent=1 // pred_check_branch
      %116 = sbr.rel (0) target = $region81
    $region80: #{bert_forward.1} parent=1 // pred_region
      _
    $region81: #{bert_forward.1} parent=1 // pred_fallthru
      _
    // Predicated region
    $region82: #{bert_forward.1} parent=1 // pred_check
      _
    $region83: #{bert_forward.1} parent=1 // pred_check_branch
      %118 = sbr.rel (0) target = $region85
    $region84: #{bert_forward.1} parent=1 // pred_region
      _
    $region85: #{bert_forward.1} parent=1 // pred_fallthru
      _
    // Predicated region
    $region86: #{bert_forward.1} parent=1 // pred_check
      _
    $region87: #{bert_forward.1} parent=1 // pred_check_branch
      %120 = sbr.rel (0) target = $region89
    $region88: #{bert_forward.1} parent=1 // pred_region
      _
    $region89: #{bert_forward.1} parent=1 // pred_fallthru
      _
    // Predicated region
    $region90: #{bert_forward.1} parent=1 // pred_check
      _
    $region91: #{bert_forward.1} parent=1 // pred_check_branch
      %122 = sbr.rel (0) target = $region93
    $region92: #{bert_forward.1} parent=1 // pred_region
      _
    $region93: #{bert_forward.1} parent=1 // pred_fallthru
      _
    // Predicated region
    $region94: #{bert_forward.1} parent=1 // pred_check
      _
    $region95: #{bert_forward.1} parent=1 // pred_check_branch
      %124 = sbr.rel (0) target = $region97
    $region96: #{bert_forward.1} parent=1 // pred_region
      _
    $region97: #{bert_forward.1} parent=1 // pred_fallthru
      _
    // Predicated region
    $region98: #{bert_forward.1} parent=1 // pred_check
      _
    $region99: #{bert_forward.1} parent=1 // pred_check_branch
      %126 = sbr.rel (0) target = $region101
    $region100: #{bert_forward.1} parent=1 // pred_region
      %128 = dma.done [#allocation3], 24576
    $region101: #{bert_forward.1} parent=1 // pred_fallthru
      _
    // Predicated region
    $region102: #{bert_forward.1} parent=1 // pred_check
      _
    $region103: #{bert_forward.1} parent=1 // pred_check_branch
      %130 = sbr.rel (0) target = $region105
    $region104: #{bert_forward.1} parent=1 // pred_region
      %132 = dma.done [#allocation6], 8192
    $region105: #{bert_forward.1} parent=1 // pred_fallthru
      _
    // Predicated region
    $region106: #{bert_forward.1} parent=1 // pred_check
      _
    $region107: #{bert_forward.1} parent=1 // pred_check_branch
      %134 = sbr.rel (0) target = $region109
    $region108: #{bert_forward.1} parent=1 // pred_region
      %136 = dma.done [#allocation6], 16384
    $region109: #{bert_forward.1} parent=1 // pred_fallthru
      _
    // Predicated region
    $region110: #{bert_forward.1} parent=1 // pred_check
      _
    $region111: #{bert_forward.1} parent=1 // pred_check_branch
      %138 = sbr.rel (0) target = $region113
    $region112: #{bert_forward.1} parent=1 // pred_region
      %140 = dma.done [#allocation9], 16384
    $region113: #{bert_forward.1} parent=1 // pred_fallthru
      _
    %v142 = vld [vmem:[%s0] sm:$0xff]
    %v143 = vld [vmem:[%s0 + $0x8] sm:$0xff]
    %v144 = vld [vmem:[%s0 + $0x10] sm:$0xff]
    %v145 = vld [vmem:[%s0 + $0x18] sm:$0xff]
    %v146 = vld [vmem:[%s2] sm:$0x3]
    %v147 = vld [vmem:[%s3] sm:$0x3]
    %v148 = vadd.f32 %v142, %v143
    %149 = vadd.xlane.f32.xlu0 %v148
    %v150 = vpop.xlane.xlu0 %149
    %v151 = vadd.f32 %v144, %v145
    %152 = vadd.xlane.f32.xlu0 %v151
    %v153 = vpop.xlane.xlu0 %152
    %v154 = vrcp.pop 256.0
    %v155 = vmul.f32 256.0, %v154
    %v156 = vsub.f32 1.0, %v155
    %v157 = vmul.f32 %v154, %v156
    %v158 = vadd.f32 %v154, %v157
    %vm159 = vweird.f32 %v154
    %v160 = vsel %vm159, %v154, %v158
    %v161 = vmul.f32 %v150, %v160
    %v162 = vmul.f32 %v153, %v160
    %v163 = vsub.f32 %v142, %v161
    %v164 = vsub.f32 %v143, %v161
    %v165 = vsub.f32 %v144, %v162
    %v166 = vsub.f32 %v145, %v162
    %v167 = vmul.f32 %v163, %v163
    %v168 = vmul.f32 %v164, %v164
    %v169 = vmul.f32 %v165, %v165
    %v170 = vmul.f32 %v166, %v166
    %v171 = vadd.f32 %v167, %v168
    %172 = vadd.xlane.f32.xlu0 %v171
    %v173 = vpop.xlane.xlu0 %172
    %v174 = vadd.f32 %v169, %v170
    %175 = vadd.xlane.f32.xlu0 %v174
    %v176 = vpop.xlane.xlu0 %175
    %v177 = vmul.f32 %v173, %v160
    %v178 = vmul.f32 %v176, %v160
    %v179 = vadd.f32 %v177, 1e-12
    %v180 = vadd.f32 %v178, 1e-12
    %v181 = vrsqrt.pop %v179
    %v182 = vmul.f32 %v181, %v179
    %v183 = vmul.f32 %v182, %v181
    %v184 = vmul.f32 0.5, %v183
    %v185 = vsub.f32 1.5, %v184
    %v186 = vmul.f32 %v181, %v185
    %vm187 = vweird.f32 %v179
    %vm188 = vweird.f32 %v181
    %vm189 = vmor %vm187, %vm188
    %v190 = vsel %vm189, %v181, %v186
    %v191 = vrsqrt.pop %v180
    %v192 = vmul.f32 %v191, %v180
    %v193 = vmul.f32 %v192, %v191
    %v194 = vmul.f32 0.5, %v193
    %v195 = vsub.f32 1.5, %v194
    %v196 = vmul.f32 %v191, %v195
    %vm197 = vweird.f32 %v180
    %vm198 = vweird.f32 %v191
    %vm199 = vmor %vm197, %vm198
    %v200 = vsel %vm199, %v191, %v196
    %v201 = vmul.f32 %v163, %v190
    %v202 = vmul.f32 %v164, %v190
    %v203 = vmul.f32 %v165, %v200
    %v204 = vmul.f32 %v166, %v200
    %v206 = vperm.slane %v146, 0
    %v207 = vperm.slane %v146, 1
    %v210 = vmul.f32 %v201, %v206
    %v211 = vmul.f32 %v202, %v207
    %v212 = vmul.f32 %v203, %v206
    %v213 = vmul.f32 %v204, %v207
    %v215 = vperm.slane %v147, 0
    %v216 = vperm.slane %v147, 1
    %v219 = vadd.f32 %v210, %v215
    %v220 = vadd.f32 %v211, %v216
    %v221 = vadd.f32 %v212, %v215
    %v222 = vadd.f32 %v213, %v216
    %v223 = vld [vmem:[%s1] sm:$0x1]
    %v224 = vld [vmem:[%s1 + $0x1] sm:$0x1]
    %v227 = vperm.slane %v223, 0
    %v228 = vperm.slane %v224, 0
    %v231 = vpack.c.bf16 %v221, %v219
    %v232 = vpack.c.bf16 %v222, %v220
    %v233 = vld [vmem:[#allocation2] sm:$0xff]
    %v234 = vld [vmem:[#allocation2 + $0x8] sm:$0xff]
    %v235 = vld [vmem:[#allocation2 + $0x10] sm:$0xff]
    %v236 = vld [vmem:[#allocation2 + $0x18] sm:$0xff]
    %v237 = vld [vmem:[#allocation2 + $0x20] sm:$0xff]
    %v238 = vld [vmem:[#allocation2 + $0x28] sm:$0xff]
    %v239 = vld [vmem:[#allocation2 + $0x30] sm:$0xff]
    %v240 = vld [vmem:[#allocation2 + $0x38] sm:$0xff]
    %v241 = vld [vmem:[#allocation2 + $0x40] sm:$0xff]
    %v242 = vld [vmem:[#allocation2 + $0x48] sm:$0xff]
    %v243 = vld [vmem:[#allocation2 + $0x50] sm:$0xff]
    %v244 = vld [vmem:[#allocation2 + $0x58] sm:$0xff]
    %v245 = vld [vmem:[#allocation2 + $0x60] sm:$0xff]
    %v246 = vld [vmem:[#allocation2 + $0x68] sm:$0xff]
    %v247 = vld [vmem:[#allocation2 + $0x70] sm:$0xff]
    %v248 = vld [vmem:[#allocation2 + $0x78] sm:$0xff]
    %v249 = vld [vmem:[#allocation2 + $0x80] sm:$0xff]
    %v250 = vld [vmem:[#allocation2 + $0x88] sm:$0xff]
    %v251 = vld [vmem:[#allocation2 + $0x90] sm:$0xff]
    %v252 = vld [vmem:[#allocation2 + $0x98] sm:$0xff]
    %v253 = vld [vmem:[#allocation2 + $0xa0] sm:$0xff]
    %v254 = vld [vmem:[#allocation2 + $0xa8] sm:$0xff]
    %v255 = vld [vmem:[#allocation2 + $0xb0] sm:$0xff]
    %v256 = vld [vmem:[#allocation2 + $0xb8] sm:$0xff]
    %v257 = vld [vmem:[#allocation2 + $0xc0] sm:$0xff]
    %v258 = vld [vmem:[#allocation2 + $0xc8] sm:$0xff]
    %v259 = vld [vmem:[#allocation2 + $0xd0] sm:$0xff]
    %v260 = vld [vmem:[#allocation2 + $0xd8] sm:$0xff]
    %v261 = vld [vmem:[#allocation2 + $0xe0] sm:$0xff]
    %v262 = vld [vmem:[#allocation2 + $0xe8] sm:$0xff]
    %v263 = vld [vmem:[#allocation2 + $0xf0] sm:$0xff]
    %v264 = vld [vmem:[#allocation2 + $0xf8] sm:$0xff]
    %v265 = vld [vmem:[#allocation2 + $0x100] sm:$0xff]
    %v266 = vld [vmem:[#allocation2 + $0x108] sm:$0xff]
    %v267 = vld [vmem:[#allocation2 + $0x110] sm:$0xff]
    %v268 = vld [vmem:[#allocation2 + $0x118] sm:$0xff]
    %v269 = vld [vmem:[#allocation2 + $0x120] sm:$0xff]
    %v270 = vld [vmem:[#allocation2 + $0x128] sm:$0xff]
    %v271 = vld [vmem:[#allocation2 + $0x130] sm:$0xff]
    %v272 = vld [vmem:[#allocation2 + $0x138] sm:$0xff]
    %v273 = vld [vmem:[#allocation2 + $0x140] sm:$0xff]
    %v274 = vld [vmem:[#allocation2 + $0x148] sm:$0xff]
    %v275 = vld [vmem:[#allocation2 + $0x150] sm:$0xff]
    %v276 = vld [vmem:[#allocation2 + $0x158] sm:$0xff]
    %v277 = vld [vmem:[#allocation2 + $0x160] sm:$0xff]
    %v278 = vld [vmem:[#allocation2 + $0x168] sm:$0xff]
    %v279 = vld [vmem:[#allocation2 + $0x170] sm:$0xff]
    %v280 = vld [vmem:[#allocation2 + $0x178] sm:$0xff]
    %v281 = vld [vmem:[#allocation2 + $0x180] sm:$0xff]
    %v282 = vld [vmem:[#allocation2 + $0x188] sm:$0xff]
    %v283 = vld [vmem:[#allocation2 + $0x190] sm:$0xff]
    %v284 = vld [vmem:[#allocation2 + $0x198] sm:$0xff]
    %v285 = vld [vmem:[#allocation2 + $0x1a0] sm:$0xff]
    %v286 = vld [vmem:[#allocation2 + $0x1a8] sm:$0xff]
    %v287 = vld [vmem:[#allocation2 + $0x1b0] sm:$0xff]
    %v288 = vld [vmem:[#allocation2 + $0x1b8] sm:$0xff]
    %v289 = vld [vmem:[#allocation2 + $0x1c0] sm:$0xff]
    %v290 = vld [vmem:[#allocation2 + $0x1c8] sm:$0xff]
    %v291 = vld [vmem:[#allocation2 + $0x1d0] sm:$0xff]
    %v292 = vld [vmem:[#allocation2 + $0x1d8] sm:$0xff]
    %v293 = vld [vmem:[#allocation2 + $0x1e0] sm:$0xff]
    %v294 = vld [vmem:[#allocation2 + $0x1e8] sm:$0xff]
    %v295 = vld [vmem:[#allocation2 + $0x1f0] sm:$0xff]
    %v296 = vld [vmem:[#allocation2 + $0x1f8] sm:$0xff]
    %v297 = vld [vmem:[#allocation2 + $0x200] sm:$0xff]
    %v298 = vld [vmem:[#allocation2 + $0x208] sm:$0xff]
    %v299 = vld [vmem:[#allocation2 + $0x210] sm:$0xff]
    %v300 = vld [vmem:[#allocation2 + $0x218] sm:$0xff]
    %v301 = vld [vmem:[#allocation2 + $0x220] sm:$0xff]
    %v302 = vld [vmem:[#allocation2 + $0x228] sm:$0xff]
    %v303 = vld [vmem:[#allocation2 + $0x230] sm:$0xff]
    %v304 = vld [vmem:[#allocation2 + $0x238] sm:$0xff]
    %v305 = vld [vmem:[#allocation2 + $0x240] sm:$0xff]
    %v306 = vld [vmem:[#allocation2 + $0x248] sm:$0xff]
    %v307 = vld [vmem:[#allocation2 + $0x250] sm:$0xff]
    %v308 = vld [vmem:[#allocation2 + $0x258] sm:$0xff]
    %v309 = vld [vmem:[#allocation2 + $0x260] sm:$0xff]
    %v310 = vld [vmem:[#allocation2 + $0x268] sm:$0xff]
    %v311 = vld [vmem:[#allocation2 + $0x270] sm:$0xff]
    %v312 = vld [vmem:[#allocation2 + $0x278] sm:$0xff]
    %v313 = vld [vmem:[#allocation2 + $0x280] sm:$0xff]
    %v314 = vld [vmem:[#allocation2 + $0x288] sm:$0xff]
    %v315 = vld [vmem:[#allocation2 + $0x290] sm:$0xff]
    %v316 = vld [vmem:[#allocation2 + $0x298] sm:$0xff]
    %v317 = vld [vmem:[#allocation2 + $0x2a0] sm:$0xff]
    %v318 = vld [vmem:[#allocation2 + $0x2a8] sm:$0xff]
    %v319 = vld [vmem:[#allocation2 + $0x2b0] sm:$0xff]
    %v320 = vld [vmem:[#allocation2 + $0x2b8] sm:$0xff]
    %v321 = vld [vmem:[#allocation2 + $0x2c0] sm:$0xff]
    %v322 = vld [vmem:[#allocation2 + $0x2c8] sm:$0xff]
    %v323 = vld [vmem:[#allocation2 + $0x2d0] sm:$0xff]
    %v324 = vld [vmem:[#allocation2 + $0x2d8] sm:$0xff]
    %v325 = vld [vmem:[#allocation2 + $0x2e0] sm:$0xff]
    %v326 = vld [vmem:[#allocation2 + $0x2e8] sm:$0xff]
    %v327 = vld [vmem:[#allocation2 + $0x2f0] sm:$0xff]
    %v328 = vld [vmem:[#allocation2 + $0x2f8] sm:$0xff]
    %v329 = vld [vmem:[%s5] sm:$0x3f]
    %v331 = vperm.slane %v329, 0
    %v332 = vperm.slane %v329, 1
    %v333 = vperm.slane %v329, 2
    %v334 = vperm.slane %v329, 3
    %v335 = vperm.slane %v329, 4
    %v336 = vperm.slane %v329, 5
    %v439 = vunpack.c.l.b16 %v233
    %v440 = vunpack.c.h.b16 %v233
    %v441 = vunpack.c.l.b16 %v234
    %v442 = vunpack.c.h.b16 %v234
    %v443 = vunpack.c.l.b16 %v235
    %v444 = vunpack.c.h.b16 %v235
    %v445 = vunpack.c.l.b16 %v236
    %v446 = vunpack.c.h.b16 %v236
    %v447 = vunpack.c.l.b16 %v237
    %v448 = vunpack.c.h.b16 %v237
    %v449 = vunpack.c.l.b16 %v238
    %v450 = vunpack.c.h.b16 %v238
    %v451 = vunpack.c.l.b16 %v239
    %v452 = vunpack.c.h.b16 %v239
    %v453 = vunpack.c.l.b16 %v240
    %v454 = vunpack.c.h.b16 %v240
    %v455 = vunpack.c.l.b16 %v241
    %v456 = vunpack.c.h.b16 %v241
    %v457 = vunpack.c.l.b16 %v242
    %v458 = vunpack.c.h.b16 %v242
    %v459 = vunpack.c.l.b16 %v243
    %v460 = vunpack.c.h.b16 %v243
    %v461 = vunpack.c.l.b16 %v244
    %v462 = vunpack.c.h.b16 %v244
    %v463 = vunpack.c.l.b16 %v245
    %v464 = vunpack.c.h.b16 %v245
    %v465 = vunpack.c.l.b16 %v246
    %v466 = vunpack.c.h.b16 %v246
    %v467 = vunpack.c.l.b16 %v247
    %v468 = vunpack.c.h.b16 %v247
    %v469 = vunpack.c.l.b16 %v248
    %v470 = vunpack.c.h.b16 %v248
    %v471 = vunpack.c.l.b16 %v249
    %v472 = vunpack.c.h.b16 %v249
    %v473 = vunpack.c.l.b16 %v250
    %v474 = vunpack.c.h.b16 %v250
    %v475 = vunpack.c.l.b16 %v251
    %v476 = vunpack.c.h.b16 %v251
    %v477 = vunpack.c.l.b16 %v252
    %v478 = vunpack.c.h.b16 %v252
    %v479 = vunpack.c.l.b16 %v253
    %v480 = vunpack.c.h.b16 %v253
    %v481 = vunpack.c.l.b16 %v254
    %v482 = vunpack.c.h.b16 %v254
    %v483 = vunpack.c.l.b16 %v255
    %v484 = vunpack.c.h.b16 %v255
    %v485 = vunpack.c.l.b16 %v256
    %v486 = vunpack.c.h.b16 %v256
    %v487 = vunpack.c.l.b16 %v257
    %v488 = vunpack.c.h.b16 %v257
    %v489 = vunpack.c.l.b16 %v258
    %v490 = vunpack.c.h.b16 %v258
    %v491 = vunpack.c.l.b16 %v259
    %v492 = vunpack.c.h.b16 %v259
    %v493 = vunpack.c.l.b16 %v260
    %v494 = vunpack.c.h.b16 %v260
    %v495 = vunpack.c.l.b16 %v261
    %v496 = vunpack.c.h.b16 %v261
    %v497 = vunpack.c.l.b16 %v262
    %v498 = vunpack.c.h.b16 %v262
    %v499 = vunpack.c.l.b16 %v263
    %v500 = vunpack.c.h.b16 %v263
    %v501 = vunpack.c.l.b16 %v264
    %v502 = vunpack.c.h.b16 %v264
    %v503 = vunpack.c.l.b16 %v265
    %v504 = vunpack.c.h.b16 %v265
    %v505 = vunpack.c.l.b16 %v266
    %v506 = vunpack.c.h.b16 %v266
    %v507 = vunpack.c.l.b16 %v267
    %v508 = vunpack.c.h.b16 %v267
    %v509 = vunpack.c.l.b16 %v268
    %v510 = vunpack.c.h.b16 %v268
    %v511 = vunpack.c.l.b16 %v269
    %v512 = vunpack.c.h.b16 %v269
    %v513 = vunpack.c.l.b16 %v270
    %v514 = vunpack.c.h.b16 %v270
    %v515 = vunpack.c.l.b16 %v271
    %v516 = vunpack.c.h.b16 %v271
    %v517 = vunpack.c.l.b16 %v272
    %v518 = vunpack.c.h.b16 %v272
    %v519 = vunpack.c.l.b16 %v273
    %v520 = vunpack.c.h.b16 %v273
    %v521 = vunpack.c.l.b16 %v274
    %v522 = vunpack.c.h.b16 %v274
    %v523 = vunpack.c.l.b16 %v275
    %v524 = vunpack.c.h.b16 %v275
    %v525 = vunpack.c.l.b16 %v276
    %v526 = vunpack.c.h.b16 %v276
    %v527 = vunpack.c.l.b16 %v277
    %v528 = vunpack.c.h.b16 %v277
    %v529 = vunpack.c.l.b16 %v278
    %v530 = vunpack.c.h.b16 %v278
    %v531 = vunpack.c.l.b16 %v279
    %v532 = vunpack.c.h.b16 %v279
    %v533 = vunpack.c.l.b16 %v280
    %v534 = vunpack.c.h.b16 %v280
    %v535 = vunpack.c.l.b16 %v281
    %v536 = vunpack.c.h.b16 %v281
    %v537 = vunpack.c.l.b16 %v282
    %v538 = vunpack.c.h.b16 %v282
    %v539 = vunpack.c.l.b16 %v283
    %v540 = vunpack.c.h.b16 %v283
    %v541 = vunpack.c.l.b16 %v284
    %v542 = vunpack.c.h.b16 %v284
    %v543 = vunpack.c.l.b16 %v285
    %v544 = vunpack.c.h.b16 %v285
    %v545 = vunpack.c.l.b16 %v286
    %v546 = vunpack.c.h.b16 %v286
    %v547 = vunpack.c.l.b16 %v287
    %v548 = vunpack.c.h.b16 %v287
    %v549 = vunpack.c.l.b16 %v288
    %v550 = vunpack.c.h.b16 %v288
    %v551 = vunpack.c.l.b16 %v289
    %v552 = vunpack.c.h.b16 %v289
    %v553 = vunpack.c.l.b16 %v290
    %v554 = vunpack.c.h.b16 %v290
    %v555 = vunpack.c.l.b16 %v291
    %v556 = vunpack.c.h.b16 %v291
    %v557 = vunpack.c.l.b16 %v292
    %v558 = vunpack.c.h.b16 %v292
    %v559 = vunpack.c.l.b16 %v293
    %v560 = vunpack.c.h.b16 %v293
    %v561 = vunpack.c.l.b16 %v294
    %v562 = vunpack.c.h.b16 %v294
    %v563 = vunpack.c.l.b16 %v295
    %v564 = vunpack.c.h.b16 %v295
    %v565 = vunpack.c.l.b16 %v296
    %v566 = vunpack.c.h.b16 %v296
    %v567 = vunpack.c.l.b16 %v297
    %v568 = vunpack.c.h.b16 %v297
    %v569 = vunpack.c.l.b16 %v298
    %v570 = vunpack.c.h.b16 %v298
    %v571 = vunpack.c.l.b16 %v299
    %v572 = vunpack.c.h.b16 %v299
    %v573 = vunpack.c.l.b16 %v300
    %v574 = vunpack.c.h.b16 %v300
    %v575 = vunpack.c.l.b16 %v301
    %v576 = vunpack.c.h.b16 %v301
    %v577 = vunpack.c.l.b16 %v302
    %v578 = vunpack.c.h.b16 %v302
    %v579 = vunpack.c.l.b16 %v303
    %v580 = vunpack.c.h.b16 %v303
    %v581 = vunpack.c.l.b16 %v304
    %v582 = vunpack.c.h.b16 %v304
    %v583 = vunpack.c.l.b16 %v305
    %v584 = vunpack.c.h.b16 %v305
    %v585 = vunpack.c.l.b16 %v306
    %v586 = vunpack.c.h.b16 %v306
    %v587 = vunpack.c.l.b16 %v307
    %v588 = vunpack.c.h.b16 %v307
    %v589 = vunpack.c.l.b16 %v308
    %v590 = vunpack.c.h.b16 %v308
    %v591 = vunpack.c.l.b16 %v309
    %v592 = vunpack.c.h.b16 %v309
    %v593 = vunpack.c.l.b16 %v310
    %v594 = vunpack.c.h.b16 %v310
    %v595 = vunpack.c.l.b16 %v311
    %v596 = vunpack.c.h.b16 %v311
    %v597 = vunpack.c.l.b16 %v312
    %v598 = vunpack.c.h.b16 %v312
    %v599 = vunpack.c.l.b16 %v313
    %v600 = vunpack.c.h.b16 %v313
    %v601 = vunpack.c.l.b16 %v314
    %v602 = vunpack.c.h.b16 %v314
    %v603 = vunpack.c.l.b16 %v315
    %v604 = vunpack.c.h.b16 %v315
    %v605 = vunpack.c.l.b16 %v316
    %v606 = vunpack.c.h.b16 %v316
    %v607 = vunpack.c.l.b16 %v317
    %v608 = vunpack.c.h.b16 %v317
    %v609 = vunpack.c.l.b16 %v318
    %v610 = vunpack.c.h.b16 %v318
    %v611 = vunpack.c.l.b16 %v319
    %v612 = vunpack.c.h.b16 %v319
    %v613 = vunpack.c.l.b16 %v320
    %v614 = vunpack.c.h.b16 %v320
    %v615 = vunpack.c.l.b16 %v321
    %v616 = vunpack.c.h.b16 %v321
    %v617 = vunpack.c.l.b16 %v322
    %v618 = vunpack.c.h.b16 %v322
    %v619 = vunpack.c.l.b16 %v323
    %v620 = vunpack.c.h.b16 %v323
    %v621 = vunpack.c.l.b16 %v324
    %v622 = vunpack.c.h.b16 %v324
    %v623 = vunpack.c.l.b16 %v325
    %v624 = vunpack.c.h.b16 %v325
    %v625 = vunpack.c.l.b16 %v326
    %v626 = vunpack.c.h.b16 %v326
    %v627 = vunpack.c.l.b16 %v327
    %v628 = vunpack.c.h.b16 %v327
    %v629 = vunpack.c.l.b16 %v328
    %v630 = vunpack.c.h.b16 %v328
    %v631 = vpack.c.b16 %v445, %v439
    %v632 = vpack.c.b16 %v446, %v440
    %v633 = vpack.c.b16 %v447, %v441
    %v634 = vpack.c.b16 %v448, %v442
    %v635 = vpack.c.b16 %v449, %v443
    %v636 = vpack.c.b16 %v450, %v444
    %v637 = vpack.c.b16 %v457, %v451
    %v638 = vpack.c.b16 %v458, %v452
    %v639 = vpack.c.b16 %v459, %v453
    %v640 = vpack.c.b16 %v460, %v454
    %v641 = vpack.c.b16 %v461, %v455
    %v642 = vpack.c.b16 %v462, %v456
    %v643 = vpack.c.b16 %v469, %v463
    %v644 = vpack.c.b16 %v470, %v464
    %v645 = vpack.c.b16 %v471, %v465
    %v646 = vpack.c.b16 %v472, %v466
    %v647 = vpack.c.b16 %v473, %v467
    %v648 = vpack.c.b16 %v474, %v468
    %v649 = vpack.c.b16 %v481, %v475
    %v650 = vpack.c.b16 %v482, %v476
    %v651 = vpack.c.b16 %v483, %v477
    %v652 = vpack.c.b16 %v484, %v478
    %v653 = vpack.c.b16 %v485, %v479
    %v654 = vpack.c.b16 %v486, %v480
    %v655 = vpack.c.b16 %v493, %v487
    %v656 = vpack.c.b16 %v494, %v488
    %v657 = vpack.c.b16 %v495, %v489
    %v658 = vpack.c.b16 %v496, %v490
    %v659 = vpack.c.b16 %v497, %v491
    %v660 = vpack.c.b16 %v498, %v492
    %v661 = vpack.c.b16 %v505, %v499
    %v662 = vpack.c.b16 %v506, %v500
    %v663 = vpack.c.b16 %v507, %v501
    %v664 = vpack.c.b16 %v508, %v502
    %v665 = vpack.c.b16 %v509, %v503
    %v666 = vpack.c.b16 %v510, %v504
    %v667 = vpack.c.b16 %v517, %v511
    %v668 = vpack.c.b16 %v518, %v512
    %v669 = vpack.c.b16 %v519, %v513
    %v670 = vpack.c.b16 %v520, %v514
    %v671 = vpack.c.b16 %v521, %v515
    %v672 = vpack.c.b16 %v522, %v516
    %v673 = vpack.c.b16 %v529, %v523
    %v674 = vpack.c.b16 %v530, %v524
    %v675 = vpack.c.b16 %v531, %v525
    %v676 = vpack.c.b16 %v532, %v526
    %v677 = vpack.c.b16 %v533, %v527
    %v678 = vpack.c.b16 %v534, %v528
    %v679 = vpack.c.b16 %v541, %v535
    %v680 = vpack.c.b16 %v542, %v536
    %v681 = vpack.c.b16 %v543, %v537
    %v682 = vpack.c.b16 %v544, %v538
    %v683 = vpack.c.b16 %v545, %v539
    %v684 = vpack.c.b16 %v546, %v540
    %v685 = vpack.c.b16 %v553, %v547
    %v686 = vpack.c.b16 %v554, %v548
    %v687 = vpack.c.b16 %v555, %v549
    %v688 = vpack.c.b16 %v556, %v550
    %v689 = vpack.c.b16 %v557, %v551
    %v690 = vpack.c.b16 %v558, %v552
    %v691 = vpack.c.b16 %v565, %v559
    %v692 = vpack.c.b16 %v566, %v560
    %v693 = vpack.c.b16 %v567, %v561
    %v694 = vpack.c.b16 %v568, %v562
    %v695 = vpack.c.b16 %v569, %v563
    %v696 = vpack.c.b16 %v570, %v564
    %v697 = vpack.c.b16 %v577, %v571
    %v698 = vpack.c.b16 %v578, %v572
    %v699 = vpack.c.b16 %v579, %v573
    %v700 = vpack.c.b16 %v580, %v574
    %v701 = vpack.c.b16 %v581, %v575
    %v702 = vpack.c.b16 %v582, %v576
    %v703 = vpack.c.b16 %v589, %v583
    %v704 = vpack.c.b16 %v590, %v584
    %v705 = vpack.c.b16 %v591, %v585
    %v706 = vpack.c.b16 %v592, %v586
    %v707 = vpack.c.b16 %v593, %v587
    %v708 = vpack.c.b16 %v594, %v588
    %v709 = vpack.c.b16 %v601, %v595
    %v710 = vpack.c.b16 %v602, %v596
    %v711 = vpack.c.b16 %v603, %v597
    %v712 = vpack.c.b16 %v604, %v598
    %v713 = vpack.c.b16 %v605, %v599
    %v714 = vpack.c.b16 %v606, %v600
    %v715 = vpack.c.b16 %v613, %v607
    %v716 = vpack.c.b16 %v614, %v608
    %v717 = vpack.c.b16 %v615, %v609
    %v718 = vpack.c.b16 %v616, %v610
    %v719 = vpack.c.b16 %v617, %v611
    %v720 = vpack.c.b16 %v618, %v612
    %v721 = vpack.c.b16 %v625, %v619
    %v722 = vpack.c.b16 %v626, %v620
    %v723 = vpack.c.b16 %v627, %v621
    %v724 = vpack.c.b16 %v628, %v622
    %v725 = vpack.c.b16 %v629, %v623
    %v726 = vpack.c.b16 %v630, %v624
    %823 = vmatpush.bf16.msra.mxu0 %v673
    %824 = vmatpush.bf16.msra.mxu0 %v667
    %825 = vmatpush.bf16.msra.mxu0 %v661
    %826 = vmatpush.bf16.msra.mxu0 %v655
    %827 = vmatpush.bf16.msra.mxu0 %v649
    %828 = vmatpush.bf16.msra.mxu0 %v643
    %829 = vmatpush.bf16.msra.mxu0 %v637
    %830 = vmatpush.bf16.msra.mxu0 %v631
    %831 = vmatmul.bf16.gmra.mxu0 %v231
    %v832 = vpop.f32.mrf.mxu0
    %v833 = vadd.f32 %v331, %v832
    %v834 = vpop.f32.mrf.mxu0
    %v835 = vadd.f32 %v331, %v834
    %836 = vdwg.mxu0
    %837 = vmatpush.bf16.msra.mxu0 %v721
    %838 = vmatpush.bf16.msra.mxu0 %v715
    %839 = vmatpush.bf16.msra.mxu0 %v709
    %840 = vmatpush.bf16.msra.mxu0 %v703
    %841 = vmatpush.bf16.msra.mxu0 %v697
    %842 = vmatpush.bf16.msra.mxu0 %v691
    %843 = vmatpush.bf16.msra.mxu0 %v685
    %844 = vmatpush.bf16.msra.mxu0 %v679
    %845 = vmatmul.bf16.gmra.mxu0 %v232
    %v846 = vpop.f32.mrf.mxu0
    %v847 = vadd.f32 %v833, %v846
    %v848 = vpop.f32.mrf.mxu0
    %v849 = vadd.f32 %v835, %v848
    %850 = vdwg.mxu0
    %851 = vmatpush.bf16.msra.mxu0 %v674
    %852 = vmatpush.bf16.msra.mxu0 %v668
    %853 = vmatpush.bf16.msra.mxu0 %v662
    %854 = vmatpush.bf16.msra.mxu0 %v656
    %855 = vmatpush.bf16.msra.mxu0 %v650
    %856 = vmatpush.bf16.msra.mxu0 %v644
    %857 = vmatpush.bf16.msra.mxu0 %v638
    %858 = vmatpush.bf16.msra.mxu0 %v632
    %859 = vmatmul.bf16.gmra.mxu0 %v231
    %v860 = vpop.f32.mrf.mxu0
    %v861 = vadd.f32 %v332, %v860
    %v862 = vpop.f32.mrf.mxu0
    %v863 = vadd.f32 %v332, %v862
    %864 = vdwg.mxu0
    %865 = vmatpush.bf16.msra.mxu0 %v722
    %866 = vmatpush.bf16.msra.mxu0 %v716
    %867 = vmatpush.bf16.msra.mxu0 %v710
    %868 = vmatpush.bf16.msra.mxu0 %v704
    %869 = vmatpush.bf16.msra.mxu0 %v698
    %870 = vmatpush.bf16.msra.mxu0 %v692
    %871 = vmatpush.bf16.msra.mxu0 %v686
    %872 = vmatpush.bf16.msra.mxu0 %v680
    %873 = vmatmul.bf16.gmra.mxu0 %v232
    %v874 = vpop.f32.mrf.mxu0
    %v875 = vadd.f32 %v861, %v874
    %v876 = vpop.f32.mrf.mxu0
    %v877 = vadd.f32 %v863, %v876
    %878 = vdwg.mxu0
    %879 = vmatpush.bf16.msra.mxu0 %v675
    %880 = vmatpush.bf16.msra.mxu0 %v669
    %881 = vmatpush.bf16.msra.mxu0 %v663
    %882 = vmatpush.bf16.msra.mxu0 %v657
    %883 = vmatpush.bf16.msra.mxu0 %v651
    %884 = vmatpush.bf16.msra.mxu0 %v645
    %885 = vmatpush.bf16.msra.mxu0 %v639
    %886 = vmatpush.bf16.msra.mxu0 %v633
    %887 = vmatmul.bf16.gmra.mxu0 %v231
    %v888 = vpop.f32.mrf.mxu0
    %v889 = vadd.f32 %v333, %v888
    %v890 = vpop.f32.mrf.mxu0
    %v891 = vadd.f32 %v333, %v890
    %892 = vdwg.mxu0
    %893 = vmatpush.bf16.msra.mxu0 %v723
    %894 = vmatpush.bf16.msra.mxu0 %v717
    %895 = vmatpush.bf16.msra.mxu0 %v711
    %896 = vmatpush.bf16.msra.mxu0 %v705
    %897 = vmatpush.bf16.msra.mxu0 %v699
    %898 = vmatpush.bf16.msra.mxu0 %v693
    %899 = vmatpush.bf16.msra.mxu0 %v687
    %900 = vmatpush.bf16.msra.mxu0 %v681
    %901 = vmatmul.bf16.gmra.mxu0 %v232
    %v902 = vpop.f32.mrf.mxu0
    %v903 = vadd.f32 %v889, %v902
    %v904 = vpop.f32.mrf.mxu0
    %v905 = vadd.f32 %v891, %v904
    %906 = vdwg.mxu0
    %907 = vmatpush.bf16.msra.mxu0 %v676
    %908 = vmatpush.bf16.msra.mxu0 %v670
    %909 = vmatpush.bf16.msra.mxu0 %v664
    %910 = vmatpush.bf16.msra.mxu0 %v658
    %911 = vmatpush.bf16.msra.mxu0 %v652
    %912 = vmatpush.bf16.msra.mxu0 %v646
    %913 = vmatpush.bf16.msra.mxu0 %v640
    %914 = vmatpush.bf16.msra.mxu0 %v634
    %915 = vmatmul.bf16.gmra.mxu0 %v231
    %v916 = vpop.f32.mrf.mxu0
    %v917 = vadd.f32 %v334, %v916
    %v918 = vpop.f32.mrf.mxu0
    %v919 = vadd.f32 %v334, %v918
    %920 = vdwg.mxu0
    %921 = vmatpush.bf16.msra.mxu0 %v724
    %922 = vmatpush.bf16.msra.mxu0 %v718
    %923 = vmatpush.bf16.msra.mxu0 %v712
    %924 = vmatpush.bf16.msra.mxu0 %v706
    %925 = vmatpush.bf16.msra.mxu0 %v700
    %926 = vmatpush.bf16.msra.mxu0 %v694
    %927 = vmatpush.bf16.msra.mxu0 %v688
    %928 = vmatpush.bf16.msra.mxu0 %v682
    %929 = vmatmul.bf16.gmra.mxu0 %v232
    %v930 = vpop.f32.mrf.mxu0
    %v931 = vadd.f32 %v917, %v930
    %v932 = vpop.f32.mrf.mxu0
    %v933 = vadd.f32 %v919, %v932
    %934 = vdwg.mxu0
    %935 = vmatpush.bf16.msra.mxu0 %v677
    %936 = vmatpush.bf16.msra.mxu0 %v671
    %937 = vmatpush.bf16.msra.mxu0 %v665
    %938 = vmatpush.bf16.msra.mxu0 %v659
    %939 = vmatpush.bf16.msra.mxu0 %v653
    %940 = vmatpush.bf16.msra.mxu0 %v647
    %941 = vmatpush.bf16.msra.mxu0 %v641
    %942 = vmatpush.bf16.msra.mxu0 %v635
    %943 = vmatmul.bf16.gmra.mxu0 %v231
    %v944 = vpop.f32.mrf.mxu0
    %v945 = vadd.f32 %v335, %v944
    %v946 = vpop.f32.mrf.mxu0
    %v947 = vadd.f32 %v335, %v946
    %948 = vdwg.mxu0
    %949 = vmatpush.bf16.msra.mxu0 %v725
    %950 = vmatpush.bf16.msra.mxu0 %v719
    %951 = vmatpush.bf16.msra.mxu0 %v713
    %952 = vmatpush.bf16.msra.mxu0 %v707
    %953 = vmatpush.bf16.msra.mxu0 %v701
    %954 = vmatpush.bf16.msra.mxu0 %v695
    %955 = vmatpush.bf16.msra.mxu0 %v689
    %956 = vmatpush.bf16.msra.mxu0 %v683
    %957 = vmatmul.bf16.gmra.mxu0 %v232
    %v958 = vpop.f32.mrf.mxu0
    %v959 = vadd.f32 %v945, %v958
    %v960 = vpop.f32.mrf.mxu0
    %v961 = vadd.f32 %v947, %v960
    %962 = vdwg.mxu0
    %963 = vmatpush.bf16.msra.mxu0 %v678
    %964 = vmatpush.bf16.msra.mxu0 %v672
    %965 = vmatpush.bf16.msra.mxu0 %v666
    %966 = vmatpush.bf16.msra.mxu0 %v660
    %967 = vmatpush.bf16.msra.mxu0 %v654
    %968 = vmatpush.bf16.msra.mxu0 %v648
    %969 = vmatpush.bf16.msra.mxu0 %v642
    %970 = vmatpush.bf16.msra.mxu0 %v636
    %971 = vmatmul.bf16.gmra.mxu0 %v231
    %v972 = vpop.f32.mrf.mxu0
    %v973 = vadd.f32 %v336, %v972
    %v974 = vpop.f32.mrf.mxu0
    %v975 = vadd.f32 %v336, %v974
    %976 = vdwg.mxu0
    %977 = vmatpush.bf16.msra.mxu0 %v726
    %978 = vmatpush.bf16.msra.mxu0 %v720
    %979 = vmatpush.bf16.msra.mxu0 %v714
    %980 = vmatpush.bf16.msra.mxu0 %v708
    %981 = vmatpush.bf16.msra.mxu0 %v702
    %982 = vmatpush.bf16.msra.mxu0 %v696
    %983 = vmatpush.bf16.msra.mxu0 %v690
    %984 = vmatpush.bf16.msra.mxu0 %v684
    %985 = vmatmul.bf16.gmra.mxu0 %v232
    %v986 = vpop.f32.mrf.mxu0
    %v987 = vadd.f32 %v973, %v986
    %v988 = vpop.f32.mrf.mxu0
    %v989 = vadd.f32 %v975, %v988
    %990 = vdwg.mxu0
    %v991 = vmul.f32 %v847, 0.088388346
    %v992 = vmul.f32 %v875, 0.088388346
    %v993 = vmul.f32 %v849, 0.088388346
    %v994 = vmul.f32 %v877, 0.088388346
    %v995 = vpack.c.bf16 %v991, %v991
    %v996 = vpack.c.bf16 %v993, %v993
    %v997 = vpack.c.bf16 %v903, %v903
    %v998 = vpack.c.bf16 %v905, %v905
    %v999 = vpack.c.bf16 %v959, %v959
    %v1000 = vpack.c.bf16 %v961, %v961
    %1001 = vmatpush.bf16.xpose.msra.mxu0 0
    %1002 = vmatpush.bf16.xpose.msra.mxu0 0
    %1003 = vmatpush.bf16.xpose.msra.mxu0 0
    %1004 = vmatpush.bf16.xpose.msra.mxu0 0
    %1005 = vmatpush.bf16.xpose.msra.mxu0 0
    %1006 = vmatpush.bf16.xpose.msra.mxu0 0
    %1007 = vmatpush.bf16.xpose.msra.mxu0 0
    %1008 = vmatpush.bf16.xpose.msra.mxu0 %v997
    %1009 = vmatmul.bf16.gmra.mxu0 %v995
    %v1010 = vpop.f32.mrf.mxu0
    %v1011 = vadd.f32 %v227, %v1010
    %v1012 = vpop.f32.mrf.mxu0
    %1013 = vdwg.mxu0
    %1014 = vmatpush.bf16.xpose.msra.mxu0 0
    %1015 = vmatpush.bf16.xpose.msra.mxu0 0
    %1016 = vmatpush.bf16.xpose.msra.mxu0 0
    %1017 = vmatpush.bf16.xpose.msra.mxu0 0
    %1018 = vmatpush.bf16.xpose.msra.mxu0 0
    %1019 = vmatpush.bf16.xpose.msra.mxu0 0
    %1020 = vmatpush.bf16.xpose.msra.mxu0 0
    %1021 = vmatpush.bf16.xpose.msra.mxu0 %v998
    %1022 = vmatmul.bf16.gmra.mxu0 %v996
    %v1023 = vpop.f32.mrf.mxu0
    %v1024 = vadd.f32 %v228, %v1023
    %v1025 = vpop.f32.mrf.mxu0
    %1026 = vdwg.mxu0
    %vm1027 = vcmask 64512
    %v1028 = vsel %vm1027, %v1011, -inf
    %1029 = vmax.xlane.f32.xlu0 %v1028
    %v1030 = vpop.xlane.xlu0 %1029
    %v1031 = vsel %vm1027, %v1024, -inf
    %1032 = vmax.xlane.f32.xlu0 %v1031
    %v1033 = vpop.xlane.xlu0 %1032
    %v1034 = vsub.f32 %v1011, %v1030
    %v1035 = vsub.f32 %v1024, %v1033
    %v1036 = vmul.f32 %v1034, 1.442695
    %v1037 = vpow.pop %v1036
    %v1038 = vmul.f32 %v1035, 1.442695
    %v1039 = vpow.pop %v1038
    %v1040 = vsel %vm1027, %v1037, 0.0
    %1041 = vadd.xlane.f32.xlu0 %v1040
    %v1042 = vpop.xlane.xlu0 %1041
    %v1043 = vsel %vm1027, %v1039, 0.0
    %1044 = vadd.xlane.f32.xlu0 %v1043
    %v1045 = vpop.xlane.xlu0 %1044
    %v1046 = vrcp.pop %v1042
    %v1047 = vmul.f32 %v1042, %v1046
    %v1048 = vsub.f32 1.0, %v1047
    %v1049 = vmul.f32 %v1046, %v1048
    %v1050 = vadd.f32 %v1046, %v1049
    %vm1051 = vweird.f32 %v1042
    %vm1052 = vweird.f32 %v1046
    %vm1053 = vmor %vm1051, %vm1052
    %v1054 = vsel %vm1053, %v1046, %v1050
    %v1055 = vand.u32 2147483647, %v1042
    %vm1056 = vcmp.eq.f32.partialorder %v1055, 8.507059e+37
    %v1057 = vand.u32 %v1042, 2147483648
    %v1058 = vor.u32 1.1754944e-38, %v1057
    %v1059 = vsel %vm1056, %v1058, %v1054
    %v1060 = vmul.f32 %v1037, %v1059
    %v1061 = vrcp.pop %v1045
    %v1062 = vmul.f32 %v1045, %v1061
    %v1063 = vsub.f32 1.0, %v1062
    %v1064 = vmul.f32 %v1061, %v1063
    %v1065 = vadd.f32 %v1061, %v1064
    %vm1066 = vweird.f32 %v1045
    %vm1067 = vweird.f32 %v1061
    %vm1068 = vmor %vm1066, %vm1067
    %v1069 = vsel %vm1068, %v1061, %v1065
    %v1070 = vand.u32 2147483647, %v1045
    %vm1071 = vcmp.eq.f32.partialorder %v1070, 8.507059e+37
    %v1072 = vand.u32 %v1045, 2147483648
    %v1073 = vor.u32 1.1754944e-38, %v1072
    %v1074 = vsel %vm1071, %v1073, %v1069
    %v1075 = vmul.f32 %v1039, %v1074
    %v1076 = vpack.c.bf16 %v1060, %v1060
    %v1077 = vpack.c.bf16 %v1075, %v1075
    %v1079 = vsel %vm1027, %v1076, 0
    %vm1081 = vcmask 1043456
    %v1083 = vsel %vm1081, %v999, 0
    %1085 = vmatpush.bf16.msra.mxu0 0
    %1086 = vmatpush.bf16.msra.mxu0 0
    %1087 = vmatpush.bf16.msra.mxu0 0
    %1088 = vmatpush.bf16.msra.mxu0 0
    %1089 = vmatpush.bf16.msra.mxu0 0
    %1090 = vmatpush.bf16.msra.mxu0 0
    %1091 = vmatpush.bf16.msra.mxu0 0
    %1092 = vmatpush.bf16.msra.mxu0 %v1083
    %1093 = vmatmul.bf16.gmra.mxu0 %v1079
    %v1094 = vpop.f32.mrf.mxu0
    %v1095 = vadd.f32 0.0, %v1094
    %v1096 = vpop.f32.mrf.mxu0
    %1097 = vdwg.mxu0
    %v1099 = vsel %vm1027, %v1077, 0
    %v1102 = vsel %vm1081, %v1000, 0
    %1104 = vmatpush.bf16.msra.mxu0 0
    %1105 = vmatpush.bf16.msra.mxu0 0
    %1106 = vmatpush.bf16.msra.mxu0 0
    %1107 = vmatpush.bf16.msra.mxu0 0
    %1108 = vmatpush.bf16.msra.mxu0 0
    %1109 = vmatpush.bf16.msra.mxu0 0
    %1110 = vmatpush.bf16.msra.mxu0 0
    %1111 = vmatpush.bf16.msra.mxu0 %v1102
    %1112 = vmatmul.bf16.gmra.mxu0 %v1099
    %v1113 = vpop.f32.mrf.mxu0
    %v1114 = vadd.f32 0.0, %v1113
    %v1115 = vpop.f32.mrf.mxu0
    %1116 = vdwg.mxu0
    %v1117 = vpack.c.bf16 %v992, %v992
    %v1118 = vpack.c.bf16 %v994, %v994
    %v1119 = vpack.c.bf16 %v931, %v931
    %v1120 = vpack.c.bf16 %v933, %v933
    %v1121 = vpack.c.bf16 %v987, %v987
    %v1122 = vpack.c.bf16 %v989, %v989
    %1123 = vmatpush.bf16.xpose.msra.mxu0 0
    %1124 = vmatpush.bf16.xpose.msra.mxu0 0
    %1125 = vmatpush.bf16.xpose.msra.mxu0 0
    %1126 = vmatpush.bf16.xpose.msra.mxu0 0
    %1127 = vmatpush.bf16.xpose.msra.mxu0 0
    %1128 = vmatpush.bf16.xpose.msra.mxu0 0
    %1129 = vmatpush.bf16.xpose.msra.mxu0 0
    %1130 = vmatpush.bf16.xpose.msra.mxu0 %v1119
    %1131 = vmatmul.bf16.gmra.mxu0 %v1117
    %v1132 = vpop.f32.mrf.mxu0
    %v1133 = vadd.f32 %v227, %v1132
    %v1134 = vpop.f32.mrf.mxu0
    %1135 = vdwg.mxu0
    %1136 = vmatpush.bf16.xpose.msra.mxu0 0
    %1137 = vmatpush.bf16.xpose.msra.mxu0 0
    %1138 = vmatpush.bf16.xpose.msra.mxu0 0
    %1139 = vmatpush.bf16.xpose.msra.mxu0 0
    %1140 = vmatpush.bf16.xpose.msra.mxu0 0
    %1141 = vmatpush.bf16.xpose.msra.mxu0 0
    %1142 = vmatpush.bf16.xpose.msra.mxu0 0
    %1143 = vmatpush.bf16.xpose.msra.mxu0 %v1120
    %1144 = vmatmul.bf16.gmra.mxu0 %v1118
    %v1145 = vpop.f32.mrf.mxu0
    %v1146 = vadd.f32 %v228, %v1145
    %v1147 = vpop.f32.mrf.mxu0
    %1148 = vdwg.mxu0
    %v1149 = vsel %vm1027, %v1133, -inf
    %1150 = vmax.xlane.f32.xlu0 %v1149
    %v1151 = vpop.xlane.xlu0 %1150
    %v1152 = vsel %vm1027, %v1146, -inf
    %1153 = vmax.xlane.f32.xlu0 %v1152
    %v1154 = vpop.xlane.xlu0 %1153
    %v1155 = vsub.f32 %v1133, %v1151
    %v1156 = vsub.f32 %v1146, %v1154
    %v1157 = vmul.f32 %v1155, 1.442695
    %v1158 = vpow.pop %v1157
    %v1159 = vmul.f32 %v1156, 1.442695
    %v1160 = vpow.pop %v1159
    %v1161 = vsel %vm1027, %v1158, 0.0
    %1162 = vadd.xlane.f32.xlu0 %v1161
    %v1163 = vpop.xlane.xlu0 %1162
    %v1164 = vsel %vm1027, %v1160, 0.0
    %1165 = vadd.xlane.f32.xlu0 %v1164
    %v1166 = vpop.xlane.xlu0 %1165
    %v1167 = vrcp.pop %v1163
    %v1168 = vmul.f32 %v1163, %v1167
    %v1169 = vsub.f32 1.0, %v1168
    %v1170 = vmul.f32 %v1167, %v1169
    %v1171 = vadd.f32 %v1167, %v1170
    %vm1172 = vweird.f32 %v1163
    %vm1173 = vweird.f32 %v1167
    %vm1174 = vmor %vm1172, %vm1173
    %v1175 = vsel %vm1174, %v1167, %v1171
    %v1176 = vand.u32 2147483647, %v1163
    %vm1177 = vcmp.eq.f32.partialorder %v1176, 8.507059e+37
    %v1178 = vand.u32 %v1163, 2147483648
    %v1179 = vor.u32 1.1754944e-38, %v1178
    %v1180 = vsel %vm1177, %v1179, %v1175
    %v1181 = vmul.f32 %v1158, %v1180
    %v1182 = vrcp.pop %v1166
    %v1183 = vmul.f32 %v1166, %v1182
    %v1184 = vsub.f32 1.0, %v1183
    %v1185 = vmul.f32 %v1182, %v1184
    %v1186 = vadd.f32 %v1182, %v1185
    %vm1187 = vweird.f32 %v1166
    %vm1188 = vweird.f32 %v1182
    %vm1189 = vmor %vm1187, %vm1188
    %v1190 = vsel %vm1189, %v1182, %v1186
    %v1191 = vand.u32 2147483647, %v1166
    %vm1192 = vcmp.eq.f32.partialorder %v1191, 8.507059e+37
    %v1193 = vand.u32 %v1166, 2147483648
    %v1194 = vor.u32 1.1754944e-38, %v1193
    %v1195 = vsel %vm1192, %v1194, %v1190
    %v1196 = vmul.f32 %v1160, %v1195
    %v1197 = vpack.c.bf16 %v1181, %v1181
    %v1198 = vpack.c.bf16 %v1196, %v1196
    %v1200 = vsel %vm1027, %v1197, 0
    %v1203 = vsel %vm1081, %v1121, 0
    %1205 = vmatpush.bf16.msra.mxu0 0
    %1206 = vmatpush.bf16.msra.mxu0 0
    %1207 = vmatpush.bf16.msra.mxu0 0
    %1208 = vmatpush.bf16.msra.mxu0 0
    %1209 = vmatpush.bf16.msra.mxu0 0
    %1210 = vmatpush.bf16.msra.mxu0 0
    %1211 = vmatpush.bf16.msra.mxu0 0
    %1212 = vmatpush.bf16.msra.mxu0 %v1203
    %1213 = vmatmul.bf16.gmra.mxu0 %v1200
    %v1214 = vpop.f32.mrf.mxu0
    %v1215 = vadd.f32 0.0, %v1214
    %v1216 = vpop.f32.mrf.mxu0
    %1217 = vdwg.mxu0
    %v1219 = vsel %vm1027, %v1198, 0
    %v1222 = vsel %vm1081, %v1122, 0
    %1224 = vmatpush.bf16.msra.mxu0 0
    %1225 = vmatpush.bf16.msra.mxu0 0
    %1226 = vmatpush.bf16.msra.mxu0 0
    %1227 = vmatpush.bf16.msra.mxu0 0
    %1228 = vmatpush.bf16.msra.mxu0 0
    %1229 = vmatpush.bf16.msra.mxu0 0
    %1230 = vmatpush.bf16.msra.mxu0 0
    %1231 = vmatpush.bf16.msra.mxu0 %v1222
    %1232 = vmatmul.bf16.gmra.mxu0 %v1219
    %v1233 = vpop.f32.mrf.mxu0
    %v1234 = vadd.f32 0.0, %v1233
    %v1235 = vpop.f32.mrf.mxu0
    %1236 = vdwg.mxu0
    %v1237 = vpack.c.bf16 %v1114, %v1095
    %v1238 = vpack.c.bf16 %v1234, %v1215
    %v1239 = vld [vmem:[#allocation5] sm:$0xff]
    %v1240 = vld [vmem:[#allocation5 + $0x8] sm:$0xff]
    %v1241 = vld [vmem:[#allocation5 + $0x10] sm:$0xff]
    %v1242 = vld [vmem:[#allocation5 + $0x18] sm:$0xff]
    %v1243 = vld [vmem:[#allocation5 + $0x20] sm:$0xff]
    %v1244 = vld [vmem:[#allocation5 + $0x28] sm:$0xff]
    %v1245 = vld [vmem:[#allocation5 + $0x30] sm:$0xff]
    %v1246 = vld [vmem:[#allocation5 + $0x38] sm:$0xff]
    %v1247 = vld [vmem:[#allocation5 + $0x40] sm:$0xff]
    %v1248 = vld [vmem:[#allocation5 + $0x48] sm:$0xff]
    %v1249 = vld [vmem:[#allocation5 + $0x50] sm:$0xff]
    %v1250 = vld [vmem:[#allocation5 + $0x58] sm:$0xff]
    %v1251 = vld [vmem:[#allocation5 + $0x60] sm:$0xff]
    %v1252 = vld [vmem:[#allocation5 + $0x68] sm:$0xff]
    %v1253 = vld [vmem:[#allocation5 + $0x70] sm:$0xff]
    %v1254 = vld [vmem:[#allocation5 + $0x78] sm:$0xff]
    %v1255 = vld [vmem:[#allocation5 + $0x80] sm:$0xff]
    %v1256 = vld [vmem:[#allocation5 + $0x88] sm:$0xff]
    %v1257 = vld [vmem:[#allocation5 + $0x90] sm:$0xff]
    %v1258 = vld [vmem:[#allocation5 + $0x98] sm:$0xff]
    %v1259 = vld [vmem:[#allocation5 + $0xa0] sm:$0xff]
    %v1260 = vld [vmem:[#allocation5 + $0xa8] sm:$0xff]
    %v1261 = vld [vmem:[#allocation5 + $0xb0] sm:$0xff]
    %v1262 = vld [vmem:[#allocation5 + $0xb8] sm:$0xff]
    %v1263 = vld [vmem:[#allocation5 + $0xc0] sm:$0xff]
    %v1264 = vld [vmem:[#allocation5 + $0xc8] sm:$0xff]
    %v1265 = vld [vmem:[#allocation5 + $0xd0] sm:$0xff]
    %v1266 = vld [vmem:[#allocation5 + $0xd8] sm:$0xff]
    %v1267 = vld [vmem:[#allocation5 + $0xe0] sm:$0xff]
    %v1268 = vld [vmem:[#allocation5 + $0xe8] sm:$0xff]
    %v1269 = vld [vmem:[#allocation5 + $0xf0] sm:$0xff]
    %v1270 = vld [vmem:[#allocation5 + $0xf8] sm:$0xff]
    %v1271 = vld [vmem:[%s7] sm:$0x3]
    %v1273 = vperm.slane %v1271, 0
    %v1274 = vperm.slane %v1271, 1
    %v1309 = vunpack.c.l.b16 %v1239
    %v1310 = vunpack.c.h.b16 %v1239
    %v1311 = vunpack.c.l.b16 %v1240
    %v1312 = vunpack.c.h.b16 %v1240
    %v1313 = vunpack.c.l.b16 %v1241
    %v1314 = vunpack.c.h.b16 %v1241
    %v1315 = vunpack.c.l.b16 %v1242
    %v1316 = vunpack.c.h.b16 %v1242
    %v1317 = vunpack.c.l.b16 %v1243
    %v1318 = vunpack.c.h.b16 %v1243
    %v1319 = vunpack.c.l.b16 %v1244
    %v1320 = vunpack.c.h.b16 %v1244
    %v1321 = vunpack.c.l.b16 %v1245
    %v1322 = vunpack.c.h.b16 %v1245
    %v1323 = vunpack.c.l.b16 %v1246
    %v1324 = vunpack.c.h.b16 %v1246
    %v1325 = vunpack.c.l.b16 %v1247
    %v1326 = vunpack.c.h.b16 %v1247
    %v1327 = vunpack.c.l.b16 %v1248
    %v1328 = vunpack.c.h.b16 %v1248
    %v1329 = vunpack.c.l.b16 %v1249
    %v1330 = vunpack.c.h.b16 %v1249
    %v1331 = vunpack.c.l.b16 %v1250
    %v1332 = vunpack.c.h.b16 %v1250
    %v1333 = vunpack.c.l.b16 %v1251
    %v1334 = vunpack.c.h.b16 %v1251
    %v1335 = vunpack.c.l.b16 %v1252
    %v1336 = vunpack.c.h.b16 %v1252
    %v1337 = vunpack.c.l.b16 %v1253
    %v1338 = vunpack.c.h.b16 %v1253
    %v1339 = vunpack.c.l.b16 %v1254
    %v1340 = vunpack.c.h.b16 %v1254
    %v1341 = vunpack.c.l.b16 %v1255
    %v1342 = vunpack.c.h.b16 %v1255
    %v1343 = vunpack.c.l.b16 %v1256
    %v1344 = vunpack.c.h.b16 %v1256
    %v1345 = vunpack.c.l.b16 %v1257
    %v1346 = vunpack.c.h.b16 %v1257
    %v1347 = vunpack.c.l.b16 %v1258
    %v1348 = vunpack.c.h.b16 %v1258
    %v1349 = vunpack.c.l.b16 %v1259
    %v1350 = vunpack.c.h.b16 %v1259
    %v1351 = vunpack.c.l.b16 %v1260
    %v1352 = vunpack.c.h.b16 %v1260
    %v1353 = vunpack.c.l.b16 %v1261
    %v1354 = vunpack.c.h.b16 %v1261
    %v1355 = vunpack.c.l.b16 %v1262
    %v1356 = vunpack.c.h.b16 %v1262
    %v1357 = vunpack.c.l.b16 %v1263
    %v1358 = vunpack.c.h.b16 %v1263
    %v1359 = vunpack.c.l.b16 %v1264
    %v1360 = vunpack.c.h.b16 %v1264
    %v1361 = vunpack.c.l.b16 %v1265
    %v1362 = vunpack.c.h.b16 %v1265
    %v1363 = vunpack.c.l.b16 %v1266
    %v1364 = vunpack.c.h.b16 %v1266
    %v1365 = vunpack.c.l.b16 %v1267
    %v1366 = vunpack.c.h.b16 %v1267
    %v1367 = vunpack.c.l.b16 %v1268
    %v1368 = vunpack.c.h.b16 %v1268
    %v1369 = vunpack.c.l.b16 %v1269
    %v1370 = vunpack.c.h.b16 %v1269
    %v1371 = vunpack.c.l.b16 %v1270
    %v1372 = vunpack.c.h.b16 %v1270
    %v1373 = vpack.c.b16 %v1311, %v1309
    %v1374 = vpack.c.b16 %v1312, %v1310
    %v1375 = vpack.c.b16 %v1315, %v1313
    %v1376 = vpack.c.b16 %v1316, %v1314
    %v1377 = vpack.c.b16 %v1319, %v1317
    %v1378 = vpack.c.b16 %v1320, %v1318
    %v1379 = vpack.c.b16 %v1323, %v1321
    %v1380 = vpack.c.b16 %v1324, %v1322
    %v1381 = vpack.c.b16 %v1327, %v1325
    %v1382 = vpack.c.b16 %v1328, %v1326
    %v1383 = vpack.c.b16 %v1331, %v1329
    %v1384 = vpack.c.b16 %v1332, %v1330
    %v1385 = vpack.c.b16 %v1335, %v1333
    %v1386 = vpack.c.b16 %v1336, %v1334
    %v1387 = vpack.c.b16 %v1339, %v1337
    %v1388 = vpack.c.b16 %v1340, %v1338
    %v1389 = vpack.c.b16 %v1343, %v1341
    %v1390 = vpack.c.b16 %v1344, %v1342
    %v1391 = vpack.c.b16 %v1347, %v1345
    %v1392 = vpack.c.b16 %v1348, %v1346
    %v1393 = vpack.c.b16 %v1351, %v1349
    %v1394 = vpack.c.b16 %v1352, %v1350
    %v1395 = vpack.c.b16 %v1355, %v1353
    %v1396 = vpack.c.b16 %v1356, %v1354
    %v1397 = vpack.c.b16 %v1359, %v1357
    %v1398 = vpack.c.b16 %v1360, %v1358
    %v1399 = vpack.c.b16 %v1363, %v1361
    %v1400 = vpack.c.b16 %v1364, %v1362
    %v1401 = vpack.c.b16 %v1367, %v1365
    %v1402 = vpack.c.b16 %v1368, %v1366
    %v1403 = vpack.c.b16 %v1371, %v1369
    %v1404 = vpack.c.b16 %v1372, %v1370
    %1437 = vmatpush.bf16.msra.mxu0 %v1387
    %1438 = vmatpush.bf16.msra.mxu0 %v1385
    %1439 = vmatpush.bf16.msra.mxu0 %v1383
    %1440 = vmatpush.bf16.msra.mxu0 %v1381
    %1441 = vmatpush.bf16.msra.mxu0 %v1379
    %1442 = vmatpush.bf16.msra.mxu0 %v1377
    %1443 = vmatpush.bf16.msra.mxu0 %v1375
    %1444 = vmatpush.bf16.msra.mxu0 %v1373
    %1445 = vmatmul.bf16.gmra.mxu0 %v1237
    %v1446 = vpop.f32.mrf.mxu0
    %v1447 = vadd.f32 %v1273, %v1446
    %v1448 = vpop.f32.mrf.mxu0
    %v1449 = vadd.f32 %v1273, %v1448
    %1450 = vdwg.mxu0
    %1451 = vmatpush.bf16.msra.mxu0 %v1403
    %1452 = vmatpush.bf16.msra.mxu0 %v1401
    %1453 = vmatpush.bf16.msra.mxu0 %v1399
    %1454 = vmatpush.bf16.msra.mxu0 %v1397
    %1455 = vmatpush.bf16.msra.mxu0 %v1395
    %1456 = vmatpush.bf16.msra.mxu0 %v1393
    %1457 = vmatpush.bf16.msra.mxu0 %v1391
    %1458 = vmatpush.bf16.msra.mxu0 %v1389
    %1459 = vmatmul.bf16.gmra.mxu0 %v1238
    %v1460 = vpop.f32.mrf.mxu0
    %v1461 = vadd.f32 %v1447, %v1460
    %v1462 = vpop.f32.mrf.mxu0
    %v1463 = vadd.f32 %v1449, %v1462
    %1464 = vdwg.mxu0
    %1465 = vmatpush.bf16.msra.mxu0 %v1388
    %1466 = vmatpush.bf16.msra.mxu0 %v1386
    %1467 = vmatpush.bf16.msra.mxu0 %v1384
    %1468 = vmatpush.bf16.msra.mxu0 %v1382
    %1469 = vmatpush.bf16.msra.mxu0 %v1380
    %1470 = vmatpush.bf16.msra.mxu0 %v1378
    %1471 = vmatpush.bf16.msra.mxu0 %v1376
    %1472 = vmatpush.bf16.msra.mxu0 %v1374
    %1473 = vmatmul.bf16.gmra.mxu0 %v1237
    %v1474 = vpop.f32.mrf.mxu0
    %v1475 = vadd.f32 %v1274, %v1474
    %v1476 = vpop.f32.mrf.mxu0
    %v1477 = vadd.f32 %v1274, %v1476
    %1478 = vdwg.mxu0
    %1479 = vmatpush.bf16.msra.mxu0 %v1404
    %1480 = vmatpush.bf16.msra.mxu0 %v1402
    %1481 = vmatpush.bf16.msra.mxu0 %v1400
    %1482 = vmatpush.bf16.msra.mxu0 %v1398
    %1483 = vmatpush.bf16.msra.mxu0 %v1396
    %1484 = vmatpush.bf16.msra.mxu0 %v1394
    %1485 = vmatpush.bf16.msra.mxu0 %v1392
    %1486 = vmatpush.bf16.msra.mxu0 %v1390
    %1487 = vmatmul.bf16.gmra.mxu0 %v1238
    %v1488 = vpop.f32.mrf.mxu0
    %v1489 = vadd.f32 %v1475, %v1488
    %v1490 = vpop.f32.mrf.mxu0
    %v1491 = vadd.f32 %v1477, %v1490
    %1492 = vdwg.mxu0
    %v1493 = vadd.f32 %v1461, %v219
    %v1494 = vadd.f32 %v1489, %v220
    %v1495 = vadd.f32 %v1463, %v221
    %v1496 = vadd.f32 %v1491, %v222
    %v1497 = vld [vmem:[%s8] sm:$0x3]
    %v1498 = vld [vmem:[%s9] sm:$0x3]
    %v1499 = vadd.f32 %v1493, %v1494
    %1500 = vadd.xlane.f32.xlu0 %v1499
    %v1501 = vpop.xlane.xlu0 %1500
    %v1502 = vadd.f32 %v1495, %v1496
    %1503 = vadd.xlane.f32.xlu0 %v1502
    %v1504 = vpop.xlane.xlu0 %1503
    %v1505 = vmul.f32 %v1501, %v160
    %v1506 = vmul.f32 %v1504, %v160
    %v1507 = vsub.f32 %v1493, %v1505
    %v1508 = vsub.f32 %v1494, %v1505
    %v1509 = vsub.f32 %v1495, %v1506
    %v1510 = vsub.f32 %v1496, %v1506
    %v1511 = vmul.f32 %v1507, %v1507
    %v1512 = vmul.f32 %v1508, %v1508
    %v1513 = vmul.f32 %v1509, %v1509
    %v1514 = vmul.f32 %v1510, %v1510
    %v1515 = vadd.f32 %v1511, %v1512
    %1516 = vadd.xlane.f32.xlu0 %v1515
    %v1517 = vpop.xlane.xlu0 %1516
    %v1518 = vadd.f32 %v1513, %v1514
    %1519 = vadd.xlane.f32.xlu0 %v1518
    %v1520 = vpop.xlane.xlu0 %1519
    %v1521 = vmul.f32 %v1517, %v160
    %v1522 = vmul.f32 %v1520, %v160
    %v1523 = vadd.f32 %v1521, 1e-12
    %v1524 = vadd.f32 %v1522, 1e-12
    %v1525 = vrsqrt.pop %v1523
    %v1526 = vmul.f32 %v1525, %v1523
    %v1527 = vmul.f32 %v1526, %v1525
    %v1528 = vmul.f32 0.5, %v1527
    %v1529 = vsub.f32 1.5, %v1528
    %v1530 = vmul.f32 %v1525, %v1529
    %vm1531 = vweird.f32 %v1523
    %vm1532 = vweird.f32 %v1525
    %vm1533 = vmor %vm1531, %vm1532
    %v1534 = vsel %vm1533, %v1525, %v1530
    %v1535 = vrsqrt.pop %v1524
    %v1536 = vmul.f32 %v1535, %v1524
    %v1537 = vmul.f32 %v1536, %v1535
    %v1538 = vmul.f32 0.5, %v1537
    %v1539 = vsub.f32 1.5, %v1538
    %v1540 = vmul.f32 %v1535, %v1539
    %vm1541 = vweird.f32 %v1524
    %vm1542 = vweird.f32 %v1535
    %vm1543 = vmor %vm1541, %vm1542
    %v1544 = vsel %vm1543, %v1535, %v1540
    %v1545 = vmul.f32 %v1507, %v1534
    %v1546 = vmul.f32 %v1508, %v1534
    %v1547 = vmul.f32 %v1509, %v1544
    %v1548 = vmul.f32 %v1510, %v1544
    %v1550 = vperm.slane %v1497, 0
    %v1551 = vperm.slane %v1497, 1
    %v1554 = vmul.f32 %v1545, %v1550
    %v1555 = vmul.f32 %v1546, %v1551
    %v1556 = vmul.f32 %v1547, %v1550
    %v1557 = vmul.f32 %v1548, %v1551
    %v1559 = vperm.slane %v1498, 0
    %v1560 = vperm.slane %v1498, 1
    %v1563 = vadd.f32 %v1554, %v1559
    %v1564 = vadd.f32 %v1555, %v1560
    %v1565 = vadd.f32 %v1556, %v1559
    %v1566 = vadd.f32 %v1557, %v1560
    %v1567 = vpack.c.bf16 %v1565, %v1563
    %v1568 = vpack.c.bf16 %v1566, %v1564
    %v1569 = vld [vmem:[#allocation7] sm:$0xff]
    %v1570 = vld [vmem:[#allocation7 + $0x8] sm:$0xff]
    %v1571 = vld [vmem:[#allocation7 + $0x10] sm:$0xff]
    %v1572 = vld [vmem:[#allocation7 + $0x18] sm:$0xff]
    %v1573 = vld [vmem:[#allocation7 + $0x20] sm:$0xff]
    %v1574 = vld [vmem:[#allocation7 + $0x28] sm:$0xff]
    %v1575 = vld [vmem:[#allocation7 + $0x30] sm:$0xff]
    %v1576 = vld [vmem:[#allocation7 + $0x38] sm:$0xff]
    %v1577 = vld [vmem:[#allocation7 + $0x40] sm:$0xff]
    %v1578 = vld [vmem:[#allocation7 + $0x48] sm:$0xff]
    %v1579 = vld [vmem:[#allocation7 + $0x50] sm:$0xff]
    %v1580 = vld [vmem:[#allocation7 + $0x58] sm:$0xff]
    %v1581 = vld [vmem:[#allocation7 + $0x60] sm:$0xff]
    %v1582 = vld [vmem:[#allocation7 + $0x68] sm:$0xff]
    %v1583 = vld [vmem:[#allocation7 + $0x70] sm:$0xff]
    %v1584 = vld [vmem:[#allocation7 + $0x78] sm:$0xff]
    %v1585 = vld [vmem:[#allocation7 + $0x80] sm:$0xff]
    %v1586 = vld [vmem:[#allocation7 + $0x88] sm:$0xff]
    %v1587 = vld [vmem:[#allocation7 + $0x90] sm:$0xff]
    %v1588 = vld [vmem:[#allocation7 + $0x98] sm:$0xff]
    %v1589 = vld [vmem:[#allocation7 + $0xa0] sm:$0xff]
    %v1590 = vld [vmem:[#allocation7 + $0xa8] sm:$0xff]
    %v1591 = vld [vmem:[#allocation7 + $0xb0] sm:$0xff]
    %v1592 = vld [vmem:[#allocation7 + $0xb8] sm:$0xff]
    %v1593 = vld [vmem:[#allocation7 + $0xc0] sm:$0xff]
    %v1594 = vld [vmem:[#allocation7 + $0xc8] sm:$0xff]
    %v1595 = vld [vmem:[#allocation7 + $0xd0] sm:$0xff]
    %v1596 = vld [vmem:[#allocation7 + $0xd8] sm:$0xff]
    %v1597 = vld [vmem:[#allocation7 + $0xe0] sm:$0xff]
    %v1598 = vld [vmem:[#allocation7 + $0xe8] sm:$0xff]
    %v1599 = vld [vmem:[#allocation7 + $0xf0] sm:$0xff]
    %v1600 = vld [vmem:[#allocation7 + $0xf8] sm:$0xff]
    %v1601 = vld [vmem:[#allocation7 + $0x100] sm:$0xff]
    %v1602 = vld [vmem:[#allocation7 + $0x108] sm:$0xff]
    %v1603 = vld [vmem:[#allocation7 + $0x110] sm:$0xff]
    %v1604 = vld [vmem:[#allocation7 + $0x118] sm:$0xff]
    %v1605 = vld [vmem:[#allocation7 + $0x120] sm:$0xff]
    %v1606 = vld [vmem:[#allocation7 + $0x128] sm:$0xff]
    %v1607 = vld [vmem:[#allocation7 + $0x130] sm:$0xff]
    %v1608 = vld [vmem:[#allocation7 + $0x138] sm:$0xff]
    %v1609 = vld [vmem:[#allocation7 + $0x140] sm:$0xff]
    %v1610 = vld [vmem:[#allocation7 + $0x148] sm:$0xff]
    %v1611 = vld [vmem:[#allocation7 + $0x150] sm:$0xff]
    %v1612 = vld [vmem:[#allocation7 + $0x158] sm:$0xff]
    %v1613 = vld [vmem:[#allocation7 + $0x160] sm:$0xff]
    %v1614 = vld [vmem:[#allocation7 + $0x168] sm:$0xff]
    %v1615 = vld [vmem:[#allocation7 + $0x170] sm:$0xff]
    %v1616 = vld [vmem:[#allocation7 + $0x178] sm:$0xff]
    %v1617 = vld [vmem:[#allocation7 + $0x180] sm:$0xff]
    %v1618 = vld [vmem:[#allocation7 + $0x188] sm:$0xff]
    %v1619 = vld [vmem:[#allocation7 + $0x190] sm:$0xff]
    %v1620 = vld [vmem:[#allocation7 + $0x198] sm:$0xff]
    %v1621 = vld [vmem:[#allocation7 + $0x1a0] sm:$0xff]
    %v1622 = vld [vmem:[#allocation7 + $0x1a8] sm:$0xff]
    %v1623 = vld [vmem:[#allocation7 + $0x1b0] sm:$0xff]
    %v1624 = vld [vmem:[#allocation7 + $0x1b8] sm:$0xff]
    %v1625 = vld [vmem:[#allocation7 + $0x1c0] sm:$0xff]
    %v1626 = vld [vmem:[#allocation7 + $0x1c8] sm:$0xff]
    %v1627 = vld [vmem:[#allocation7 + $0x1d0] sm:$0xff]
    %v1628 = vld [vmem:[#allocation7 + $0x1d8] sm:$0xff]
    %v1629 = vld [vmem:[#allocation7 + $0x1e0] sm:$0xff]
    %v1630 = vld [vmem:[#allocation7 + $0x1e8] sm:$0xff]
    %v1631 = vld [vmem:[#allocation7 + $0x1f0] sm:$0xff]
    %v1632 = vld [vmem:[#allocation7 + $0x1f8] sm:$0xff]
    %v1633 = vld [vmem:[%s11] sm:$0xf]
    %v1635 = vperm.slane %v1633, 0
    %v1636 = vperm.slane %v1633, 1
    %v1637 = vperm.slane %v1633, 2
    %v1638 = vperm.slane %v1633, 3
    %v1707 = vunpack.c.l.b16 %v1569
    %v1708 = vunpack.c.h.b16 %v1569
    %v1709 = vunpack.c.l.b16 %v1570
    %v1710 = vunpack.c.h.b16 %v1570
    %v1711 = vunpack.c.l.b16 %v1571
    %v1712 = vunpack.c.h.b16 %v1571
    %v1713 = vunpack.c.l.b16 %v1572
    %v1714 = vunpack.c.h.b16 %v1572
    %v1715 = vunpack.c.l.b16 %v1573
    %v1716 = vunpack.c.h.b16 %v1573
    %v1717 = vunpack.c.l.b16 %v1574
    %v1718 = vunpack.c.h.b16 %v1574
    %v1719 = vunpack.c.l.b16 %v1575
    %v1720 = vunpack.c.h.b16 %v1575
    %v1721 = vunpack.c.l.b16 %v1576
    %v1722 = vunpack.c.h.b16 %v1576
    %v1723 = vunpack.c.l.b16 %v1577
    %v1724 = vunpack.c.h.b16 %v1577
    %v1725 = vunpack.c.l.b16 %v1578
    %v1726 = vunpack.c.h.b16 %v1578
    %v1727 = vunpack.c.l.b16 %v1579
    %v1728 = vunpack.c.h.b16 %v1579
    %v1729 = vunpack.c.l.b16 %v1580
    %v1730 = vunpack.c.h.b16 %v1580
    %v1731 = vunpack.c.l.b16 %v1581
    %v1732 = vunpack.c.h.b16 %v1581
    %v1733 = vunpack.c.l.b16 %v1582
    %v1734 = vunpack.c.h.b16 %v1582
    %v1735 = vunpack.c.l.b16 %v1583
    %v1736 = vunpack.c.h.b16 %v1583
    %v1737 = vunpack.c.l.b16 %v1584
    %v1738 = vunpack.c.h.b16 %v1584
    %v1739 = vunpack.c.l.b16 %v1585
    %v1740 = vunpack.c.h.b16 %v1585
    %v1741 = vunpack.c.l.b16 %v1586
    %v1742 = vunpack.c.h.b16 %v1586
    %v1743 = vunpack.c.l.b16 %v1587
    %v1744 = vunpack.c.h.b16 %v1587
    %v1745 = vunpack.c.l.b16 %v1588
    %v1746 = vunpack.c.h.b16 %v1588
    %v1747 = vunpack.c.l.b16 %v1589
    %v1748 = vunpack.c.h.b16 %v1589
    %v1749 = vunpack.c.l.b16 %v1590
    %v1750 = vunpack.c.h.b16 %v1590
    %v1751 = vunpack.c.l.b16 %v1591
    %v1752 = vunpack.c.h.b16 %v1591
    %v1753 = vunpack.c.l.b16 %v1592
    %v1754 = vunpack.c.h.b16 %v1592
    %v1755 = vunpack.c.l.b16 %v1593
    %v1756 = vunpack.c.h.b16 %v1593
    %v1757 = vunpack.c.l.b16 %v1594
    %v1758 = vunpack.c.h.b16 %v1594
    %v1759 = vunpack.c.l.b16 %v1595
    %v1760 = vunpack.c.h.b16 %v1595
    %v1761 = vunpack.c.l.b16 %v1596
    %v1762 = vunpack.c.h.b16 %v1596
    %v1763 = vunpack.c.l.b16 %v1597
    %v1764 = vunpack.c.h.b16 %v1597
    %v1765 = vunpack.c.l.b16 %v1598
    %v1766 = vunpack.c.h.b16 %v1598
    %v1767 = vunpack.c.l.b16 %v1599
    %v1768 = vunpack.c.h.b16 %v1599
    %v1769 = vunpack.c.l.b16 %v1600
    %v1770 = vunpack.c.h.b16 %v1600
    %v1771 = vunpack.c.l.b16 %v1601
    %v1772 = vunpack.c.h.b16 %v1601
    %v1773 = vunpack.c.l.b16 %v1602
    %v1774 = vunpack.c.h.b16 %v1602
    %v1775 = vunpack.c.l.b16 %v1603
    %v1776 = vunpack.c.h.b16 %v1603
    %v1777 = vunpack.c.l.b16 %v1604
    %v1778 = vunpack.c.h.b16 %v1604
    %v1779 = vunpack.c.l.b16 %v1605
    %v1780 = vunpack.c.h.b16 %v1605
    %v1781 = vunpack.c.l.b16 %v1606
    %v1782 = vunpack.c.h.b16 %v1606
    %v1783 = vunpack.c.l.b16 %v1607
    %v1784 = vunpack.c.h.b16 %v1607
    %v1785 = vunpack.c.l.b16 %v1608
    %v1786 = vunpack.c.h.b16 %v1608
    %v1787 = vunpack.c.l.b16 %v1609
    %v1788 = vunpack.c.h.b16 %v1609
    %v1789 = vunpack.c.l.b16 %v1610
    %v1790 = vunpack.c.h.b16 %v1610
    %v1791 = vunpack.c.l.b16 %v1611
    %v1792 = vunpack.c.h.b16 %v1611
    %v1793 = vunpack.c.l.b16 %v1612
    %v1794 = vunpack.c.h.b16 %v1612
    %v1795 = vunpack.c.l.b16 %v1613
    %v1796 = vunpack.c.h.b16 %v1613
    %v1797 = vunpack.c.l.b16 %v1614
    %v1798 = vunpack.c.h.b16 %v1614
    %v1799 = vunpack.c.l.b16 %v1615
    %v1800 = vunpack.c.h.b16 %v1615
    %v1801 = vunpack.c.l.b16 %v1616
    %v1802 = vunpack.c.h.b16 %v1616
    %v1803 = vunpack.c.l.b16 %v1617
    %v1804 = vunpack.c.h.b16 %v1617
    %v1805 = vunpack.c.l.b16 %v1618
    %v1806 = vunpack.c.h.b16 %v1618
    %v1807 = vunpack.c.l.b16 %v1619
    %v1808 = vunpack.c.h.b16 %v1619
    %v1809 = vunpack.c.l.b16 %v1620
    %v1810 = vunpack.c.h.b16 %v1620
    %v1811 = vunpack.c.l.b16 %v1621
    %v1812 = vunpack.c.h.b16 %v1621
    %v1813 = vunpack.c.l.b16 %v1622
    %v1814 = vunpack.c.h.b16 %v1622
    %v1815 = vunpack.c.l.b16 %v1623
    %v1816 = vunpack.c.h.b16 %v1623
    %v1817 = vunpack.c.l.b16 %v1624
    %v1818 = vunpack.c.h.b16 %v1624
    %v1819 = vunpack.c.l.b16 %v1625
    %v1820 = vunpack.c.h.b16 %v1625
    %v1821 = vunpack.c.l.b16 %v1626
    %v1822 = vunpack.c.h.b16 %v1626
    %v1823 = vunpack.c.l.b16 %v1627
    %v1824 = vunpack.c.h.b16 %v1627
    %v1825 = vunpack.c.l.b16 %v1628
    %v1826 = vunpack.c.h.b16 %v1628
    %v1827 = vunpack.c.l.b16 %v1629
    %v1828 = vunpack.c.h.b16 %v1629
    %v1829 = vunpack.c.l.b16 %v1630
    %v1830 = vunpack.c.h.b16 %v1630
    %v1831 = vunpack.c.l.b16 %v1631
    %v1832 = vunpack.c.h.b16 %v1631
    %v1833 = vunpack.c.l.b16 %v1632
    %v1834 = vunpack.c.h.b16 %v1632
    %v1835 = vpack.c.b16 %v1711, %v1707
    %v1836 = vpack.c.b16 %v1712, %v1708
    %v1837 = vpack.c.b16 %v1713, %v1709
    %v1838 = vpack.c.b16 %v1714, %v1710
    %v1839 = vpack.c.b16 %v1719, %v1715
    %v1840 = vpack.c.b16 %v1720, %v1716
    %v1841 = vpack.c.b16 %v1721, %v1717
    %v1842 = vpack.c.b16 %v1722, %v1718
    %v1843 = vpack.c.b16 %v1727, %v1723
    %v1844 = vpack.c.b16 %v1728, %v1724
    %v1845 = vpack.c.b16 %v1729, %v1725
    %v1846 = vpack.c.b16 %v1730, %v1726
    %v1847 = vpack.c.b16 %v1735, %v1731
    %v1848 = vpack.c.b16 %v1736, %v1732
    %v1849 = vpack.c.b16 %v1737, %v1733
    %v1850 = vpack.c.b16 %v1738, %v1734
    %v1851 = vpack.c.b16 %v1743, %v1739
    %v1852 = vpack.c.b16 %v1744, %v1740
    %v1853 = vpack.c.b16 %v1745, %v1741
    %v1854 = vpack.c.b16 %v1746, %v1742
    %v1855 = vpack.c.b16 %v1751, %v1747
    %v1856 = vpack.c.b16 %v1752, %v1748
    %v1857 = vpack.c.b16 %v1753, %v1749
    %v1858 = vpack.c.b16 %v1754, %v1750
    %v1859 = vpack.c.b16 %v1759, %v1755
    %v1860 = vpack.c.b16 %v1760, %v1756
    %v1861 = vpack.c.b16 %v1761, %v1757
    %v1862 = vpack.c.b16 %v1762, %v1758
    %v1863 = vpack.c.b16 %v1767, %v1763
    %v1864 = vpack.c.b16 %v1768, %v1764
    %v1865 = vpack.c.b16 %v1769, %v1765
    %v1866 = vpack.c.b16 %v1770, %v1766
    %v1867 = vpack.c.b16 %v1775, %v1771
    %v1868 = vpack.c.b16 %v1776, %v1772
    %v1869 = vpack.c.b16 %v1777, %v1773
    %v1870 = vpack.c.b16 %v1778, %v1774
    %v1871 = vpack.c.b16 %v1783, %v1779
    %v1872 = vpack.c.b16 %v1784, %v1780
    %v1873 = vpack.c.b16 %v1785, %v1781
    %v1874 = vpack.c.b16 %v1786, %v1782
    %v1875 = vpack.c.b16 %v1791, %v1787
    %v1876 = vpack.c.b16 %v1792, %v1788
    %v1877 = vpack.c.b16 %v1793, %v1789
    %v1878 = vpack.c.b16 %v1794, %v1790
    %v1879 = vpack.c.b16 %v1799, %v1795
    %v1880 = vpack.c.b16 %v1800, %v1796
    %v1881 = vpack.c.b16 %v1801, %v1797
    %v1882 = vpack.c.b16 %v1802, %v1798
    %v1883 = vpack.c.b16 %v1807, %v1803
    %v1884 = vpack.c.b16 %v1808, %v1804
    %v1885 = vpack.c.b16 %v1809, %v1805
    %v1886 = vpack.c.b16 %v1810, %v1806
    %v1887 = vpack.c.b16 %v1815, %v1811
    %v1888 = vpack.c.b16 %v1816, %v1812
    %v1889 = vpack.c.b16 %v1817, %v1813
    %v1890 = vpack.c.b16 %v1818, %v1814
    %v1891 = vpack.c.b16 %v1823, %v1819
    %v1892 = vpack.c.b16 %v1824, %v1820
    %v1893 = vpack.c.b16 %v1825, %v1821
    %v1894 = vpack.c.b16 %v1826, %v1822
    %v1895 = vpack.c.b16 %v1831, %v1827
    %v1896 = vpack.c.b16 %v1832, %v1828
    %v1897 = vpack.c.b16 %v1833, %v1829
    %v1898 = vpack.c.b16 %v1834, %v1830
    %1963 = vmatpush.bf16.msra.mxu0 %v1863
    %1964 = vmatpush.bf16.msra.mxu0 %v1859
    %1965 = vmatpush.bf16.msra.mxu0 %v1855
    %1966 = vmatpush.bf16.msra.mxu0 %v1851
    %1967 = vmatpush.bf16.msra.mxu0 %v1847
    %1968 = vmatpush.bf16.msra.mxu0 %v1843
    %1969 = vmatpush.bf16.msra.mxu0 %v1839
    %1970 = vmatpush.bf16.msra.mxu0 %v1835
    %1971 = vmatmul.bf16.gmra.mxu0 %v1567
    %v1972 = vpop.f32.mrf.mxu0
    %v1973 = vadd.f32 %v1635, %v1972
    %v1974 = vpop.f32.mrf.mxu0
    %v1975 = vadd.f32 %v1635, %v1974
    %1976 = vdwg.mxu0
    %1977 = vmatpush.bf16.msra.mxu0 %v1895
    %1978 = vmatpush.bf16.msra.mxu0 %v1891
    %1979 = vmatpush.bf16.msra.mxu0 %v1887
    %1980 = vmatpush.bf16.msra.mxu0 %v1883
    %1981 = vmatpush.bf16.msra.mxu0 %v1879
    %1982 = vmatpush.bf16.msra.mxu0 %v1875
    %1983 = vmatpush.bf16.msra.mxu0 %v1871
    %1984 = vmatpush.bf16.msra.mxu0 %v1867
    %1985 = vmatmul.bf16.gmra.mxu0 %v1568
    %v1986 = vpop.f32.mrf.mxu0
    %v1987 = vadd.f32 %v1973, %v1986
    %v1988 = vpop.f32.mrf.mxu0
    %v1989 = vadd.f32 %v1975, %v1988
    %1990 = vdwg.mxu0
    %1991 = vmatpush.bf16.msra.mxu0 %v1864
    %1992 = vmatpush.bf16.msra.mxu0 %v1860
    %1993 = vmatpush.bf16.msra.mxu0 %v1856
    %1994 = vmatpush.bf16.msra.mxu0 %v1852
    %1995 = vmatpush.bf16.msra.mxu0 %v1848
    %1996 = vmatpush.bf16.msra.mxu0 %v1844
    %1997 = vmatpush.bf16.msra.mxu0 %v1840
    %1998 = vmatpush.bf16.msra.mxu0 %v1836
    %1999 = vmatmul.bf16.gmra.mxu0 %v1567
    %v2000 = vpop.f32.mrf.mxu0
    %v2001 = vadd.f32 %v1636, %v2000
    %v2002 = vpop.f32.mrf.mxu0
    %v2003 = vadd.f32 %v1636, %v2002
    %2004 = vdwg.mxu0
    %2005 = vmatpush.bf16.msra.mxu0 %v1896
    %2006 = vmatpush.bf16.msra.mxu0 %v1892
    %2007 = vmatpush.bf16.msra.mxu0 %v1888
    %2008 = vmatpush.bf16.msra.mxu0 %v1884
    %2009 = vmatpush.bf16.msra.mxu0 %v1880
    %2010 = vmatpush.bf16.msra.mxu0 %v1876
    %2011 = vmatpush.bf16.msra.mxu0 %v1872
    %2012 = vmatpush.bf16.msra.mxu0 %v1868
    %2013 = vmatmul.bf16.gmra.mxu0 %v1568
    %v2014 = vpop.f32.mrf.mxu0
    %v2015 = vadd.f32 %v2001, %v2014
    %v2016 = vpop.f32.mrf.mxu0
    %v2017 = vadd.f32 %v2003, %v2016
    %2018 = vdwg.mxu0
    %2019 = vmatpush.bf16.msra.mxu0 %v1865
    %2020 = vmatpush.bf16.msra.mxu0 %v1861
    %2021 = vmatpush.bf16.msra.mxu0 %v1857
    %2022 = vmatpush.bf16.msra.mxu0 %v1853
    %2023 = vmatpush.bf16.msra.mxu0 %v1849
    %2024 = vmatpush.bf16.msra.mxu0 %v1845
    %2025 = vmatpush.bf16.msra.mxu0 %v1841
    %2026 = vmatpush.bf16.msra.mxu0 %v1837
    %2027 = vmatmul.bf16.gmra.mxu0 %v1567
    %v2028 = vpop.f32.mrf.mxu0
    %v2029 = vadd.f32 %v1637, %v2028
    %v2030 = vpop.f32.mrf.mxu0
    %v2031 = vadd.f32 %v1637, %v2030
    %2032 = vdwg.mxu0
    %2033 = vmatpush.bf16.msra.mxu0 %v1897
    %2034 = vmatpush.bf16.msra.mxu0 %v1893
    %2035 = vmatpush.bf16.msra.mxu0 %v1889
    %2036 = vmatpush.bf16.msra.mxu0 %v1885
    %2037 = vmatpush.bf16.msra.mxu0 %v1881
    %2038 = vmatpush.bf16.msra.mxu0 %v1877
    %2039 = vmatpush.bf16.msra.mxu0 %v1873
    %2040 = vmatpush.bf16.msra.mxu0 %v1869
    %2041 = vmatmul.bf16.gmra.mxu0 %v1568
    %v2042 = vpop.f32.mrf.mxu0
    %v2043 = vadd.f32 %v2029, %v2042
    %v2044 = vpop.f32.mrf.mxu0
    %v2045 = vadd.f32 %v2031, %v2044
    %2046 = vdwg.mxu0
    %2047 = vmatpush.bf16.msra.mxu0 %v1866
    %2048 = vmatpush.bf16.msra.mxu0 %v1862
    %2049 = vmatpush.bf16.msra.mxu0 %v1858
    %2050 = vmatpush.bf16.msra.mxu0 %v1854
    %2051 = vmatpush.bf16.msra.mxu0 %v1850
    %2052 = vmatpush.bf16.msra.mxu0 %v1846
    %2053 = vmatpush.bf16.msra.mxu0 %v1842
    %2054 = vmatpush.bf16.msra.mxu0 %v1838
    %2055 = vmatmul.bf16.gmra.mxu0 %v1567
    %v2056 = vpop.f32.mrf.mxu0
    %v2057 = vadd.f32 %v1638, %v2056
    %v2058 = vpop.f32.mrf.mxu0
    %v2059 = vadd.f32 %v1638, %v2058
    %2060 = vdwg.mxu0
    %2061 = vmatpush.bf16.msra.mxu0 %v1898
    %2062 = vmatpush.bf16.msra.mxu0 %v1894
    %2063 = vmatpush.bf16.msra.mxu0 %v1890
    %2064 = vmatpush.bf16.msra.mxu0 %v1886
    %2065 = vmatpush.bf16.msra.mxu0 %v1882
    %2066 = vmatpush.bf16.msra.mxu0 %v1878
    %2067 = vmatpush.bf16.msra.mxu0 %v1874
    %2068 = vmatpush.bf16.msra.mxu0 %v1870
    %2069 = vmatmul.bf16.gmra.mxu0 %v1568
    %v2070 = vpop.f32.mrf.mxu0
    %v2071 = vadd.f32 %v2057, %v2070
    %v2072 = vpop.f32.mrf.mxu0
    %v2073 = vadd.f32 %v2059, %v2072
    %2074 = vdwg.mxu0
    %v2075 = vmul.f32 %v1987, 0.5
    %v2076 = vmul.f32 %v2015, 0.5
    %v2077 = vmul.f32 %v2043, 0.5
    %v2078 = vmul.f32 %v2071, 0.5
    %v2079 = vmul.f32 %v1989, 0.5
    %v2080 = vmul.f32 %v2017, 0.5
    %v2081 = vmul.f32 %v2045, 0.5
    %v2082 = vmul.f32 %v2073, 0.5
    %v2083 = vmul.f32 %v1987, 0.044715
    %v2084 = vmul.f32 %v2015, 0.044715
    %v2085 = vmul.f32 %v2043, 0.044715
    %v2086 = vmul.f32 %v2071, 0.044715
    %v2087 = vmul.f32 %v1989, 0.044715
    %v2088 = vmul.f32 %v2017, 0.044715
    %v2089 = vmul.f32 %v2045, 0.044715
    %v2090 = vmul.f32 %v2073, 0.044715
    %v2091 = vmul.f32 %v2083, %v1987
    %v2092 = vmul.f32 %v2084, %v2015
    %v2093 = vmul.f32 %v2085, %v2043
    %v2094 = vmul.f32 %v2086, %v2071
    %v2095 = vmul.f32 %v2087, %v1989
    %v2096 = vmul.f32 %v2088, %v2017
    %v2097 = vmul.f32 %v2089, %v2045
    %v2098 = vmul.f32 %v2090, %v2073
    %v2099 = vmul.f32 %v2091, %v1987
    %v2100 = vmul.f32 %v2092, %v2015
    %v2101 = vmul.f32 %v2093, %v2043
    %v2102 = vmul.f32 %v2094, %v2071
    %v2103 = vmul.f32 %v2095, %v1989
    %v2104 = vmul.f32 %v2096, %v2017
    %v2105 = vmul.f32 %v2097, %v2045
    %v2106 = vmul.f32 %v2098, %v2073
    %v2107 = vadd.f32 %v1987, %v2099
    %v2108 = vadd.f32 %v2015, %v2100
    %v2109 = vadd.f32 %v2043, %v2101
    %v2110 = vadd.f32 %v2071, %v2102
    %v2111 = vadd.f32 %v1989, %v2103
    %v2112 = vadd.f32 %v2017, %v2104
    %v2113 = vadd.f32 %v2045, %v2105
    %v2114 = vadd.f32 %v2073, %v2106
    %v2115 = vmul.f32 %v2107, 0.7978846
    %v2116 = vmul.f32 %v2108, 0.7978846
    %v2117 = vmul.f32 %v2109, 0.7978846
    %v2118 = vmul.f32 %v2110, 0.7978846
    %v2119 = vmul.f32 %v2111, 0.7978846
    %v2120 = vmul.f32 %v2112, 0.7978846
    %v2121 = vmul.f32 %v2113, 0.7978846
    %v2122 = vmul.f32 %v2114, 0.7978846
    %v2123 = vtanh.pop %v2115
    %v2124 = vtanh.pop %v2116
    %v2125 = vtanh.pop %v2117
    %v2126 = vtanh.pop %v2118
    %v2127 = vtanh.pop %v2119
    %v2128 = vtanh.pop %v2120
    %v2129 = vtanh.pop %v2121
    %v2130 = vtanh.pop %v2122
    %v2131 = vadd.f32 %v2123, 1.0
    %v2132 = vadd.f32 %v2124, 1.0
    %v2133 = vadd.f32 %v2125, 1.0
    %v2134 = vadd.f32 %v2126, 1.0
    %v2135 = vadd.f32 %v2127, 1.0
    %v2136 = vadd.f32 %v2128, 1.0
    %v2137 = vadd.f32 %v2129, 1.0
    %v2138 = vadd.f32 %v2130, 1.0
    %v2139 = vmul.f32 %v2075, %v2131
    %v2140 = vmul.f32 %v2076, %v2132
    %v2141 = vmul.f32 %v2077, %v2133
    %v2142 = vmul.f32 %v2078, %v2134
    %v2143 = vmul.f32 %v2079, %v2135
    %v2144 = vmul.f32 %v2080, %v2136
    %v2145 = vmul.f32 %v2081, %v2137
    %v2146 = vmul.f32 %v2082, %v2138
    %v2147 = vpack.c.bf16 %v2143, %v2139
    %v2148 = vpack.c.bf16 %v2144, %v2140
    %v2149 = vpack.c.bf16 %v2145, %v2141
    %v2150 = vpack.c.bf16 %v2146, %v2142
    %v2151 = vld [vmem:[#allocation8] sm:$0xff]
    %v2152 = vld [vmem:[#allocation8 + $0x8] sm:$0xff]
    %v2153 = vld [vmem:[#allocation8 + $0x10] sm:$0xff]
    %v2154 = vld [vmem:[#allocation8 + $0x18] sm:$0xff]
    %v2155 = vld [vmem:[#allocation8 + $0x20] sm:$0xff]
    %v2156 = vld [vmem:[#allocation8 + $0x28] sm:$0xff]
    %v2157 = vld [vmem:[#allocation8 + $0x30] sm:$0xff]
    %v2158 = vld [vmem:[#allocation8 + $0x38] sm:$0xff]
    %v2159 = vld [vmem:[#allocation8 + $0x40] sm:$0xff]
    %v2160 = vld [vmem:[#allocation8 + $0x48] sm:$0xff]
    %v2161 = vld [vmem:[#allocation8 + $0x50] sm:$0xff]
    %v2162 = vld [vmem:[#allocation8 + $0x58] sm:$0xff]
    %v2163 = vld [vmem:[#allocation8 + $0x60] sm:$0xff]
    %v2164 = vld [vmem:[#allocation8 + $0x68] sm:$0xff]
    %v2165 = vld [vmem:[#allocation8 + $0x70] sm:$0xff]
    %v2166 = vld [vmem:[#allocation8 + $0x78] sm:$0xff]
    %v2167 = vld [vmem:[#allocation8 + $0x80] sm:$0xff]
    %v2168 = vld [vmem:[#allocation8 + $0x88] sm:$0xff]
    %v2169 = vld [vmem:[#allocation8 + $0x90] sm:$0xff]
    %v2170 = vld [vmem:[#allocation8 + $0x98] sm:$0xff]
    %v2171 = vld [vmem:[#allocation8 + $0xa0] sm:$0xff]
    %v2172 = vld [vmem:[#allocation8 + $0xa8] sm:$0xff]
    %v2173 = vld [vmem:[#allocation8 + $0xb0] sm:$0xff]
    %v2174 = vld [vmem:[#allocation8 + $0xb8] sm:$0xff]
    %v2175 = vld [vmem:[#allocation8 + $0xc0] sm:$0xff]
    %v2176 = vld [vmem:[#allocation8 + $0xc8] sm:$0xff]
    %v2177 = vld [vmem:[#allocation8 + $0xd0] sm:$0xff]
    %v2178 = vld [vmem:[#allocation8 + $0xd8] sm:$0xff]
    %v2179 = vld [vmem:[#allocation8 + $0xe0] sm:$0xff]
    %v2180 = vld [vmem:[#allocation8 + $0xe8] sm:$0xff]
    %v2181 = vld [vmem:[#allocation8 + $0xf0] sm:$0xff]
    %v2182 = vld [vmem:[#allocation8 + $0xf8] sm:$0xff]
    %v2183 = vld [vmem:[#allocation8 + $0x100] sm:$0xff]
    %v2184 = vld [vmem:[#allocation8 + $0x108] sm:$0xff]
    %v2185 = vld [vmem:[#allocation8 + $0x110] sm:$0xff]
    %v2186 = vld [vmem:[#allocation8 + $0x118] sm:$0xff]
    %v2187 = vld [vmem:[#allocation8 + $0x120] sm:$0xff]
    %v2188 = vld [vmem:[#allocation8 + $0x128] sm:$0xff]
    %v2189 = vld [vmem:[#allocation8 + $0x130] sm:$0xff]
    %v2190 = vld [vmem:[#allocation8 + $0x138] sm:$0xff]
    %v2191 = vld [vmem:[#allocation8 + $0x140] sm:$0xff]
    %v2192 = vld [vmem:[#allocation8 + $0x148] sm:$0xff]
    %v2193 = vld [vmem:[#allocation8 + $0x150] sm:$0xff]
    %v2194 = vld [vmem:[#allocation8 + $0x158] sm:$0xff]
    %v2195 = vld [vmem:[#allocation8 + $0x160] sm:$0xff]
    %v2196 = vld [vmem:[#allocation8 + $0x168] sm:$0xff]
    %v2197 = vld [vmem:[#allocation8 + $0x170] sm:$0xff]
    %v2198 = vld [vmem:[#allocation8 + $0x178] sm:$0xff]
    %v2199 = vld [vmem:[#allocation8 + $0x180] sm:$0xff]
    %v2200 = vld [vmem:[#allocation8 + $0x188] sm:$0xff]
    %v2201 = vld [vmem:[#allocation8 + $0x190] sm:$0xff]
    %v2202 = vld [vmem:[#allocation8 + $0x198] sm:$0xff]
    %v2203 = vld [vmem:[#allocation8 + $0x1a0] sm:$0xff]
    %v2204 = vld [vmem:[#allocation8 + $0x1a8] sm:$0xff]
    %v2205 = vld [vmem:[#allocation8 + $0x1b0] sm:$0xff]
    %v2206 = vld [vmem:[#allocation8 + $0x1b8] sm:$0xff]
    %v2207 = vld [vmem:[#allocation8 + $0x1c0] sm:$0xff]
    %v2208 = vld [vmem:[#allocation8 + $0x1c8] sm:$0xff]
    %v2209 = vld [vmem:[#allocation8 + $0x1d0] sm:$0xff]
    %v2210 = vld [vmem:[#allocation8 + $0x1d8] sm:$0xff]
    %v2211 = vld [vmem:[#allocation8 + $0x1e0] sm:$0xff]
    %v2212 = vld [vmem:[#allocation8 + $0x1e8] sm:$0xff]
    %v2213 = vld [vmem:[#allocation8 + $0x1f0] sm:$0xff]
    %v2214 = vld [vmem:[#allocation8 + $0x1f8] sm:$0xff]
    %v2215 = vld [vmem:[%s13] sm:$0x3]
    %v2217 = vperm.slane %v2215, 0
    %v2218 = vperm.slane %v2215, 1
    %v2285 = vunpack.c.l.b16 %v2151
    %v2286 = vunpack.c.h.b16 %v2151
    %v2287 = vunpack.c.l.b16 %v2152
    %v2288 = vunpack.c.h.b16 %v2152
    %v2289 = vunpack.c.l.b16 %v2153
    %v2290 = vunpack.c.h.b16 %v2153
    %v2291 = vunpack.c.l.b16 %v2154
    %v2292 = vunpack.c.h.b16 %v2154
    %v2293 = vunpack.c.l.b16 %v2155
    %v2294 = vunpack.c.h.b16 %v2155
    %v2295 = vunpack.c.l.b16 %v2156
    %v2296 = vunpack.c.h.b16 %v2156
    %v2297 = vunpack.c.l.b16 %v2157
    %v2298 = vunpack.c.h.b16 %v2157
    %v2299 = vunpack.c.l.b16 %v2158
    %v2300 = vunpack.c.h.b16 %v2158
    %v2301 = vunpack.c.l.b16 %v2159
    %v2302 = vunpack.c.h.b16 %v2159
    %v2303 = vunpack.c.l.b16 %v2160
    %v2304 = vunpack.c.h.b16 %v2160
    %v2305 = vunpack.c.l.b16 %v2161
    %v2306 = vunpack.c.h.b16 %v2161
    %v2307 = vunpack.c.l.b16 %v2162
    %v2308 = vunpack.c.h.b16 %v2162
    %v2309 = vunpack.c.l.b16 %v2163
    %v2310 = vunpack.c.h.b16 %v2163
    %v2311 = vunpack.c.l.b16 %v2164
    %v2312 = vunpack.c.h.b16 %v2164
    %v2313 = vunpack.c.l.b16 %v2165
    %v2314 = vunpack.c.h.b16 %v2165
    %v2315 = vunpack.c.l.b16 %v2166
    %v2316 = vunpack.c.h.b16 %v2166
    %v2317 = vunpack.c.l.b16 %v2167
    %v2318 = vunpack.c.h.b16 %v2167
    %v2319 = vunpack.c.l.b16 %v2168
    %v2320 = vunpack.c.h.b16 %v2168
    %v2321 = vunpack.c.l.b16 %v2169
    %v2322 = vunpack.c.h.b16 %v2169
    %v2323 = vunpack.c.l.b16 %v2170
    %v2324 = vunpack.c.h.b16 %v2170
    %v2325 = vunpack.c.l.b16 %v2171
    %v2326 = vunpack.c.h.b16 %v2171
    %v2327 = vunpack.c.l.b16 %v2172
    %v2328 = vunpack.c.h.b16 %v2172
    %v2329 = vunpack.c.l.b16 %v2173
    %v2330 = vunpack.c.h.b16 %v2173
    %v2331 = vunpack.c.l.b16 %v2174
    %v2332 = vunpack.c.h.b16 %v2174
    %v2333 = vunpack.c.l.b16 %v2175
    %v2334 = vunpack.c.h.b16 %v2175
    %v2335 = vunpack.c.l.b16 %v2176
    %v2336 = vunpack.c.h.b16 %v2176
    %v2337 = vunpack.c.l.b16 %v2177
    %v2338 = vunpack.c.h.b16 %v2177
    %v2339 = vunpack.c.l.b16 %v2178
    %v2340 = vunpack.c.h.b16 %v2178
    %v2341 = vunpack.c.l.b16 %v2179
    %v2342 = vunpack.c.h.b16 %v2179
    %v2343 = vunpack.c.l.b16 %v2180
    %v2344 = vunpack.c.h.b16 %v2180
    %v2345 = vunpack.c.l.b16 %v2181
    %v2346 = vunpack.c.h.b16 %v2181
    %v2347 = vunpack.c.l.b16 %v2182
    %v2348 = vunpack.c.h.b16 %v2182
    %v2349 = vunpack.c.l.b16 %v2183
    %v2350 = vunpack.c.h.b16 %v2183
    %v2351 = vunpack.c.l.b16 %v2184
    %v2352 = vunpack.c.h.b16 %v2184
    %v2353 = vunpack.c.l.b16 %v2185
    %v2354 = vunpack.c.h.b16 %v2185
    %v2355 = vunpack.c.l.b16 %v2186
    %v2356 = vunpack.c.h.b16 %v2186
    %v2357 = vunpack.c.l.b16 %v2187
    %v2358 = vunpack.c.h.b16 %v2187
    %v2359 = vunpack.c.l.b16 %v2188
    %v2360 = vunpack.c.h.b16 %v2188
    %v2361 = vunpack.c.l.b16 %v2189
    %v2362 = vunpack.c.h.b16 %v2189
    %v2363 = vunpack.c.l.b16 %v2190
    %v2364 = vunpack.c.h.b16 %v2190
    %v2365 = vunpack.c.l.b16 %v2191
    %v2366 = vunpack.c.h.b16 %v2191
    %v2367 = vunpack.c.l.b16 %v2192
    %v2368 = vunpack.c.h.b16 %v2192
    %v2369 = vunpack.c.l.b16 %v2193
    %v2370 = vunpack.c.h.b16 %v2193
    %v2371 = vunpack.c.l.b16 %v2194
    %v2372 = vunpack.c.h.b16 %v2194
    %v2373 = vunpack.c.l.b16 %v2195
    %v2374 = vunpack.c.h.b16 %v2195
    %v2375 = vunpack.c.l.b16 %v2196
    %v2376 = vunpack.c.h.b16 %v2196
    %v2377 = vunpack.c.l.b16 %v2197
    %v2378 = vunpack.c.h.b16 %v2197
    %v2379 = vunpack.c.l.b16 %v2198
    %v2380 = vunpack.c.h.b16 %v2198
    %v2381 = vunpack.c.l.b16 %v2199
    %v2382 = vunpack.c.h.b16 %v2199
    %v2383 = vunpack.c.l.b16 %v2200
    %v2384 = vunpack.c.h.b16 %v2200
    %v2385 = vunpack.c.l.b16 %v2201
    %v2386 = vunpack.c.h.b16 %v2201
    %v2387 = vunpack.c.l.b16 %v2202
    %v2388 = vunpack.c.h.b16 %v2202
    %v2389 = vunpack.c.l.b16 %v2203
    %v2390 = vunpack.c.h.b16 %v2203
    %v2391 = vunpack.c.l.b16 %v2204
    %v2392 = vunpack.c.h.b16 %v2204
    %v2393 = vunpack.c.l.b16 %v2205
    %v2394 = vunpack.c.h.b16 %v2205
    %v2395 = vunpack.c.l.b16 %v2206
    %v2396 = vunpack.c.h.b16 %v2206
    %v2397 = vunpack.c.l.b16 %v2207
    %v2398 = vunpack.c.h.b16 %v2207
    %v2399 = vunpack.c.l.b16 %v2208
    %v2400 = vunpack.c.h.b16 %v2208
    %v2401 = vunpack.c.l.b16 %v2209
    %v2402 = vunpack.c.h.b16 %v2209
    %v2403 = vunpack.c.l.b16 %v2210
    %v2404 = vunpack.c.h.b16 %v2210
    %v2405 = vunpack.c.l.b16 %v2211
    %v2406 = vunpack.c.h.b16 %v2211
    %v2407 = vunpack.c.l.b16 %v2212
    %v2408 = vunpack.c.h.b16 %v2212
    %v2409 = vunpack.c.l.b16 %v2213
    %v2410 = vunpack.c.h.b16 %v2213
    %v2411 = vunpack.c.l.b16 %v2214
    %v2412 = vunpack.c.h.b16 %v2214
    %v2413 = vpack.c.b16 %v2287, %v2285
    %v2414 = vpack.c.b16 %v2288, %v2286
    %v2415 = vpack.c.b16 %v2291, %v2289
    %v2416 = vpack.c.b16 %v2292, %v2290
    %v2417 = vpack.c.b16 %v2295, %v2293
    %v2418 = vpack.c.b16 %v2296, %v2294
    %v2419 = vpack.c.b16 %v2299, %v2297
    %v2420 = vpack.c.b16 %v2300, %v2298
    %v2421 = vpack.c.b16 %v2303, %v2301
    %v2422 = vpack.c.b16 %v2304, %v2302
    %v2423 = vpack.c.b16 %v2307, %v2305
    %v2424 = vpack.c.b16 %v2308, %v2306
    %v2425 = vpack.c.b16 %v2311, %v2309
    %v2426 = vpack.c.b16 %v2312, %v2310
    %v2427 = vpack.c.b16 %v2315, %v2313
    %v2428 = vpack.c.b16 %v2316, %v2314
    %v2429 = vpack.c.b16 %v2319, %v2317
    %v2430 = vpack.c.b16 %v2320, %v2318
    %v2431 = vpack.c.b16 %v2323, %v2321
    %v2432 = vpack.c.b16 %v2324, %v2322
    %v2433 = vpack.c.b16 %v2327, %v2325
    %v2434 = vpack.c.b16 %v2328, %v2326
    %v2435 = vpack.c.b16 %v2331, %v2329
    %v2436 = vpack.c.b16 %v2332, %v2330
    %v2437 = vpack.c.b16 %v2335, %v2333
    %v2438 = vpack.c.b16 %v2336, %v2334
    %v2439 = vpack.c.b16 %v2339, %v2337
    %v2440 = vpack.c.b16 %v2340, %v2338
    %v2441 = vpack.c.b16 %v2343, %v2341
    %v2442 = vpack.c.b16 %v2344, %v2342
    %v2443 = vpack.c.b16 %v2347, %v2345
    %v2444 = vpack.c.b16 %v2348, %v2346
    %v2445 = vpack.c.b16 %v2351, %v2349
    %v2446 = vpack.c.b16 %v2352, %v2350
    %v2447 = vpack.c.b16 %v2355, %v2353
    %v2448 = vpack.c.b16 %v2356, %v2354
    %v2449 = vpack.c.b16 %v2359, %v2357
    %v2450 = vpack.c.b16 %v2360, %v2358
    %v2451 = vpack.c.b16 %v2363, %v2361
    %v2452 = vpack.c.b16 %v2364, %v2362
    %v2453 = vpack.c.b16 %v2367, %v2365
    %v2454 = vpack.c.b16 %v2368, %v2366
    %v2455 = vpack.c.b16 %v2371, %v2369
    %v2456 = vpack.c.b16 %v2372, %v2370
    %v2457 = vpack.c.b16 %v2375, %v2373
    %v2458 = vpack.c.b16 %v2376, %v2374
    %v2459 = vpack.c.b16 %v2379, %v2377
    %v2460 = vpack.c.b16 %v2380, %v2378
    %v2461 = vpack.c.b16 %v2383, %v2381
    %v2462 = vpack.c.b16 %v2384, %v2382
    %v2463 = vpack.c.b16 %v2387, %v2385
    %v2464 = vpack.c.b16 %v2388, %v2386
    %v2465 = vpack.c.b16 %v2391, %v2389
    %v2466 = vpack.c.b16 %v2392, %v2390
    %v2467 = vpack.c.b16 %v2395, %v2393
    %v2468 = vpack.c.b16 %v2396, %v2394
    %v2469 = vpack.c.b16 %v2399, %v2397
    %v2470 = vpack.c.b16 %v2400, %v2398
    %v2471 = vpack.c.b16 %v2403, %v2401
    %v2472 = vpack.c.b16 %v2404, %v2402
    %v2473 = vpack.c.b16 %v2407, %v2405
    %v2474 = vpack.c.b16 %v2408, %v2406
    %v2475 = vpack.c.b16 %v2411, %v2409
    %v2476 = vpack.c.b16 %v2412, %v2410
    %2541 = vmatpush.bf16.msra.mxu0 %v2427
    %2542 = vmatpush.bf16.msra.mxu0 %v2425
    %2543 = vmatpush.bf16.msra.mxu0 %v2423
    %2544 = vmatpush.bf16.msra.mxu0 %v2421
    %2545 = vmatpush.bf16.msra.mxu0 %v2419
    %2546 = vmatpush.bf16.msra.mxu0 %v2417
    %2547 = vmatpush.bf16.msra.mxu0 %v2415
    %2548 = vmatpush.bf16.msra.mxu0 %v2413
    %2549 = vmatmul.bf16.gmra.mxu0 %v2147
    %v2550 = vpop.f32.mrf.mxu0
    %v2551 = vadd.f32 %v2217, %v2550
    %v2552 = vpop.f32.mrf.mxu0
    %v2553 = vadd.f32 %v2217, %v2552
    %2554 = vdwg.mxu0
    %2555 = vmatpush.bf16.msra.mxu0 %v2443
    %2556 = vmatpush.bf16.msra.mxu0 %v2441
    %2557 = vmatpush.bf16.msra.mxu0 %v2439
    %2558 = vmatpush.bf16.msra.mxu0 %v2437
    %2559 = vmatpush.bf16.msra.mxu0 %v2435
    %2560 = vmatpush.bf16.msra.mxu0 %v2433
    %2561 = vmatpush.bf16.msra.mxu0 %v2431
    %2562 = vmatpush.bf16.msra.mxu0 %v2429
    %2563 = vmatmul.bf16.gmra.mxu0 %v2148
    %v2564 = vpop.f32.mrf.mxu0
    %v2565 = vadd.f32 %v2551, %v2564
    %v2566 = vpop.f32.mrf.mxu0
    %v2567 = vadd.f32 %v2553, %v2566
    %2568 = vdwg.mxu0
    %2569 = vmatpush.bf16.msra.mxu0 %v2459
    %2570 = vmatpush.bf16.msra.mxu0 %v2457
    %2571 = vmatpush.bf16.msra.mxu0 %v2455
    %2572 = vmatpush.bf16.msra.mxu0 %v2453
    %2573 = vmatpush.bf16.msra.mxu0 %v2451
    %2574 = vmatpush.bf16.msra.mxu0 %v2449
    %2575 = vmatpush.bf16.msra.mxu0 %v2447
    %2576 = vmatpush.bf16.msra.mxu0 %v2445
    %2577 = vmatmul.bf16.gmra.mxu0 %v2149
    %v2578 = vpop.f32.mrf.mxu0
    %v2579 = vadd.f32 %v2565, %v2578
    %v2580 = vpop.f32.mrf.mxu0
    %v2581 = vadd.f32 %v2567, %v2580
    %2582 = vdwg.mxu0
    %2583 = vmatpush.bf16.msra.mxu0 %v2475
    %2584 = vmatpush.bf16.msra.mxu0 %v2473
    %2585 = vmatpush.bf16.msra.mxu0 %v2471
    %2586 = vmatpush.bf16.msra.mxu0 %v2469
    %2587 = vmatpush.bf16.msra.mxu0 %v2467
    %2588 = vmatpush.bf16.msra.mxu0 %v2465
    %2589 = vmatpush.bf16.msra.mxu0 %v2463
    %2590 = vmatpush.bf16.msra.mxu0 %v2461
    %2591 = vmatmul.bf16.gmra.mxu0 %v2150
    %v2592 = vpop.f32.mrf.mxu0
    %v2593 = vadd.f32 %v2579, %v2592
    %v2594 = vpop.f32.mrf.mxu0
    %v2595 = vadd.f32 %v2581, %v2594
    %2596 = vdwg.mxu0
    %2597 = vmatpush.bf16.msra.mxu0 %v2428
    %2598 = vmatpush.bf16.msra.mxu0 %v2426
    %2599 = vmatpush.bf16.msra.mxu0 %v2424
    %2600 = vmatpush.bf16.msra.mxu0 %v2422
    %2601 = vmatpush.bf16.msra.mxu0 %v2420
    %2602 = vmatpush.bf16.msra.mxu0 %v2418
    %2603 = vmatpush.bf16.msra.mxu0 %v2416
    %2604 = vmatpush.bf16.msra.mxu0 %v2414
    %2605 = vmatmul.bf16.gmra.mxu0 %v2147
    %v2606 = vpop.f32.mrf.mxu0
    %v2607 = vadd.f32 %v2218, %v2606
    %v2608 = vpop.f32.mrf.mxu0
    %v2609 = vadd.f32 %v2218, %v2608
    %2610 = vdwg.mxu0
    %2611 = vmatpush.bf16.msra.mxu0 %v2444
    %2612 = vmatpush.bf16.msra.mxu0 %v2442
    %2613 = vmatpush.bf16.msra.mxu0 %v2440
    %2614 = vmatpush.bf16.msra.mxu0 %v2438
    %2615 = vmatpush.bf16.msra.mxu0 %v2436
    %2616 = vmatpush.bf16.msra.mxu0 %v2434
    %2617 = vmatpush.bf16.msra.mxu0 %v2432
    %2618 = vmatpush.bf16.msra.mxu0 %v2430
    %2619 = vmatmul.bf16.gmra.mxu0 %v2148
    %v2620 = vpop.f32.mrf.mxu0
    %v2621 = vadd.f32 %v2607, %v2620
    %v2622 = vpop.f32.mrf.mxu0
    %v2623 = vadd.f32 %v2609, %v2622
    %2624 = vdwg.mxu0
    %2625 = vmatpush.bf16.msra.mxu0 %v2460
    %2626 = vmatpush.bf16.msra.mxu0 %v2458
    %2627 = vmatpush.bf16.msra.mxu0 %v2456
    %2628 = vmatpush.bf16.msra.mxu0 %v2454
    %2629 = vmatpush.bf16.msra.mxu0 %v2452
    %2630 = vmatpush.bf16.msra.mxu0 %v2450
    %2631 = vmatpush.bf16.msra.mxu0 %v2448
    %2632 = vmatpush.bf16.msra.mxu0 %v2446
    %2633 = vmatmul.bf16.gmra.mxu0 %v2149
    %v2634 = vpop.f32.mrf.mxu0
    %v2635 = vadd.f32 %v2621, %v2634
    %v2636 = vpop.f32.mrf.mxu0
    %v2637 = vadd.f32 %v2623, %v2636
    %2638 = vdwg.mxu0
    %2639 = vmatpush.bf16.msra.mxu0 %v2476
    %2640 = vmatpush.bf16.msra.mxu0 %v2474
    %2641 = vmatpush.bf16.msra.mxu0 %v2472
    %2642 = vmatpush.bf16.msra.mxu0 %v2470
    %2643 = vmatpush.bf16.msra.mxu0 %v2468
    %2644 = vmatpush.bf16.msra.mxu0 %v2466
    %2645 = vmatpush.bf16.msra.mxu0 %v2464
    %2646 = vmatpush.bf16.msra.mxu0 %v2462
    %2647 = vmatmul.bf16.gmra.mxu0 %v2150
    %v2648 = vpop.f32.mrf.mxu0
    %v2649 = vadd.f32 %v2635, %v2648
    %v2650 = vpop.f32.mrf.mxu0
    %v2651 = vadd.f32 %v2637, %v2650
    %2652 = vdwg.mxu0
    %v2653 = vadd.f32 %v2593, %v1563
    %v2654 = vadd.f32 %v2649, %v1564
    %v2655 = vadd.f32 %v2595, %v1565
    %v2656 = vadd.f32 %v2651, %v1566
    %v2657 = vld [vmem:[%s14] sm:$0x3]
    %v2658 = vld [vmem:[%s15] sm:$0x3]
    %v2659 = vadd.f32 %v2653, %v2654
    %2660 = vadd.xlane.f32.xlu0 %v2659
    %v2661 = vpop.xlane.xlu0 %2660
    %v2662 = vadd.f32 %v2655, %v2656
    %2663 = vadd.xlane.f32.xlu0 %v2662
    %v2664 = vpop.xlane.xlu0 %2663
    %v2665 = vmul.f32 %v2661, %v160
    %v2666 = vmul.f32 %v2664, %v160
    %v2667 = vsub.f32 %v2653, %v2665
    %v2668 = vsub.f32 %v2654, %v2665
    %v2669 = vsub.f32 %v2655, %v2666
    %v2670 = vsub.f32 %v2656, %v2666
    %v2671 = vmul.f32 %v2667, %v2667
    %v2672 = vmul.f32 %v2668, %v2668
    %v2673 = vmul.f32 %v2669, %v2669
    %v2674 = vmul.f32 %v2670, %v2670
    %v2675 = vadd.f32 %v2671, %v2672
    %2676 = vadd.xlane.f32.xlu0 %v2675
    %v2677 = vpop.xlane.xlu0 %2676
    %v2678 = vadd.f32 %v2673, %v2674
    %2679 = vadd.xlane.f32.xlu0 %v2678
    %v2680 = vpop.xlane.xlu0 %2679
    %v2681 = vmul.f32 %v2677, %v160
    %v2682 = vmul.f32 %v2680, %v160
    %v2683 = vadd.f32 %v2681, 1e-12
    %v2684 = vadd.f32 %v2682, 1e-12
    %v2685 = vrsqrt.pop %v2683
    %v2686 = vmul.f32 %v2685, %v2683
    %v2687 = vmul.f32 %v2686, %v2685
    %v2688 = vmul.f32 0.5, %v2687
    %v2689 = vsub.f32 1.5, %v2688
    %v2690 = vmul.f32 %v2685, %v2689
    %vm2691 = vweird.f32 %v2683
    %vm2692 = vweird.f32 %v2685
    %vm2693 = vmor %vm2691, %vm2692
    %v2694 = vsel %vm2693, %v2685, %v2690
    %v2695 = vrsqrt.pop %v2684
    %v2696 = vmul.f32 %v2695, %v2684
    %v2697 = vmul.f32 %v2696, %v2695
    %v2698 = vmul.f32 0.5, %v2697
    %v2699 = vsub.f32 1.5, %v2698
    %v2700 = vmul.f32 %v2695, %v2699
    %vm2701 = vweird.f32 %v2684
    %vm2702 = vweird.f32 %v2695
    %vm2703 = vmor %vm2701, %vm2702
    %v2704 = vsel %vm2703, %v2695, %v2700
    %v2705 = vmul.f32 %v2667, %v2694
    %v2706 = vmul.f32 %v2668, %v2694
    %v2707 = vmul.f32 %v2669, %v2704
    %v2708 = vmul.f32 %v2670, %v2704
    %v2710 = vperm.slane %v2657, 0
    %v2711 = vperm.slane %v2657, 1
    %v2714 = vmul.f32 %v2705, %v2710
    %v2715 = vmul.f32 %v2706, %v2711
    %v2716 = vmul.f32 %v2707, %v2710
    %v2717 = vmul.f32 %v2708, %v2711
    %v2719 = vperm.slane %v2658, 0
    %v2720 = vperm.slane %v2658, 1
    %v2723 = vadd.f32 %v2714, %v2719
    %v2724 = vadd.f32 %v2715, %v2720
    %v2725 = vadd.f32 %v2716, %v2719
    %v2726 = vadd.f32 %v2717, %v2720
    %v2727 = vpack.c.bf16 %v2725, %v2723
    %v2728 = vpack.c.bf16 %v2726, %v2724
    %s2729 = scalar_lea.vmem [#allocation2], 768
    %v2730 = vld [vmem:[%s2729] sm:$0xff]
    %v2731 = vld [vmem:[%s2729 + $0x8] sm:$0xff]
    %v2732 = vld [vmem:[%s2729 + $0x10] sm:$0xff]
    %v2733 = vld [vmem:[%s2729 + $0x18] sm:$0xff]
    %v2734 = vld [vmem:[%s2729 + $0x20] sm:$0xff]
    %v2735 = vld [vmem:[%s2729 + $0x28] sm:$0xff]
    %v2736 = vld [vmem:[%s2729 + $0x30] sm:$0xff]
    %v2737 = vld [vmem:[%s2729 + $0x38] sm:$0xff]
    %v2738 = vld [vmem:[%s2729 + $0x40] sm:$0xff]
    %v2739 = vld [vmem:[%s2729 + $0x48] sm:$0xff]
    %v2740 = vld [vmem:[%s2729 + $0x50] sm:$0xff]
    %v2741 = vld [vmem:[%s2729 + $0x58] sm:$0xff]
    %v2742 = vld [vmem:[%s2729 + $0x60] sm:$0xff]
    %v2743 = vld [vmem:[%s2729 + $0x68] sm:$0xff]
    %v2744 = vld [vmem:[%s2729 + $0x70] sm:$0xff]
    %v2745 = vld [vmem:[%s2729 + $0x78] sm:$0xff]
    %v2746 = vld [vmem:[%s2729 + $0x80] sm:$0xff]
    %v2747 = vld [vmem:[%s2729 + $0x88] sm:$0xff]
    %v2748 = vld [vmem:[%s2729 + $0x90] sm:$0xff]
    %v2749 = vld [vmem:[%s2729 + $0x98] sm:$0xff]
    %v2750 = vld [vmem:[%s2729 + $0xa0] sm:$0xff]
    %v2751 = vld [vmem:[%s2729 + $0xa8] sm:$0xff]
    %v2752 = vld [vmem:[%s2729 + $0xb0] sm:$0xff]
    %v2753 = vld [vmem:[%s2729 + $0xb8] sm:$0xff]
    %v2754 = vld [vmem:[%s2729 + $0xc0] sm:$0xff]
    %v2755 = vld [vmem:[%s2729 + $0xc8] sm:$0xff]
    %v2756 = vld [vmem:[%s2729 + $0xd0] sm:$0xff]
    %v2757 = vld [vmem:[%s2729 + $0xd8] sm:$0xff]
    %v2758 = vld [vmem:[%s2729 + $0xe0] sm:$0xff]
    %v2759 = vld [vmem:[%s2729 + $0xe8] sm:$0xff]
    %v2760 = vld [vmem:[%s2729 + $0xf0] sm:$0xff]
    %v2761 = vld [vmem:[%s2729 + $0xf8] sm:$0xff]
    %v2762 = vld [vmem:[%s2729 + $0x100] sm:$0xff]
    %v2763 = vld [vmem:[%s2729 + $0x108] sm:$0xff]
    %v2764 = vld [vmem:[%s2729 + $0x110] sm:$0xff]
    %v2765 = vld [vmem:[%s2729 + $0x118] sm:$0xff]
    %v2766 = vld [vmem:[%s2729 + $0x120] sm:$0xff]
    %v2767 = vld [vmem:[%s2729 + $0x128] sm:$0xff]
    %v2768 = vld [vmem:[%s2729 + $0x130] sm:$0xff]
    %v2769 = vld [vmem:[%s2729 + $0x138] sm:$0xff]
    %v2770 = vld [vmem:[%s2729 + $0x140] sm:$0xff]
    %v2771 = vld [vmem:[%s2729 + $0x148] sm:$0xff]
    %v2772 = vld [vmem:[%s2729 + $0x150] sm:$0xff]
    %v2773 = vld [vmem:[%s2729 + $0x158] sm:$0xff]
    %v2774 = vld [vmem:[%s2729 + $0x160] sm:$0xff]
    %v2775 = vld [vmem:[%s2729 + $0x168] sm:$0xff]
    %v2776 = vld [vmem:[%s2729 + $0x170] sm:$0xff]
    %v2777 = vld [vmem:[%s2729 + $0x178] sm:$0xff]
    %v2778 = vld [vmem:[%s2729 + $0x180] sm:$0xff]
    %v2779 = vld [vmem:[%s2729 + $0x188] sm:$0xff]
    %v2780 = vld [vmem:[%s2729 + $0x190] sm:$0xff]
    %v2781 = vld [vmem:[%s2729 + $0x198] sm:$0xff]
    %v2782 = vld [vmem:[%s2729 + $0x1a0] sm:$0xff]
    %v2783 = vld [vmem:[%s2729 + $0x1a8] sm:$0xff]
    %v2784 = vld [vmem:[%s2729 + $0x1b0] sm:$0xff]
    %v2785 = vld [vmem:[%s2729 + $0x1b8] sm:$0xff]
    %v2786 = vld [vmem:[%s2729 + $0x1c0] sm:$0xff]
    %v2787 = vld [vmem:[%s2729 + $0x1c8] sm:$0xff]
    %v2788 = vld [vmem:[%s2729 + $0x1d0] sm:$0xff]
    %v2789 = vld [vmem:[%s2729 + $0x1d8] sm:$0xff]
    %v2790 = vld [vmem:[%s2729 + $0x1e0] sm:$0xff]
    %v2791 = vld [vmem:[%s2729 + $0x1e8] sm:$0xff]
    %v2792 = vld [vmem:[%s2729 + $0x1f0] sm:$0xff]
    %v2793 = vld [vmem:[%s2729 + $0x1f8] sm:$0xff]
    %v2794 = vld [vmem:[%s2729 + $0x200] sm:$0xff]
    %v2795 = vld [vmem:[%s2729 + $0x208] sm:$0xff]
    %v2796 = vld [vmem:[%s2729 + $0x210] sm:$0xff]
    %v2797 = vld [vmem:[%s2729 + $0x218] sm:$0xff]
    %v2798 = vld [vmem:[%s2729 + $0x220] sm:$0xff]
    %v2799 = vld [vmem:[%s2729 + $0x228] sm:$0xff]
    %v2800 = vld [vmem:[%s2729 + $0x230] sm:$0xff]
    %v2801 = vld [vmem:[%s2729 + $0x238] sm:$0xff]
    %v2802 = vld [vmem:[%s2729 + $0x240] sm:$0xff]
    %v2803 = vld [vmem:[%s2729 + $0x248] sm:$0xff]
    %v2804 = vld [vmem:[%s2729 + $0x250] sm:$0xff]
    %v2805 = vld [vmem:[%s2729 + $0x258] sm:$0xff]
    %v2806 = vld [vmem:[%s2729 + $0x260] sm:$0xff]
    %v2807 = vld [vmem:[%s2729 + $0x268] sm:$0xff]
    %v2808 = vld [vmem:[%s2729 + $0x270] sm:$0xff]
    %v2809 = vld [vmem:[%s2729 + $0x278] sm:$0xff]
    %v2810 = vld [vmem:[%s2729 + $0x280] sm:$0xff]
    %v2811 = vld [vmem:[%s2729 + $0x288] sm:$0xff]
    %v2812 = vld [vmem:[%s2729 + $0x290] sm:$0xff]
    %v2813 = vld [vmem:[%s2729 + $0x298] sm:$0xff]
    %v2814 = vld [vmem:[%s2729 + $0x2a0] sm:$0xff]
    %v2815 = vld [vmem:[%s2729 + $0x2a8] sm:$0xff]
    %v2816 = vld [vmem:[%s2729 + $0x2b0] sm:$0xff]
    %v2817 = vld [vmem:[%s2729 + $0x2b8] sm:$0xff]
    %v2818 = vld [vmem:[%s2729 + $0x2c0] sm:$0xff]
    %v2819 = vld [vmem:[%s2729 + $0x2c8] sm:$0xff]
    %v2820 = vld [vmem:[%s2729 + $0x2d0] sm:$0xff]
    %v2821 = vld [vmem:[%s2729 + $0x2d8] sm:$0xff]
    %v2822 = vld [vmem:[%s2729 + $0x2e0] sm:$0xff]
    %v2823 = vld [vmem:[%s2729 + $0x2e8] sm:$0xff]
    %v2824 = vld [vmem:[%s2729 + $0x2f0] sm:$0xff]
    %v2825 = vld [vmem:[%s2729 + $0x2f8] sm:$0xff]
    %s2826 = scalar_lea.vmem %s5, 6
    %v2827 = vld [vmem:[%s2826] sm:$0x3f]
    %v2829 = vperm.slane %v2827, 0
    %v2830 = vperm.slane %v2827, 1
    %v2831 = vperm.slane %v2827, 2
    %v2832 = vperm.slane %v2827, 3
    %v2833 = vperm.slane %v2827, 4
    %v2834 = vperm.slane %v2827, 5
    %v2937 = vunpack.c.l.b16 %v2730
    %v2938 = vunpack.c.h.b16 %v2730
    %v2939 = vunpack.c.l.b16 %v2731
    %v2940 = vunpack.c.h.b16 %v2731
    %v2941 = vunpack.c.l.b16 %v2732
    %v2942 = vunpack.c.h.b16 %v2732
    %v2943 = vunpack.c.l.b16 %v2733
    %v2944 = vunpack.c.h.b16 %v2733
    %v2945 = vunpack.c.l.b16 %v2734
    %v2946 = vunpack.c.h.b16 %v2734
    %v2947 = vunpack.c.l.b16 %v2735
    %v2948 = vunpack.c.h.b16 %v2735
    %v2949 = vunpack.c.l.b16 %v2736
    %v2950 = vunpack.c.h.b16 %v2736
    %v2951 = vunpack.c.l.b16 %v2737
    %v2952 = vunpack.c.h.b16 %v2737
    %v2953 = vunpack.c.l.b16 %v2738
    %v2954 = vunpack.c.h.b16 %v2738
    %v2955 = vunpack.c.l.b16 %v2739
    %v2956 = vunpack.c.h.b16 %v2739
    %v2957 = vunpack.c.l.b16 %v2740
    %v2958 = vunpack.c.h.b16 %v2740
    %v2959 = vunpack.c.l.b16 %v2741
    %v2960 = vunpack.c.h.b16 %v2741
    %v2961 = vunpack.c.l.b16 %v2742
    %v2962 = vunpack.c.h.b16 %v2742
    %v2963 = vunpack.c.l.b16 %v2743
    %v2964 = vunpack.c.h.b16 %v2743
    %v2965 = vunpack.c.l.b16 %v2744
    %v2966 = vunpack.c.h.b16 %v2744
    %v2967 = vunpack.c.l.b16 %v2745
    %v2968 = vunpack.c.h.b16 %v2745
    %v2969 = vunpack.c.l.b16 %v2746
    %v2970 = vunpack.c.h.b16 %v2746
    %v2971 = vunpack.c.l.b16 %v2747
    %v2972 = vunpack.c.h.b16 %v2747
    %v2973 = vunpack.c.l.b16 %v2748
    %v2974 = vunpack.c.h.b16 %v2748
    %v2975 = vunpack.c.l.b16 %v2749
    %v2976 = vunpack.c.h.b16 %v2749
    %v2977 = vunpack.c.l.b16 %v2750
    %v2978 = vunpack.c.h.b16 %v2750
    %v2979 = vunpack.c.l.b16 %v2751
    %v2980 = vunpack.c.h.b16 %v2751
    %v2981 = vunpack.c.l.b16 %v2752
    %v2982 = vunpack.c.h.b16 %v2752
    %v2983 = vunpack.c.l.b16 %v2753
    %v2984 = vunpack.c.h.b16 %v2753
    %v2985 = vunpack.c.l.b16 %v2754
    %v2986 = vunpack.c.h.b16 %v2754
    %v2987 = vunpack.c.l.b16 %v2755
    %v2988 = vunpack.c.h.b16 %v2755
    %v2989 = vunpack.c.l.b16 %v2756
    %v2990 = vunpack.c.h.b16 %v2756
    %v2991 = vunpack.c.l.b16 %v2757
    %v2992 = vunpack.c.h.b16 %v2757
    %v2993 = vunpack.c.l.b16 %v2758
    %v2994 = vunpack.c.h.b16 %v2758
    %v2995 = vunpack.c.l.b16 %v2759
    %v2996 = vunpack.c.h.b16 %v2759
    %v2997 = vunpack.c.l.b16 %v2760
    %v2998 = vunpack.c.h.b16 %v2760
    %v2999 = vunpack.c.l.b16 %v2761
    %v3000 = vunpack.c.h.b16 %v2761
    %v3001 = vunpack.c.l.b16 %v2762
    %v3002 = vunpack.c.h.b16 %v2762
    %v3003 = vunpack.c.l.b16 %v2763
    %v3004 = vunpack.c.h.b16 %v2763
    %v3005 = vunpack.c.l.b16 %v2764
    %v3006 = vunpack.c.h.b16 %v2764
    %v3007 = vunpack.c.l.b16 %v2765
    %v3008 = vunpack.c.h.b16 %v2765
    %v3009 = vunpack.c.l.b16 %v2766
    %v3010 = vunpack.c.h.b16 %v2766
    %v3011 = vunpack.c.l.b16 %v2767
    %v3012 = vunpack.c.h.b16 %v2767
    %v3013 = vunpack.c.l.b16 %v2768
    %v3014 = vunpack.c.h.b16 %v2768
    %v3015 = vunpack.c.l.b16 %v2769
    %v3016 = vunpack.c.h.b16 %v2769
    %v3017 = vunpack.c.l.b16 %v2770
    %v3018 = vunpack.c.h.b16 %v2770
    %v3019 = vunpack.c.l.b16 %v2771
    %v3020 = vunpack.c.h.b16 %v2771
    %v3021 = vunpack.c.l.b16 %v2772
    %v3022 = vunpack.c.h.b16 %v2772
    %v3023 = vunpack.c.l.b16 %v2773
    %v3024 = vunpack.c.h.b16 %v2773
    %v3025 = vunpack.c.l.b16 %v2774
    %v3026 = vunpack.c.h.b16 %v2774
    %v3027 = vunpack.c.l.b16 %v2775
    %v3028 = vunpack.c.h.b16 %v2775
    %v3029 = vunpack.c.l.b16 %v2776
    %v3030 = vunpack.c.h.b16 %v2776
    %v3031 = vunpack.c.l.b16 %v2777
    %v3032 = vunpack.c.h.b16 %v2777
    %v3033 = vunpack.c.l.b16 %v2778
    %v3034 = vunpack.c.h.b16 %v2778
    %v3035 = vunpack.c.l.b16 %v2779
    %v3036 = vunpack.c.h.b16 %v2779
    %v3037 = vunpack.c.l.b16 %v2780
    %v3038 = vunpack.c.h.b16 %v2780
    %v3039 = vunpack.c.l.b16 %v2781
    %v3040 = vunpack.c.h.b16 %v2781
    %v3041 = vunpack.c.l.b16 %v2782
    %v3042 = vunpack.c.h.b16 %v2782
    %v3043 = vunpack.c.l.b16 %v2783
    %v3044 = vunpack.c.h.b16 %v2783
    %v3045 = vunpack.c.l.b16 %v2784
    %v3046 = vunpack.c.h.b16 %v2784
    %v3047 = vunpack.c.l.b16 %v2785
    %v3048 = vunpack.c.h.b16 %v2785
    %v3049 = vunpack.c.l.b16 %v2786
    %v3050 = vunpack.c.h.b16 %v2786
    %v3051 = vunpack.c.l.b16 %v2787
    %v3052 = vunpack.c.h.b16 %v2787
    %v3053 = vunpack.c.l.b16 %v2788
    %v3054 = vunpack.c.h.b16 %v2788
    %v3055 = vunpack.c.l.b16 %v2789
    %v3056 = vunpack.c.h.b16 %v2789
    %v3057 = vunpack.c.l.b16 %v2790
    %v3058 = vunpack.c.h.b16 %v2790
    %v3059 = vunpack.c.l.b16 %v2791
    %v3060 = vunpack.c.h.b16 %v2791
    %v3061 = vunpack.c.l.b16 %v2792
    %v3062 = vunpack.c.h.b16 %v2792
    %v3063 = vunpack.c.l.b16 %v2793
    %v3064 = vunpack.c.h.b16 %v2793
    %v3065 = vunpack.c.l.b16 %v2794
    %v3066 = vunpack.c.h.b16 %v2794
    %v3067 = vunpack.c.l.b16 %v2795
    %v3068 = vunpack.c.h.b16 %v2795
    %v3069 = vunpack.c.l.b16 %v2796
    %v3070 = vunpack.c.h.b16 %v2796
    %v3071 = vunpack.c.l.b16 %v2797
    %v3072 = vunpack.c.h.b16 %v2797
    %v3073 = vunpack.c.l.b16 %v2798
    %v3074 = vunpack.c.h.b16 %v2798
    %v3075 = vunpack.c.l.b16 %v2799
    %v3076 = vunpack.c.h.b16 %v2799
    %v3077 = vunpack.c.l.b16 %v2800
    %v3078 = vunpack.c.h.b16 %v2800
    %v3079 = vunpack.c.l.b16 %v2801
    %v3080 = vunpack.c.h.b16 %v2801
    %v3081 = vunpack.c.l.b16 %v2802
    %v3082 = vunpack.c.h.b16 %v2802
    %v3083 = vunpack.c.l.b16 %v2803
    %v3084 = vunpack.c.h.b16 %v2803
    %v3085 = vunpack.c.l.b16 %v2804
    %v3086 = vunpack.c.h.b16 %v2804
    %v3087 = vunpack.c.l.b16 %v2805
    %v3088 = vunpack.c.h.b16 %v2805
    %v3089 = vunpack.c.l.b16 %v2806
    %v3090 = vunpack.c.h.b16 %v2806
    %v3091 = vunpack.c.l.b16 %v2807
    %v3092 = vunpack.c.h.b16 %v2807
    %v3093 = vunpack.c.l.b16 %v2808
    %v3094 = vunpack.c.h.b16 %v2808
    %v3095 = vunpack.c.l.b16 %v2809
    %v3096 = vunpack.c.h.b16 %v2809
    %v3097 = vunpack.c.l.b16 %v2810
    %v3098 = vunpack.c.h.b16 %v2810
    %v3099 = vunpack.c.l.b16 %v2811
    %v3100 = vunpack.c.h.b16 %v2811
    %v3101 = vunpack.c.l.b16 %v2812
    %v3102 = vunpack.c.h.b16 %v2812
    %v3103 = vunpack.c.l.b16 %v2813
    %v3104 = vunpack.c.h.b16 %v2813
    %v3105 = vunpack.c.l.b16 %v2814
    %v3106 = vunpack.c.h.b16 %v2814
    %v3107 = vunpack.c.l.b16 %v2815
    %v3108 = vunpack.c.h.b16 %v2815
    %v3109 = vunpack.c.l.b16 %v2816
    %v3110 = vunpack.c.h.b16 %v2816
    %v3111 = vunpack.c.l.b16 %v2817
    %v3112 = vunpack.c.h.b16 %v2817
    %v3113 = vunpack.c.l.b16 %v2818
    %v3114 = vunpack.c.h.b16 %v2818
    %v3115 = vunpack.c.l.b16 %v2819
    %v3116 = vunpack.c.h.b16 %v2819
    %v3117 = vunpack.c.l.b16 %v2820
    %v3118 = vunpack.c.h.b16 %v2820
    %v3119 = vunpack.c.l.b16 %v2821
    %v3120 = vunpack.c.h.b16 %v2821
    %v3121 = vunpack.c.l.b16 %v2822
    %v3122 = vunpack.c.h.b16 %v2822
    %v3123 = vunpack.c.l.b16 %v2823
    %v3124 = vunpack.c.h.b16 %v2823
    %v3125 = vunpack.c.l.b16 %v2824
    %v3126 = vunpack.c.h.b16 %v2824
    %v3127 = vunpack.c.l.b16 %v2825
    %v3128 = vunpack.c.h.b16 %v2825
    %v3129 = vpack.c.b16 %v2943, %v2937
    %v3130 = vpack.c.b16 %v2944, %v2938
    %v3131 = vpack.c.b16 %v2945, %v2939
    %v3132 = vpack.c.b16 %v2946, %v2940
    %v3133 = vpack.c.b16 %v2947, %v2941
    %v3134 = vpack.c.b16 %v2948, %v2942
    %v3135 = vpack.c.b16 %v2955, %v2949
    %v3136 = vpack.c.b16 %v2956, %v2950
    %v3137 = vpack.c.b16 %v2957, %v2951
    %v3138 = vpack.c.b16 %v2958, %v2952
    %v3139 = vpack.c.b16 %v2959, %v2953
    %v3140 = vpack.c.b16 %v2960, %v2954
    %v3141 = vpack.c.b16 %v2967, %v2961
    %v3142 = vpack.c.b16 %v2968, %v2962
    %v3143 = vpack.c.b16 %v2969, %v2963
    %v3144 = vpack.c.b16 %v2970, %v2964
    %v3145 = vpack.c.b16 %v2971, %v2965
    %v3146 = vpack.c.b16 %v2972, %v2966
    %v3147 = vpack.c.b16 %v2979, %v2973
    %v3148 = vpack.c.b16 %v2980, %v2974
    %v3149 = vpack.c.b16 %v2981, %v2975
    %v3150 = vpack.c.b16 %v2982, %v2976
    %v3151 = vpack.c.b16 %v2983, %v2977
    %v3152 = vpack.c.b16 %v2984, %v2978
    %v3153 = vpack.c.b16 %v2991, %v2985
    %v3154 = vpack.c.b16 %v2992, %v2986
    %v3155 = vpack.c.b16 %v2993, %v2987
    %v3156 = vpack.c.b16 %v2994, %v2988
    %v3157 = vpack.c.b16 %v2995, %v2989
    %v3158 = vpack.c.b16 %v2996, %v2990
    %v3159 = vpack.c.b16 %v3003, %v2997
    %v3160 = vpack.c.b16 %v3004, %v2998
    %v3161 = vpack.c.b16 %v3005, %v2999
    %v3162 = vpack.c.b16 %v3006, %v3000
    %v3163 = vpack.c.b16 %v3007, %v3001
    %v3164 = vpack.c.b16 %v3008, %v3002
    %v3165 = vpack.c.b16 %v3015, %v3009
    %v3166 = vpack.c.b16 %v3016, %v3010
    %v3167 = vpack.c.b16 %v3017, %v3011
    %v3168 = vpack.c.b16 %v3018, %v3012
    %v3169 = vpack.c.b16 %v3019, %v3013
    %v3170 = vpack.c.b16 %v3020, %v3014
    %v3171 = vpack.c.b16 %v3027, %v3021
    %v3172 = vpack.c.b16 %v3028, %v3022
    %v3173 = vpack.c.b16 %v3029, %v3023
    %v3174 = vpack.c.b16 %v3030, %v3024
    %v3175 = vpack.c.b16 %v3031, %v3025
    %v3176 = vpack.c.b16 %v3032, %v3026
    %v3177 = vpack.c.b16 %v3039, %v3033
    %v3178 = vpack.c.b16 %v3040, %v3034
    %v3179 = vpack.c.b16 %v3041, %v3035
    %v3180 = vpack.c.b16 %v3042, %v3036
    %v3181 = vpack.c.b16 %v3043, %v3037
    %v3182 = vpack.c.b16 %v3044, %v3038
    %v3183 = vpack.c.b16 %v3051, %v3045
    %v3184 = vpack.c.b16 %v3052, %v3046
    %v3185 = vpack.c.b16 %v3053, %v3047
    %v3186 = vpack.c.b16 %v3054, %v3048
    %v3187 = vpack.c.b16 %v3055, %v3049
    %v3188 = vpack.c.b16 %v3056, %v3050
    %v3189 = vpack.c.b16 %v3063, %v3057
    %v3190 = vpack.c.b16 %v3064, %v3058
    %v3191 = vpack.c.b16 %v3065, %v3059
    %v3192 = vpack.c.b16 %v3066, %v3060
    %v3193 = vpack.c.b16 %v3067, %v3061
    %v3194 = vpack.c.b16 %v3068, %v3062
    %v3195 = vpack.c.b16 %v3075, %v3069
    %v3196 = vpack.c.b16 %v3076, %v3070
    %v3197 = vpack.c.b16 %v3077, %v3071
    %v3198 = vpack.c.b16 %v3078, %v3072
    %v3199 = vpack.c.b16 %v3079, %v3073
    %v3200 = vpack.c.b16 %v3080, %v3074
    %v3201 = vpack.c.b16 %v3087, %v3081
    %v3202 = vpack.c.b16 %v3088, %v3082
    %v3203 = vpack.c.b16 %v3089, %v3083
    %v3204 = vpack.c.b16 %v3090, %v3084
    %v3205 = vpack.c.b16 %v3091, %v3085
    %v3206 = vpack.c.b16 %v3092, %v3086
    %v3207 = vpack.c.b16 %v3099, %v3093
    %v3208 = vpack.c.b16 %v3100, %v3094
    %v3209 = vpack.c.b16 %v3101, %v3095
    %v3210 = vpack.c.b16 %v3102, %v3096
    %v3211 = vpack.c.b16 %v3103, %v3097
    %v3212 = vpack.c.b16 %v3104, %v3098
    %v3213 = vpack.c.b16 %v3111, %v3105
    %v3214 = vpack.c.b16 %v3112, %v3106
    %v3215 = vpack.c.b16 %v3113, %v3107
    %v3216 = vpack.c.b16 %v3114, %v3108
    %v3217 = vpack.c.b16 %v3115, %v3109
    %v3218 = vpack.c.b16 %v3116, %v3110
    %v3219 = vpack.c.b16 %v3123, %v3117
    %v3220 = vpack.c.b16 %v3124, %v3118
    %v3221 = vpack.c.b16 %v3125, %v3119
    %v3222 = vpack.c.b16 %v3126, %v3120
    %v3223 = vpack.c.b16 %v3127, %v3121
    %v3224 = vpack.c.b16 %v3128, %v3122
    %3321 = vmatpush.bf16.msra.mxu0 %v3171
    %3322 = vmatpush.bf16.msra.mxu0 %v3165
    %3323 = vmatpush.bf16.msra.mxu0 %v3159
    %3324 = vmatpush.bf16.msra.mxu0 %v3153
    %3325 = vmatpush.bf16.msra.mxu0 %v3147
    %3326 = vmatpush.bf16.msra.mxu0 %v3141
    %3327 = vmatpush.bf16.msra.mxu0 %v3135
    %3328 = vmatpush.bf16.msra.mxu0 %v3129
    %3329 = vmatmul.bf16.gmra.mxu0 %v2727
    %v3330 = vpop.f32.mrf.mxu0
    %v3331 = vadd.f32 %v2829, %v3330
    %v3332 = vpop.f32.mrf.mxu0
    %v3333 = vadd.f32 %v2829, %v3332
    %3334 = vdwg.mxu0
    %3335 = vmatpush.bf16.msra.mxu0 %v3219
    %3336 = vmatpush.bf16.msra.mxu0 %v3213
    %3337 = vmatpush.bf16.msra.mxu0 %v3207
    %3338 = vmatpush.bf16.msra.mxu0 %v3201
    %3339 = vmatpush.bf16.msra.mxu0 %v3195
    %3340 = vmatpush.bf16.msra.mxu0 %v3189
    %3341 = vmatpush.bf16.msra.mxu0 %v3183
    %3342 = vmatpush.bf16.msra.mxu0 %v3177
    %3343 = vmatmul.bf16.gmra.mxu0 %v2728
    %v3344 = vpop.f32.mrf.mxu0
    %v3345 = vadd.f32 %v3331, %v3344
    %v3346 = vpop.f32.mrf.mxu0
    %v3347 = vadd.f32 %v3333, %v3346
    %3348 = vdwg.mxu0
    %3349 = vmatpush.bf16.msra.mxu0 %v3172
    %3350 = vmatpush.bf16.msra.mxu0 %v3166
    %3351 = vmatpush.bf16.msra.mxu0 %v3160
    %3352 = vmatpush.bf16.msra.mxu0 %v3154
    %3353 = vmatpush.bf16.msra.mxu0 %v3148
    %3354 = vmatpush.bf16.msra.mxu0 %v3142
    %3355 = vmatpush.bf16.msra.mxu0 %v3136
    %3356 = vmatpush.bf16.msra.mxu0 %v3130
    %3357 = vmatmul.bf16.gmra.mxu0 %v2727
    %v3358 = vpop.f32.mrf.mxu0
    %v3359 = vadd.f32 %v2830, %v3358
    %v3360 = vpop.f32.mrf.mxu0
    %v3361 = vadd.f32 %v2830, %v3360
    %3362 = vdwg.mxu0
    %3363 = vmatpush.bf16.msra.mxu0 %v3220
    %3364 = vmatpush.bf16.msra.mxu0 %v3214
    %3365 = vmatpush.bf16.msra.mxu0 %v3208
    %3366 = vmatpush.bf16.msra.mxu0 %v3202
    %3367 = vmatpush.bf16.msra.mxu0 %v3196
    %3368 = vmatpush.bf16.msra.mxu0 %v3190
    %3369 = vmatpush.bf16.msra.mxu0 %v3184
    %3370 = vmatpush.bf16.msra.mxu0 %v3178
    %3371 = vmatmul.bf16.gmra.mxu0 %v2728
    %v3372 = vpop.f32.mrf.mxu0
    %v3373 = vadd.f32 %v3359, %v3372
    %v3374 = vpop.f32.mrf.mxu0
    %v3375 = vadd.f32 %v3361, %v3374
    %3376 = vdwg.mxu0
    %3377 = vmatpush.bf16.msra.mxu0 %v3173
    %3378 = vmatpush.bf16.msra.mxu0 %v3167
    %3379 = vmatpush.bf16.msra.mxu0 %v3161
    %3380 = vmatpush.bf16.msra.mxu0 %v3155
    %3381 = vmatpush.bf16.msra.mxu0 %v3149
    %3382 = vmatpush.bf16.msra.mxu0 %v3143
    %3383 = vmatpush.bf16.msra.mxu0 %v3137
    %3384 = vmatpush.bf16.msra.mxu0 %v3131
    %3385 = vmatmul.bf16.gmra.mxu0 %v2727
    %v3386 = vpop.f32.mrf.mxu0
    %v3387 = vadd.f32 %v2831, %v3386
    %v3388 = vpop.f32.mrf.mxu0
    %v3389 = vadd.f32 %v2831, %v3388
    %3390 = vdwg.mxu0
    %3391 = vmatpush.bf16.msra.mxu0 %v3221
    %3392 = vmatpush.bf16.msra.mxu0 %v3215
    %3393 = vmatpush.bf16.msra.mxu0 %v3209
    %3394 = vmatpush.bf16.msra.mxu0 %v3203
    %3395 = vmatpush.bf16.msra.mxu0 %v3197
    %3396 = vmatpush.bf16.msra.mxu0 %v3191
    %3397 = vmatpush.bf16.msra.mxu0 %v3185
    %3398 = vmatpush.bf16.msra.mxu0 %v3179
    %3399 = vmatmul.bf16.gmra.mxu0 %v2728
    %v3400 = vpop.f32.mrf.mxu0
    %v3401 = vadd.f32 %v3387, %v3400
    %v3402 = vpop.f32.mrf.mxu0
    %v3403 = vadd.f32 %v3389, %v3402
    %3404 = vdwg.mxu0
    %3405 = vmatpush.bf16.msra.mxu0 %v3174
    %3406 = vmatpush.bf16.msra.mxu0 %v3168
    %3407 = vmatpush.bf16.msra.mxu0 %v3162
    %3408 = vmatpush.bf16.msra.mxu0 %v3156
    %3409 = vmatpush.bf16.msra.mxu0 %v3150
    %3410 = vmatpush.bf16.msra.mxu0 %v3144
    %3411 = vmatpush.bf16.msra.mxu0 %v3138
    %3412 = vmatpush.bf16.msra.mxu0 %v3132
    %3413 = vmatmul.bf16.gmra.mxu0 %v2727
    %v3414 = vpop.f32.mrf.mxu0
    %v3415 = vadd.f32 %v2832, %v3414
    %v3416 = vpop.f32.mrf.mxu0
    %v3417 = vadd.f32 %v2832, %v3416
    %3418 = vdwg.mxu0
    %3419 = vmatpush.bf16.msra.mxu0 %v3222
    %3420 = vmatpush.bf16.msra.mxu0 %v3216
    %3421 = vmatpush.bf16.msra.mxu0 %v3210
    %3422 = vmatpush.bf16.msra.mxu0 %v3204
    %3423 = vmatpush.bf16.msra.mxu0 %v3198
    %3424 = vmatpush.bf16.msra.mxu0 %v3192
    %3425 = vmatpush.bf16.msra.mxu0 %v3186
    %3426 = vmatpush.bf16.msra.mxu0 %v3180
    %3427 = vmatmul.bf16.gmra.mxu0 %v2728
    %v3428 = vpop.f32.mrf.mxu0
    %v3429 = vadd.f32 %v3415, %v3428
    %v3430 = vpop.f32.mrf.mxu0
    %v3431 = vadd.f32 %v3417, %v3430
    %3432 = vdwg.mxu0
    %3433 = vmatpush.bf16.msra.mxu0 %v3175
    %3434 = vmatpush.bf16.msra.mxu0 %v3169
    %3435 = vmatpush.bf16.msra.mxu0 %v3163
    %3436 = vmatpush.bf16.msra.mxu0 %v3157
    %3437 = vmatpush.bf16.msra.mxu0 %v3151
    %3438 = vmatpush.bf16.msra.mxu0 %v3145
    %3439 = vmatpush.bf16.msra.mxu0 %v3139
    %3440 = vmatpush.bf16.msra.mxu0 %v3133
    %3441 = vmatmul.bf16.gmra.mxu0 %v2727
    %v3442 = vpop.f32.mrf.mxu0
    %v3443 = vadd.f32 %v2833, %v3442
    %v3444 = vpop.f32.mrf.mxu0
    %v3445 = vadd.f32 %v2833, %v3444
    %3446 = vdwg.mxu0
    %3447 = vmatpush.bf16.msra.mxu0 %v3223
    %3448 = vmatpush.bf16.msra.mxu0 %v3217
    %3449 = vmatpush.bf16.msra.mxu0 %v3211
    %3450 = vmatpush.bf16.msra.mxu0 %v3205
    %3451 = vmatpush.bf16.msra.mxu0 %v3199
    %3452 = vmatpush.bf16.msra.mxu0 %v3193
    %3453 = vmatpush.bf16.msra.mxu0 %v3187
    %3454 = vmatpush.bf16.msra.mxu0 %v3181
    %3455 = vmatmul.bf16.gmra.mxu0 %v2728
    %v3456 = vpop.f32.mrf.mxu0
    %v3457 = vadd.f32 %v3443, %v3456
    %v3458 = vpop.f32.mrf.mxu0
    %v3459 = vadd.f32 %v3445, %v3458
    %3460 = vdwg.mxu0
    %3461 = vmatpush.bf16.msra.mxu0 %v3176
    %3462 = vmatpush.bf16.msra.mxu0 %v3170
    %3463 = vmatpush.bf16.msra.mxu0 %v3164
    %3464 = vmatpush.bf16.msra.mxu0 %v3158
    %3465 = vmatpush.bf16.msra.mxu0 %v3152
    %3466 = vmatpush.bf16.msra.mxu0 %v3146
    %3467 = vmatpush.bf16.msra.mxu0 %v3140
    %3468 = vmatpush.bf16.msra.mxu0 %v3134
    %3469 = vmatmul.bf16.gmra.mxu0 %v2727
    %v3470 = vpop.f32.mrf.mxu0
    %v3471 = vadd.f32 %v2834, %v3470
    %v3472 = vpop.f32.mrf.mxu0
    %v3473 = vadd.f32 %v2834, %v3472
    %3474 = vdwg.mxu0
    %3475 = vmatpush.bf16.msra.mxu0 %v3224
    %3476 = vmatpush.bf16.msra.mxu0 %v3218
    %3477 = vmatpush.bf16.msra.mxu0 %v3212
    %3478 = vmatpush.bf16.msra.mxu0 %v3206
    %3479 = vmatpush.bf16.msra.mxu0 %v3200
    %3480 = vmatpush.bf16.msra.mxu0 %v3194
    %3481 = vmatpush.bf16.msra.mxu0 %v3188
    %3482 = vmatpush.bf16.msra.mxu0 %v3182
    %3483 = vmatmul.bf16.gmra.mxu0 %v2728
    %v3484 = vpop.f32.mrf.mxu0
    %v3485 = vadd.f32 %v3471, %v3484
    %v3486 = vpop.f32.mrf.mxu0
    %v3487 = vadd.f32 %v3473, %v3486
    %3488 = vdwg.mxu0
    %v3489 = vmul.f32 %v3345, 0.088388346
    %v3490 = vmul.f32 %v3373, 0.088388346
    %v3491 = vmul.f32 %v3347, 0.088388346
    %v3492 = vmul.f32 %v3375, 0.088388346
    %v3493 = vpack.c.bf16 %v3489, %v3489
    %v3494 = vpack.c.bf16 %v3491, %v3491
    %v3495 = vpack.c.bf16 %v3401, %v3401
    %v3496 = vpack.c.bf16 %v3403, %v3403
    %v3497 = vpack.c.bf16 %v3457, %v3457
    %v3498 = vpack.c.bf16 %v3459, %v3459
    %3499 = vmatpush.bf16.xpose.msra.mxu0 0
    %3500 = vmatpush.bf16.xpose.msra.mxu0 0
    %3501 = vmatpush.bf16.xpose.msra.mxu0 0
    %3502 = vmatpush.bf16.xpose.msra.mxu0 0
    %3503 = vmatpush.bf16.xpose.msra.mxu0 0
    %3504 = vmatpush.bf16.xpose.msra.mxu0 0
    %3505 = vmatpush.bf16.xpose.msra.mxu0 0
    %3506 = vmatpush.bf16.xpose.msra.mxu0 %v3495
    %3507 = vmatmul.bf16.gmra.mxu0 %v3493
    %v3508 = vpop.f32.mrf.mxu0
    %v3509 = vadd.f32 %v227, %v3508
    %v3510 = vpop.f32.mrf.mxu0
    %3511 = vdwg.mxu0
    %3512 = vmatpush.bf16.xpose.msra.mxu0 0
    %3513 = vmatpush.bf16.xpose.msra.mxu0 0
    %3514 = vmatpush.bf16.xpose.msra.mxu0 0
    %3515 = vmatpush.bf16.xpose.msra.mxu0 0
    %3516 = vmatpush.bf16.xpose.msra.mxu0 0
    %3517 = vmatpush.bf16.xpose.msra.mxu0 0
    %3518 = vmatpush.bf16.xpose.msra.mxu0 0
    %3519 = vmatpush.bf16.xpose.msra.mxu0 %v3496
    %3520 = vmatmul.bf16.gmra.mxu0 %v3494
    %v3521 = vpop.f32.mrf.mxu0
    %v3522 = vadd.f32 %v228, %v3521
    %v3523 = vpop.f32.mrf.mxu0
    %3524 = vdwg.mxu0
    %v3525 = vsel %vm1027, %v3509, -inf
    %3526 = vmax.xlane.f32.xlu0 %v3525
    %v3527 = vpop.xlane.xlu0 %3526
    %v3528 = vsel %vm1027, %v3522, -inf
    %3529 = vmax.xlane.f32.xlu0 %v3528
    %v3530 = vpop.xlane.xlu0 %3529
    %v3531 = vsub.f32 %v3509, %v3527
    %v3532 = vsub.f32 %v3522, %v3530
    %v3533 = vmul.f32 %v3531, 1.442695
    %v3534 = vpow.pop %v3533
    %v3535 = vmul.f32 %v3532, 1.442695
    %v3536 = vpow.pop %v3535
    %v3537 = vsel %vm1027, %v3534, 0.0
    %3538 = vadd.xlane.f32.xlu0 %v3537
    %v3539 = vpop.xlane.xlu0 %3538
    %v3540 = vsel %vm1027, %v3536, 0.0
    %3541 = vadd.xlane.f32.xlu0 %v3540
    %v3542 = vpop.xlane.xlu0 %3541
    %v3543 = vrcp.pop %v3539
    %v3544 = vmul.f32 %v3539, %v3543
    %v3545 = vsub.f32 1.0, %v3544
    %v3546 = vmul.f32 %v3543, %v3545
    %v3547 = vadd.f32 %v3543, %v3546
    %vm3548 = vweird.f32 %v3539
    %vm3549 = vweird.f32 %v3543
    %vm3550 = vmor %vm3548, %vm3549
    %v3551 = vsel %vm3550, %v3543, %v3547
    %v3552 = vand.u32 2147483647, %v3539
    %vm3553 = vcmp.eq.f32.partialorder %v3552, 8.507059e+37
    %v3554 = vand.u32 %v3539, 2147483648
    %v3555 = vor.u32 1.1754944e-38, %v3554
    %v3556 = vsel %vm3553, %v3555, %v3551
    %v3557 = vmul.f32 %v3534, %v3556
    %v3558 = vrcp.pop %v3542
    %v3559 = vmul.f32 %v3542, %v3558
    %v3560 = vsub.f32 1.0, %v3559
    %v3561 = vmul.f32 %v3558, %v3560
    %v3562 = vadd.f32 %v3558, %v3561
    %vm3563 = vweird.f32 %v3542
    %vm3564 = vweird.f32 %v3558
    %vm3565 = vmor %vm3563, %vm3564
    %v3566 = vsel %vm3565, %v3558, %v3562
    %v3567 = vand.u32 2147483647, %v3542
    %vm3568 = vcmp.eq.f32.partialorder %v3567, 8.507059e+37
    %v3569 = vand.u32 %v3542, 2147483648
    %v3570 = vor.u32 1.1754944e-38, %v3569
    %v3571 = vsel %vm3568, %v3570, %v3566
    %v3572 = vmul.f32 %v3536, %v3571
    %v3573 = vpack.c.bf16 %v3557, %v3557
    %v3574 = vpack.c.bf16 %v3572, %v3572
    %v3576 = vsel %vm1027, %v3573, 0
    %v3579 = vsel %vm1081, %v3497, 0
    %3581 = vmatpush.bf16.msra.mxu0 0
    %3582 = vmatpush.bf16.msra.mxu0 0
    %3583 = vmatpush.bf16.msra.mxu0 0
    %3584 = vmatpush.bf16.msra.mxu0 0
    %3585 = vmatpush.bf16.msra.mxu0 0
    %3586 = vmatpush.bf16.msra.mxu0 0
    %3587 = vmatpush.bf16.msra.mxu0 0
    %3588 = vmatpush.bf16.msra.mxu0 %v3579
    %3589 = vmatmul.bf16.gmra.mxu0 %v3576
    %v3590 = vpop.f32.mrf.mxu0
    %v3591 = vadd.f32 0.0, %v3590
    %v3592 = vpop.f32.mrf.mxu0
    %3593 = vdwg.mxu0
    %v3595 = vsel %vm1027, %v3574, 0
    %v3598 = vsel %vm1081, %v3498, 0
    %3600 = vmatpush.bf16.msra.mxu0 0
    %3601 = vmatpush.bf16.msra.mxu0 0
    %3602 = vmatpush.bf16.msra.mxu0 0
    %3603 = vmatpush.bf16.msra.mxu0 0
    %3604 = vmatpush.bf16.msra.mxu0 0
    %3605 = vmatpush.bf16.msra.mxu0 0
    %3606 = vmatpush.bf16.msra.mxu0 0
    %3607 = vmatpush.bf16.msra.mxu0 %v3598
    %3608 = vmatmul.bf16.gmra.mxu0 %v3595
    %v3609 = vpop.f32.mrf.mxu0
    %v3610 = vadd.f32 0.0, %v3609
    %v3611 = vpop.f32.mrf.mxu0
    %3612 = vdwg.mxu0
    %v3613 = vpack.c.bf16 %v3490, %v3490
    %v3614 = vpack.c.bf16 %v3492, %v3492
    %v3615 = vpack.c.bf16 %v3429, %v3429
    %v3616 = vpack.c.bf16 %v3431, %v3431
    %v3617 = vpack.c.bf16 %v3485, %v3485
    %v3618 = vpack.c.bf16 %v3487, %v3487
    %3619 = vmatpush.bf16.xpose.msra.mxu0 0
    %3620 = vmatpush.bf16.xpose.msra.mxu0 0
    %3621 = vmatpush.bf16.xpose.msra.mxu0 0
    %3622 = vmatpush.bf16.xpose.msra.mxu0 0
    %3623 = vmatpush.bf16.xpose.msra.mxu0 0
    %3624 = vmatpush.bf16.xpose.msra.mxu0 0
    %3625 = vmatpush.bf16.xpose.msra.mxu0 0
    %3626 = vmatpush.bf16.xpose.msra.mxu0 %v3615
    %3627 = vmatmul.bf16.gmra.mxu0 %v3613
    %v3628 = vpop.f32.mrf.mxu0
    %v3629 = vadd.f32 %v227, %v3628
    %v3630 = vpop.f32.mrf.mxu0
    %3631 = vdwg.mxu0
    %3632 = vmatpush.bf16.xpose.msra.mxu0 0
    %3633 = vmatpush.bf16.xpose.msra.mxu0 0
    %3634 = vmatpush.bf16.xpose.msra.mxu0 0
    %3635 = vmatpush.bf16.xpose.msra.mxu0 0
    %3636 = vmatpush.bf16.xpose.msra.mxu0 0
    %3637 = vmatpush.bf16.xpose.msra.mxu0 0
    %3638 = vmatpush.bf16.xpose.msra.mxu0 0
    %3639 = vmatpush.bf16.xpose.msra.mxu0 %v3616
    %3640 = vmatmul.bf16.gmra.mxu0 %v3614
    %v3641 = vpop.f32.mrf.mxu0
    %v3642 = vadd.f32 %v228, %v3641
    %v3643 = vpop.f32.mrf.mxu0
    %3644 = vdwg.mxu0
    %v3645 = vsel %vm1027, %v3629, -inf
    %3646 = vmax.xlane.f32.xlu0 %v3645
    %v3647 = vpop.xlane.xlu0 %3646
    %v3648 = vsel %vm1027, %v3642, -inf
    %3649 = vmax.xlane.f32.xlu0 %v3648
    %v3650 = vpop.xlane.xlu0 %3649
    %v3651 = vsub.f32 %v3629, %v3647
    %v3652 = vsub.f32 %v3642, %v3650
    %v3653 = vmul.f32 %v3651, 1.442695
    %v3654 = vpow.pop %v3653
    %v3655 = vmul.f32 %v3652, 1.442695
    %v3656 = vpow.pop %v3655
    %v3657 = vsel %vm1027, %v3654, 0.0
    %3658 = vadd.xlane.f32.xlu0 %v3657
    %v3659 = vpop.xlane.xlu0 %3658
    %v3660 = vsel %vm1027, %v3656, 0.0
    %3661 = vadd.xlane.f32.xlu0 %v3660
    %v3662 = vpop.xlane.xlu0 %3661
    %v3663 = vrcp.pop %v3659
    %v3664 = vmul.f32 %v3659, %v3663
    %v3665 = vsub.f32 1.0, %v3664
    %v3666 = vmul.f32 %v3663, %v3665
    %v3667 = vadd.f32 %v3663, %v3666
    %vm3668 = vweird.f32 %v3659
    %vm3669 = vweird.f32 %v3663
    %vm3670 = vmor %vm3668, %vm3669
    %v3671 = vsel %vm3670, %v3663, %v3667
    %v3672 = vand.u32 2147483647, %v3659
    %vm3673 = vcmp.eq.f32.partialorder %v3672, 8.507059e+37
    %v3674 = vand.u32 %v3659, 2147483648
    %v3675 = vor.u32 1.1754944e-38, %v3674
    %v3676 = vsel %vm3673, %v3675, %v3671
    %v3677 = vmul.f32 %v3654, %v3676
    %v3678 = vrcp.pop %v3662
    %v3679 = vmul.f32 %v3662, %v3678
    %v3680 = vsub.f32 1.0, %v3679
    %v3681 = vmul.f32 %v3678, %v3680
    %v3682 = vadd.f32 %v3678, %v3681
    %vm3683 = vweird.f32 %v3662
    %vm3684 = vweird.f32 %v3678
    %vm3685 = vmor %vm3683, %vm3684
    %v3686 = vsel %vm3685, %v3678, %v3682
    %v3687 = vand.u32 2147483647, %v3662
    %vm3688 = vcmp.eq.f32.partialorder %v3687, 8.507059e+37
    %v3689 = vand.u32 %v3662, 2147483648
    %v3690 = vor.u32 1.1754944e-38, %v3689
    %v3691 = vsel %vm3688, %v3690, %v3686
    %v3692 = vmul.f32 %v3656, %v3691
    %v3693 = vpack.c.bf16 %v3677, %v3677
    %v3694 = vpack.c.bf16 %v3692, %v3692
    %v3696 = vsel %vm1027, %v3693, 0
    %v3699 = vsel %vm1081, %v3617, 0
    %3701 = vmatpush.bf16.msra.mxu0 0
    %3702 = vmatpush.bf16.msra.mxu0 0
    %3703 = vmatpush.bf16.msra.mxu0 0
    %3704 = vmatpush.bf16.msra.mxu0 0
    %3705 = vmatpush.bf16.msra.mxu0 0
    %3706 = vmatpush.bf16.msra.mxu0 0
    %3707 = vmatpush.bf16.msra.mxu0 0
    %3708 = vmatpush.bf16.msra.mxu0 %v3699
    %3709 = vmatmul.bf16.gmra.mxu0 %v3696
    %v3710 = vpop.f32.mrf.mxu0
    %v3711 = vadd.f32 0.0, %v3710
    %v3712 = vpop.f32.mrf.mxu0
    %3713 = vdwg.mxu0
    %v3715 = vsel %vm1027, %v3694, 0
    %v3718 = vsel %vm1081, %v3618, 0
    %3720 = vmatpush.bf16.msra.mxu0 0
    %3721 = vmatpush.bf16.msra.mxu0 0
    %3722 = vmatpush.bf16.msra.mxu0 0
    %3723 = vmatpush.bf16.msra.mxu0 0
    %3724 = vmatpush.bf16.msra.mxu0 0
    %3725 = vmatpush.bf16.msra.mxu0 0
    %3726 = vmatpush.bf16.msra.mxu0 0
    %3727 = vmatpush.bf16.msra.mxu0 %v3718
    %3728 = vmatmul.bf16.gmra.mxu0 %v3715
    %v3729 = vpop.f32.mrf.mxu0
    %v3730 = vadd.f32 0.0, %v3729
    %v3731 = vpop.f32.mrf.mxu0
    %3732 = vdwg.mxu0
    %v3733 = vpack.c.bf16 %v3610, %v3591
    %v3734 = vpack.c.bf16 %v3730, %v3711
    %s3735 = scalar_lea.vmem [#allocation5], 256
    %v3736 = vld [vmem:[%s3735] sm:$0xff]
    %v3737 = vld [vmem:[%s3735 + $0x8] sm:$0xff]
    %v3738 = vld [vmem:[%s3735 + $0x10] sm:$0xff]
    %v3739 = vld [vmem:[%s3735 + $0x18] sm:$0xff]
    %v3740 = vld [vmem:[%s3735 + $0x20] sm:$0xff]
    %v3741 = vld [vmem:[%s3735 + $0x28] sm:$0xff]
    %v3742 = vld [vmem:[%s3735 + $0x30] sm:$0xff]
    %v3743 = vld [vmem:[%s3735 + $0x38] sm:$0xff]
    %v3744 = vld [vmem:[%s3735 + $0x40] sm:$0xff]
    %v3745 = vld [vmem:[%s3735 + $0x48] sm:$0xff]
    %v3746 = vld [vmem:[%s3735 + $0x50] sm:$0xff]
    %v3747 = vld [vmem:[%s3735 + $0x58] sm:$0xff]
    %v3748 = vld [vmem:[%s3735 + $0x60] sm:$0xff]
    %v3749 = vld [vmem:[%s3735 + $0x68] sm:$0xff]
    %v3750 = vld [vmem:[%s3735 + $0x70] sm:$0xff]
    %v3751 = vld [vmem:[%s3735 + $0x78] sm:$0xff]
    %v3752 = vld [vmem:[%s3735 + $0x80] sm:$0xff]
    %v3753 = vld [vmem:[%s3735 + $0x88] sm:$0xff]
    %v3754 = vld [vmem:[%s3735 + $0x90] sm:$0xff]
    %v3755 = vld [vmem:[%s3735 + $0x98] sm:$0xff]
    %v3756 = vld [vmem:[%s3735 + $0xa0] sm:$0xff]
    %v3757 = vld [vmem:[%s3735 + $0xa8] sm:$0xff]
    %v3758 = vld [vmem:[%s3735 + $0xb0] sm:$0xff]
    %v3759 = vld [vmem:[%s3735 + $0xb8] sm:$0xff]
    %v3760 = vld [vmem:[%s3735 + $0xc0] sm:$0xff]
    %v3761 = vld [vmem:[%s3735 + $0xc8] sm:$0xff]
    %v3762 = vld [vmem:[%s3735 + $0xd0] sm:$0xff]
    %v3763 = vld [vmem:[%s3735 + $0xd8] sm:$0xff]
    %v3764 = vld [vmem:[%s3735 + $0xe0] sm:$0xff]
    %v3765 = vld [vmem:[%s3735 + $0xe8] sm:$0xff]
    %v3766 = vld [vmem:[%s3735 + $0xf0] sm:$0xff]
    %v3767 = vld [vmem:[%s3735 + $0xf8] sm:$0xff]
    %s3768 = scalar_lea.vmem %s7, 2
    %v3769 = vld [vmem:[%s3768] sm:$0x3]
    %v3771 = vperm.slane %v3769, 0
    %v3772 = vperm.slane %v3769, 1
    %v3807 = vunpack.c.l.b16 %v3736
    %v3808 = vunpack.c.h.b16 %v3736
    %v3809 = vunpack.c.l.b16 %v3737
    %v3810 = vunpack.c.h.b16 %v3737
    %v3811 = vunpack.c.l.b16 %v3738
    %v3812 = vunpack.c.h.b16 %v3738
    %v3813 = vunpack.c.l.b16 %v3739
    %v3814 = vunpack.c.h.b16 %v3739
    %v3815 = vunpack.c.l.b16 %v3740
    %v3816 = vunpack.c.h.b16 %v3740
    %v3817 = vunpack.c.l.b16 %v3741
    %v3818 = vunpack.c.h.b16 %v3741
    %v3819 = vunpack.c.l.b16 %v3742
    %v3820 = vunpack.c.h.b16 %v3742
    %v3821 = vunpack.c.l.b16 %v3743
    %v3822 = vunpack.c.h.b16 %v3743
    %v3823 = vunpack.c.l.b16 %v3744
    %v3824 = vunpack.c.h.b16 %v3744
    %v3825 = vunpack.c.l.b16 %v3745
    %v3826 = vunpack.c.h.b16 %v3745
    %v3827 = vunpack.c.l.b16 %v3746
    %v3828 = vunpack.c.h.b16 %v3746
    %v3829 = vunpack.c.l.b16 %v3747
    %v3830 = vunpack.c.h.b16 %v3747
    %v3831 = vunpack.c.l.b16 %v3748
    %v3832 = vunpack.c.h.b16 %v3748
    %v3833 = vunpack.c.l.b16 %v3749
    %v3834 = vunpack.c.h.b16 %v3749
    %v3835 = vunpack.c.l.b16 %v3750
    %v3836 = vunpack.c.h.b16 %v3750
    %v3837 = vunpack.c.l.b16 %v3751
    %v3838 = vunpack.c.h.b16 %v3751
    %v3839 = vunpack.c.l.b16 %v3752
    %v3840 = vunpack.c.h.b16 %v3752
    %v3841 = vunpack.c.l.b16 %v3753
    %v3842 = vunpack.c.h.b16 %v3753
    %v3843 = vunpack.c.l.b16 %v3754
    %v3844 = vunpack.c.h.b16 %v3754
    %v3845 = vunpack.c.l.b16 %v3755
    %v3846 = vunpack.c.h.b16 %v3755
    %v3847 = vunpack.c.l.b16 %v3756
    %v3848 = vunpack.c.h.b16 %v3756
    %v3849 = vunpack.c.l.b16 %v3757
    %v3850 = vunpack.c.h.b16 %v3757
    %v3851 = vunpack.c.l.b16 %v3758
    %v3852 = vunpack.c.h.b16 %v3758
    %v3853 = vunpack.c.l.b16 %v3759
    %v3854 = vunpack.c.h.b16 %v3759
    %v3855 = vunpack.c.l.b16 %v3760
    %v3856 = vunpack.c.h.b16 %v3760
    %v3857 = vunpack.c.l.b16 %v3761
    %v3858 = vunpack.c.h.b16 %v3761
    %v3859 = vunpack.c.l.b16 %v3762
    %v3860 = vunpack.c.h.b16 %v3762
    %v3861 = vunpack.c.l.b16 %v3763
    %v3862 = vunpack.c.h.b16 %v3763
    %v3863 = vunpack.c.l.b16 %v3764
    %v3864 = vunpack.c.h.b16 %v3764
    %v3865 = vunpack.c.l.b16 %v3765
    %v3866 = vunpack.c.h.b16 %v3765
    %v3867 = vunpack.c.l.b16 %v3766
    %v3868 = vunpack.c.h.b16 %v3766
    %v3869 = vunpack.c.l.b16 %v3767
    %v3870 = vunpack.c.h.b16 %v3767
    %v3871 = vpack.c.b16 %v3809, %v3807
    %v3872 = vpack.c.b16 %v3810, %v3808
    %v3873 = vpack.c.b16 %v3813, %v3811
    %v3874 = vpack.c.b16 %v3814, %v3812
    %v3875 = vpack.c.b16 %v3817, %v3815
    %v3876 = vpack.c.b16 %v3818, %v3816
    %v3877 = vpack.c.b16 %v3821, %v3819
    %v3878 = vpack.c.b16 %v3822, %v3820
    %v3879 = vpack.c.b16 %v3825, %v3823
    %v3880 = vpack.c.b16 %v3826, %v3824
    %v3881 = vpack.c.b16 %v3829, %v3827
    %v3882 = vpack.c.b16 %v3830, %v3828
    %v3883 = vpack.c.b16 %v3833, %v3831
    %v3884 = vpack.c.b16 %v3834, %v3832
    %v3885 = vpack.c.b16 %v3837, %v3835
    %v3886 = vpack.c.b16 %v3838, %v3836
    %v3887 = vpack.c.b16 %v3841, %v3839
    %v3888 = vpack.c.b16 %v3842, %v3840
    %v3889 = vpack.c.b16 %v3845, %v3843
    %v3890 = vpack.c.b16 %v3846, %v3844
    %v3891 = vpack.c.b16 %v3849, %v3847
    %v3892 = vpack.c.b16 %v3850, %v3848
    %v3893 = vpack.c.b16 %v3853, %v3851
    %v3894 = vpack.c.b16 %v3854, %v3852
    %v3895 = vpack.c.b16 %v3857, %v3855
    %v3896 = vpack.c.b16 %v3858, %v3856
    %v3897 = vpack.c.b16 %v3861, %v3859
    %v3898 = vpack.c.b16 %v3862, %v3860
    %v3899 = vpack.c.b16 %v3865, %v3863
    %v3900 = vpack.c.b16 %v3866, %v3864
    %v3901 = vpack.c.b16 %v3869, %v3867
    %v3902 = vpack.c.b16 %v3870, %v3868
    %3935 = vmatpush.bf16.msra.mxu0 %v3885
    %3936 = vmatpush.bf16.msra.mxu0 %v3883
    %3937 = vmatpush.bf16.msra.mxu0 %v3881
    %3938 = vmatpush.bf16.msra.mxu0 %v3879
    %3939 = vmatpush.bf16.msra.mxu0 %v3877
    %3940 = vmatpush.bf16.msra.mxu0 %v3875
    %3941 = vmatpush.bf16.msra.mxu0 %v3873
    %3942 = vmatpush.bf16.msra.mxu0 %v3871
    %3943 = vmatmul.bf16.gmra.mxu0 %v3733
    %v3944 = vpop.f32.mrf.mxu0
    %v3945 = vadd.f32 %v3771, %v3944
    %v3946 = vpop.f32.mrf.mxu0
    %v3947 = vadd.f32 %v3771, %v3946
    %3948 = vdwg.mxu0
    %3949 = vmatpush.bf16.msra.mxu0 %v3901
    %3950 = vmatpush.bf16.msra.mxu0 %v3899
    %3951 = vmatpush.bf16.msra.mxu0 %v3897
    %3952 = vmatpush.bf16.msra.mxu0 %v3895
    %3953 = vmatpush.bf16.msra.mxu0 %v3893
    %3954 = vmatpush.bf16.msra.mxu0 %v3891
    %3955 = vmatpush.bf16.msra.mxu0 %v3889
    %3956 = vmatpush.bf16.msra.mxu0 %v3887
    %3957 = vmatmul.bf16.gmra.mxu0 %v3734
    %v3958 = vpop.f32.mrf.mxu0
    %v3959 = vadd.f32 %v3945, %v3958
    %v3960 = vpop.f32.mrf.mxu0
    %v3961 = vadd.f32 %v3947, %v3960
    %3962 = vdwg.mxu0
    %3963 = vmatpush.bf16.msra.mxu0 %v3886
    %3964 = vmatpush.bf16.msra.mxu0 %v3884
    %3965 = vmatpush.bf16.msra.mxu0 %v3882
    %3966 = vmatpush.bf16.msra.mxu0 %v3880
    %3967 = vmatpush.bf16.msra.mxu0 %v3878
    %3968 = vmatpush.bf16.msra.mxu0 %v3876
    %3969 = vmatpush.bf16.msra.mxu0 %v3874
    %3970 = vmatpush.bf16.msra.mxu0 %v3872
    %3971 = vmatmul.bf16.gmra.mxu0 %v3733
    %v3972 = vpop.f32.mrf.mxu0
    %v3973 = vadd.f32 %v3772, %v3972
    %v3974 = vpop.f32.mrf.mxu0
    %v3975 = vadd.f32 %v3772, %v3974
    %3976 = vdwg.mxu0
    %3977 = vmatpush.bf16.msra.mxu0 %v3902
    %3978 = vmatpush.bf16.msra.mxu0 %v3900
    %3979 = vmatpush.bf16.msra.mxu0 %v3898
    %3980 = vmatpush.bf16.msra.mxu0 %v3896
    %3981 = vmatpush.bf16.msra.mxu0 %v3894
    %3982 = vmatpush.bf16.msra.mxu0 %v3892
    %3983 = vmatpush.bf16.msra.mxu0 %v3890
    %3984 = vmatpush.bf16.msra.mxu0 %v3888
    %3985 = vmatmul.bf16.gmra.mxu0 %v3734
    %v3986 = vpop.f32.mrf.mxu0
    %v3987 = vadd.f32 %v3973, %v3986
    %v3988 = vpop.f32.mrf.mxu0
    %v3989 = vadd.f32 %v3975, %v3988
    %3990 = vdwg.mxu0
    %v3991 = vadd.f32 %v3959, %v2723
    %v3992 = vadd.f32 %v3987, %v2724
    %v3993 = vadd.f32 %v3961, %v2725
    %v3994 = vadd.f32 %v3989, %v2726
    %s3995 = scalar_lea.vmem %s8, 2
    %v3996 = vld [vmem:[%s3995] sm:$0x3]
    %s3997 = scalar_lea.vmem %s9, 2
    %v3998 = vld [vmem:[%s3997] sm:$0x3]
    %v3999 = vadd.f32 %v3991, %v3992
    %4000 = vadd.xlane.f32.xlu0 %v3999
    %v4001 = vpop.xlane.xlu0 %4000
    %v4002 = vadd.f32 %v3993, %v3994
    %4003 = vadd.xlane.f32.xlu0 %v4002
    %v4004 = vpop.xlane.xlu0 %4003
    %v4005 = vmul.f32 %v4001, %v160
    %v4006 = vmul.f32 %v4004, %v160
    %v4007 = vsub.f32 %v3991, %v4005
    %v4008 = vsub.f32 %v3992, %v4005
    %v4009 = vsub.f32 %v3993, %v4006
    %v4010 = vsub.f32 %v3994, %v4006
    %v4011 = vmul.f32 %v4007, %v4007
    %v4012 = vmul.f32 %v4008, %v4008
    %v4013 = vmul.f32 %v4009, %v4009
    %v4014 = vmul.f32 %v4010, %v4010
    %v4015 = vadd.f32 %v4011, %v4012
    %4016 = vadd.xlane.f32.xlu0 %v4015
    %v4017 = vpop.xlane.xlu0 %4016
    %v4018 = vadd.f32 %v4013, %v4014
    %4019 = vadd.xlane.f32.xlu0 %v4018
    %v4020 = vpop.xlane.xlu0 %4019
    %v4021 = vmul.f32 %v4017, %v160
    %v4022 = vmul.f32 %v4020, %v160
    %v4023 = vadd.f32 %v4021, 1e-12
    %v4024 = vadd.f32 %v4022, 1e-12
    %v4025 = vrsqrt.pop %v4023
    %v4026 = vmul.f32 %v4025, %v4023
    %v4027 = vmul.f32 %v4026, %v4025
    %v4028 = vmul.f32 0.5, %v4027
    %v4029 = vsub.f32 1.5, %v4028
    %v4030 = vmul.f32 %v4025, %v4029
    %vm4031 = vweird.f32 %v4023
    %vm4032 = vweird.f32 %v4025
    %vm4033 = vmor %vm4031, %vm4032
    %v4034 = vsel %vm4033, %v4025, %v4030
    %v4035 = vrsqrt.pop %v4024
    %v4036 = vmul.f32 %v4035, %v4024
    %v4037 = vmul.f32 %v4036, %v4035
    %v4038 = vmul.f32 0.5, %v4037
    %v4039 = vsub.f32 1.5, %v4038
    %v4040 = vmul.f32 %v4035, %v4039
    %vm4041 = vweird.f32 %v4024
    %vm4042 = vweird.f32 %v4035
    %vm4043 = vmor %vm4041, %vm4042
    %v4044 = vsel %vm4043, %v4035, %v4040
    %v4045 = vmul.f32 %v4007, %v4034
    %v4046 = vmul.f32 %v4008, %v4034
    %v4047 = vmul.f32 %v4009, %v4044
    %v4048 = vmul.f32 %v4010, %v4044
    %v4050 = vperm.slane %v3996, 0
    %v4051 = vperm.slane %v3996, 1
    %v4054 = vmul.f32 %v4045, %v4050
    %v4055 = vmul.f32 %v4046, %v4051
    %v4056 = vmul.f32 %v4047, %v4050
    %v4057 = vmul.f32 %v4048, %v4051
    %v4059 = vperm.slane %v3998, 0
    %v4060 = vperm.slane %v3998, 1
    %v4063 = vadd.f32 %v4054, %v4059
    %v4064 = vadd.f32 %v4055, %v4060
    %v4065 = vadd.f32 %v4056, %v4059
    %v4066 = vadd.f32 %v4057, %v4060
    %v4067 = vpack.c.bf16 %v4065, %v4063
    %v4068 = vpack.c.bf16 %v4066, %v4064
    %s4069 = scalar_lea.vmem [#allocation7], 512
    %v4070 = vld [vmem:[%s4069] sm:$0xff]
    %v4071 = vld [vmem:[%s4069 + $0x8] sm:$0xff]
    %v4072 = vld [vmem:[%s4069 + $0x10] sm:$0xff]
    %v4073 = vld [vmem:[%s4069 + $0x18] sm:$0xff]
    %v4074 = vld [vmem:[%s4069 + $0x20] sm:$0xff]
    %v4075 = vld [vmem:[%s4069 + $0x28] sm:$0xff]
    %v4076 = vld [vmem:[%s4069 + $0x30] sm:$0xff]
    %v4077 = vld [vmem:[%s4069 + $0x38] sm:$0xff]
    %v4078 = vld [vmem:[%s4069 + $0x40] sm:$0xff]
    %v4079 = vld [vmem:[%s4069 + $0x48] sm:$0xff]
    %v4080 = vld [vmem:[%s4069 + $0x50] sm:$0xff]
    %v4081 = vld [vmem:[%s4069 + $0x58] sm:$0xff]
    %v4082 = vld [vmem:[%s4069 + $0x60] sm:$0xff]
    %v4083 = vld [vmem:[%s4069 + $0x68] sm:$0xff]
    %v4084 = vld [vmem:[%s4069 + $0x70] sm:$0xff]
    %v4085 = vld [vmem:[%s4069 + $0x78] sm:$0xff]
    %v4086 = vld [vmem:[%s4069 + $0x80] sm:$0xff]
    %v4087 = vld [vmem:[%s4069 + $0x88] sm:$0xff]
    %v4088 = vld [vmem:[%s4069 + $0x90] sm:$0xff]
    %v4089 = vld [vmem:[%s4069 + $0x98] sm:$0xff]
    %v4090 = vld [vmem:[%s4069 + $0xa0] sm:$0xff]
    %v4091 = vld [vmem:[%s4069 + $0xa8] sm:$0xff]
    %v4092 = vld [vmem:[%s4069 + $0xb0] sm:$0xff]
    %v4093 = vld [vmem:[%s4069 + $0xb8] sm:$0xff]
    %v4094 = vld [vmem:[%s4069 + $0xc0] sm:$0xff]
    %v4095 = vld [vmem:[%s4069 + $0xc8] sm:$0xff]
    %v4096 = vld [vmem:[%s4069 + $0xd0] sm:$0xff]
    %v4097 = vld [vmem:[%s4069 + $0xd8] sm:$0xff]
    %v4098 = vld [vmem:[%s4069 + $0xe0] sm:$0xff]
    %v4099 = vld [vmem:[%s4069 + $0xe8] sm:$0xff]
    %v4100 = vld [vmem:[%s4069 + $0xf0] sm:$0xff]
    %v4101 = vld [vmem:[%s4069 + $0xf8] sm:$0xff]
    %v4102 = vld [vmem:[%s4069 + $0x100] sm:$0xff]
    %v4103 = vld [vmem:[%s4069 + $0x108] sm:$0xff]
    %v4104 = vld [vmem:[%s4069 + $0x110] sm:$0xff]
    %v4105 = vld [vmem:[%s4069 + $0x118] sm:$0xff]
    %v4106 = vld [vmem:[%s4069 + $0x120] sm:$0xff]
    %v4107 = vld [vmem:[%s4069 + $0x128] sm:$0xff]
    %v4108 = vld [vmem:[%s4069 + $0x130] sm:$0xff]
    %v4109 = vld [vmem:[%s4069 + $0x138] sm:$0xff]
    %v4110 = vld [vmem:[%s4069 + $0x140] sm:$0xff]
    %v4111 = vld [vmem:[%s4069 + $0x148] sm:$0xff]
    %v4112 = vld [vmem:[%s4069 + $0x150] sm:$0xff]
    %v4113 = vld [vmem:[%s4069 + $0x158] sm:$0xff]
    %v4114 = vld [vmem:[%s4069 + $0x160] sm:$0xff]
    %v4115 = vld [vmem:[%s4069 + $0x168] sm:$0xff]
    %v4116 = vld [vmem:[%s4069 + $0x170] sm:$0xff]
    %v4117 = vld [vmem:[%s4069 + $0x178] sm:$0xff]
    %v4118 = vld [vmem:[%s4069 + $0x180] sm:$0xff]
    %v4119 = vld [vmem:[%s4069 + $0x188] sm:$0xff]
    %v4120 = vld [vmem:[%s4069 + $0x190] sm:$0xff]
    %v4121 = vld [vmem:[%s4069 + $0x198] sm:$0xff]
    %v4122 = vld [vmem:[%s4069 + $0x1a0] sm:$0xff]
    %v4123 = vld [vmem:[%s4069 + $0x1a8] sm:$0xff]
    %v4124 = vld [vmem:[%s4069 + $0x1b0] sm:$0xff]
    %v4125 = vld [vmem:[%s4069 + $0x1b8] sm:$0xff]
    %v4126 = vld [vmem:[%s4069 + $0x1c0] sm:$0xff]
    %v4127 = vld [vmem:[%s4069 + $0x1c8] sm:$0xff]
    %v4128 = vld [vmem:[%s4069 + $0x1d0] sm:$0xff]
    %v4129 = vld [vmem:[%s4069 + $0x1d8] sm:$0xff]
    %v4130 = vld [vmem:[%s4069 + $0x1e0] sm:$0xff]
    %v4131 = vld [vmem:[%s4069 + $0x1e8] sm:$0xff]
    %v4132 = vld [vmem:[%s4069 + $0x1f0] sm:$0xff]
    %v4133 = vld [vmem:[%s4069 + $0x1f8] sm:$0xff]
    %s4134 = scalar_lea.vmem %s11, 4
    %v4135 = vld [vmem:[%s4134] sm:$0xf]
    %v4137 = vperm.slane %v4135, 0
    %v4138 = vperm.slane %v4135, 1
    %v4139 = vperm.slane %v4135, 2
    %v4140 = vperm.slane %v4135, 3
    %v4209 = vunpack.c.l.b16 %v4070
    %v4210 = vunpack.c.h.b16 %v4070
    %v4211 = vunpack.c.l.b16 %v4071
    %v4212 = vunpack.c.h.b16 %v4071
    %v4213 = vunpack.c.l.b16 %v4072
    %v4214 = vunpack.c.h.b16 %v4072
    %v4215 = vunpack.c.l.b16 %v4073
    %v4216 = vunpack.c.h.b16 %v4073
    %v4217 = vunpack.c.l.b16 %v4074
    %v4218 = vunpack.c.h.b16 %v4074
    %v4219 = vunpack.c.l.b16 %v4075
    %v4220 = vunpack.c.h.b16 %v4075
    %v4221 = vunpack.c.l.b16 %v4076
    %v4222 = vunpack.c.h.b16 %v4076
    %v4223 = vunpack.c.l.b16 %v4077
    %v4224 = vunpack.c.h.b16 %v4077
    %v4225 = vunpack.c.l.b16 %v4078
    %v4226 = vunpack.c.h.b16 %v4078
    %v4227 = vunpack.c.l.b16 %v4079
    %v4228 = vunpack.c.h.b16 %v4079
    %v4229 = vunpack.c.l.b16 %v4080
    %v4230 = vunpack.c.h.b16 %v4080
    %v4231 = vunpack.c.l.b16 %v4081
    %v4232 = vunpack.c.h.b16 %v4081
    %v4233 = vunpack.c.l.b16 %v4082
    %v4234 = vunpack.c.h.b16 %v4082
    %v4235 = vunpack.c.l.b16 %v4083
    %v4236 = vunpack.c.h.b16 %v4083
    %v4237 = vunpack.c.l.b16 %v4084
    %v4238 = vunpack.c.h.b16 %v4084
    %v4239 = vunpack.c.l.b16 %v4085
    %v4240 = vunpack.c.h.b16 %v4085
    %v4241 = vunpack.c.l.b16 %v4086
    %v4242 = vunpack.c.h.b16 %v4086
    %v4243 = vunpack.c.l.b16 %v4087
    %v4244 = vunpack.c.h.b16 %v4087
    %v4245 = vunpack.c.l.b16 %v4088
    %v4246 = vunpack.c.h.b16 %v4088
    %v4247 = vunpack.c.l.b16 %v4089
    %v4248 = vunpack.c.h.b16 %v4089
    %v4249 = vunpack.c.l.b16 %v4090
    %v4250 = vunpack.c.h.b16 %v4090
    %v4251 = vunpack.c.l.b16 %v4091
    %v4252 = vunpack.c.h.b16 %v4091
    %v4253 = vunpack.c.l.b16 %v4092
    %v4254 = vunpack.c.h.b16 %v4092
    %v4255 = vunpack.c.l.b16 %v4093
    %v4256 = vunpack.c.h.b16 %v4093
    %v4257 = vunpack.c.l.b16 %v4094
    %v4258 = vunpack.c.h.b16 %v4094
    %v4259 = vunpack.c.l.b16 %v4095
    %v4260 = vunpack.c.h.b16 %v4095
    %v4261 = vunpack.c.l.b16 %v4096
    %v4262 = vunpack.c.h.b16 %v4096
    %v4263 = vunpack.c.l.b16 %v4097
    %v4264 = vunpack.c.h.b16 %v4097
    %v4265 = vunpack.c.l.b16 %v4098
    %v4266 = vunpack.c.h.b16 %v4098
    %v4267 = vunpack.c.l.b16 %v4099
    %v4268 = vunpack.c.h.b16 %v4099
    %v4269 = vunpack.c.l.b16 %v4100
    %v4270 = vunpack.c.h.b16 %v4100
    %v4271 = vunpack.c.l.b16 %v4101
    %v4272 = vunpack.c.h.b16 %v4101
    %v4273 = vunpack.c.l.b16 %v4102
    %v4274 = vunpack.c.h.b16 %v4102
    %v4275 = vunpack.c.l.b16 %v4103
    %v4276 = vunpack.c.h.b16 %v4103
    %v4277 = vunpack.c.l.b16 %v4104
    %v4278 = vunpack.c.h.b16 %v4104
    %v4279 = vunpack.c.l.b16 %v4105
    %v4280 = vunpack.c.h.b16 %v4105
    %v4281 = vunpack.c.l.b16 %v4106
    %v4282 = vunpack.c.h.b16 %v4106
    %v4283 = vunpack.c.l.b16 %v4107
    %v4284 = vunpack.c.h.b16 %v4107
    %v4285 = vunpack.c.l.b16 %v4108
    %v4286 = vunpack.c.h.b16 %v4108
    %v4287 = vunpack.c.l.b16 %v4109
    %v4288 = vunpack.c.h.b16 %v4109
    %v4289 = vunpack.c.l.b16 %v4110
    %v4290 = vunpack.c.h.b16 %v4110
    %v4291 = vunpack.c.l.b16 %v4111
    %v4292 = vunpack.c.h.b16 %v4111
    %v4293 = vunpack.c.l.b16 %v4112
    %v4294 = vunpack.c.h.b16 %v4112
    %v4295 = vunpack.c.l.b16 %v4113
    %v4296 = vunpack.c.h.b16 %v4113
    %v4297 = vunpack.c.l.b16 %v4114
    %v4298 = vunpack.c.h.b16 %v4114
    %v4299 = vunpack.c.l.b16 %v4115
    %v4300 = vunpack.c.h.b16 %v4115
    %v4301 = vunpack.c.l.b16 %v4116
    %v4302 = vunpack.c.h.b16 %v4116
    %v4303 = vunpack.c.l.b16 %v4117
    %v4304 = vunpack.c.h.b16 %v4117
    %v4305 = vunpack.c.l.b16 %v4118
    %v4306 = vunpack.c.h.b16 %v4118
    %v4307 = vunpack.c.l.b16 %v4119
    %v4308 = vunpack.c.h.b16 %v4119
    %v4309 = vunpack.c.l.b16 %v4120
    %v4310 = vunpack.c.h.b16 %v4120
    %v4311 = vunpack.c.l.b16 %v4121
    %v4312 = vunpack.c.h.b16 %v4121
    %v4313 = vunpack.c.l.b16 %v4122
    %v4314 = vunpack.c.h.b16 %v4122
    %v4315 = vunpack.c.l.b16 %v4123
    %v4316 = vunpack.c.h.b16 %v4123
    %v4317 = vunpack.c.l.b16 %v4124
    %v4318 = vunpack.c.h.b16 %v4124
    %v4319 = vunpack.c.l.b16 %v4125
    %v4320 = vunpack.c.h.b16 %v4125
    %v4321 = vunpack.c.l.b16 %v4126
    %v4322 = vunpack.c.h.b16 %v4126
    %v4323 = vunpack.c.l.b16 %v4127
    %v4324 = vunpack.c.h.b16 %v4127
    %v4325 = vunpack.c.l.b16 %v4128
    %v4326 = vunpack.c.h.b16 %v4128
    %v4327 = vunpack.c.l.b16 %v4129
    %v4328 = vunpack.c.h.b16 %v4129
    %v4329 = vunpack.c.l.b16 %v4130
    %v4330 = vunpack.c.h.b16 %v4130
    %v4331 = vunpack.c.l.b16 %v4131
    %v4332 = vunpack.c.h.b16 %v4131
    %v4333 = vunpack.c.l.b16 %v4132
    %v4334 = vunpack.c.h.b16 %v4132
    %v4335 = vunpack.c.l.b16 %v4133
    %v4336 = vunpack.c.h.b16 %v4133
    %v4337 = vpack.c.b16 %v4213, %v4209
    %v4338 = vpack.c.b16 %v4214, %v4210
    %v4339 = vpack.c.b16 %v4215, %v4211
    %v4340 = vpack.c.b16 %v4216, %v4212
    %v4341 = vpack.c.b16 %v4221, %v4217
    %v4342 = vpack.c.b16 %v4222, %v4218
    %v4343 = vpack.c.b16 %v4223, %v4219
    %v4344 = vpack.c.b16 %v4224, %v4220
    %v4345 = vpack.c.b16 %v4229, %v4225
    %v4346 = vpack.c.b16 %v4230, %v4226
    %v4347 = vpack.c.b16 %v4231, %v4227
    %v4348 = vpack.c.b16 %v4232, %v4228
    %v4349 = vpack.c.b16 %v4237, %v4233
    %v4350 = vpack.c.b16 %v4238, %v4234
    %v4351 = vpack.c.b16 %v4239, %v4235
    %v4352 = vpack.c.b16 %v4240, %v4236
    %v4353 = vpack.c.b16 %v4245, %v4241
    %v4354 = vpack.c.b16 %v4246, %v4242
    %v4355 = vpack.c.b16 %v4247, %v4243
    %v4356 = vpack.c.b16 %v4248, %v4244
    %v4357 = vpack.c.b16 %v4253, %v4249
    %v4358 = vpack.c.b16 %v4254, %v4250
    %v4359 = vpack.c.b16 %v4255, %v4251
    %v4360 = vpack.c.b16 %v4256, %v4252
    %v4361 = vpack.c.b16 %v4261, %v4257
    %v4362 = vpack.c.b16 %v4262, %v4258
    %v4363 = vpack.c.b16 %v4263, %v4259
    %v4364 = vpack.c.b16 %v4264, %v4260
    %v4365 = vpack.c.b16 %v4269, %v4265
    %v4366 = vpack.c.b16 %v4270, %v4266
    %v4367 = vpack.c.b16 %v4271, %v4267
    %v4368 = vpack.c.b16 %v4272, %v4268
    %v4369 = vpack.c.b16 %v4277, %v4273
    %v4370 = vpack.c.b16 %v4278, %v4274
    %v4371 = vpack.c.b16 %v4279, %v4275
    %v4372 = vpack.c.b16 %v4280, %v4276
    %v4373 = vpack.c.b16 %v4285, %v4281
    %v4374 = vpack.c.b16 %v4286, %v4282
    %v4375 = vpack.c.b16 %v4287, %v4283
    %v4376 = vpack.c.b16 %v4288, %v4284
    %v4377 = vpack.c.b16 %v4293, %v4289
    %v4378 = vpack.c.b16 %v4294, %v4290
    %v4379 = vpack.c.b16 %v4295, %v4291
    %v4380 = vpack.c.b16 %v4296, %v4292
    %v4381 = vpack.c.b16 %v4301, %v4297
    %v4382 = vpack.c.b16 %v4302, %v4298
    %v4383 = vpack.c.b16 %v4303, %v4299
    %v4384 = vpack.c.b16 %v4304, %v4300
    %v4385 = vpack.c.b16 %v4309, %v4305
    %v4386 = vpack.c.b16 %v4310, %v4306
    %v4387 = vpack.c.b16 %v4311, %v4307
    %v4388 = vpack.c.b16 %v4312, %v4308
    %v4389 = vpack.c.b16 %v4317, %v4313
    %v4390 = vpack.c.b16 %v4318, %v4314
    %v4391 = vpack.c.b16 %v4319, %v4315
    %v4392 = vpack.c.b16 %v4320, %v4316
    %v4393 = vpack.c.b16 %v4325, %v4321
    %v4394 = vpack.c.b16 %v4326, %v4322
    %v4395 = vpack.c.b16 %v4327, %v4323
    %v4396 = vpack.c.b16 %v4328, %v4324
    %v4397 = vpack.c.b16 %v4333, %v4329
    %v4398 = vpack.c.b16 %v4334, %v4330
    %v4399 = vpack.c.b16 %v4335, %v4331
    %v4400 = vpack.c.b16 %v4336, %v4332
    %4465 = vmatpush.bf16.msra.mxu0 %v4365
    %4466 = vmatpush.bf16.msra.mxu0 %v4361
    %4467 = vmatpush.bf16.msra.mxu0 %v4357
    %4468 = vmatpush.bf16.msra.mxu0 %v4353
    %4469 = vmatpush.bf16.msra.mxu0 %v4349
    %4470 = vmatpush.bf16.msra.mxu0 %v4345
    %4471 = vmatpush.bf16.msra.mxu0 %v4341
    %4472 = vmatpush.bf16.msra.mxu0 %v4337
    %4473 = vmatmul.bf16.gmra.mxu0 %v4067
    %v4474 = vpop.f32.mrf.mxu0
    %v4475 = vadd.f32 %v4137, %v4474
    %v4476 = vpop.f32.mrf.mxu0
    %v4477 = vadd.f32 %v4137, %v4476
    %4478 = vdwg.mxu0
    %4479 = vmatpush.bf16.msra.mxu0 %v4397
    %4480 = vmatpush.bf16.msra.mxu0 %v4393
    %4481 = vmatpush.bf16.msra.mxu0 %v4389
    %4482 = vmatpush.bf16.msra.mxu0 %v4385
    %4483 = vmatpush.bf16.msra.mxu0 %v4381
    %4484 = vmatpush.bf16.msra.mxu0 %v4377
    %4485 = vmatpush.bf16.msra.mxu0 %v4373
    %4486 = vmatpush.bf16.msra.mxu0 %v4369
    %4487 = vmatmul.bf16.gmra.mxu0 %v4068
    %v4488 = vpop.f32.mrf.mxu0
    %v4489 = vadd.f32 %v4475, %v4488
    %v4490 = vpop.f32.mrf.mxu0
    %v4491 = vadd.f32 %v4477, %v4490
    %4492 = vdwg.mxu0
    %4493 = vmatpush.bf16.msra.mxu0 %v4366
    %4494 = vmatpush.bf16.msra.mxu0 %v4362
    %4495 = vmatpush.bf16.msra.mxu0 %v4358
    %4496 = vmatpush.bf16.msra.mxu0 %v4354
    %4497 = vmatpush.bf16.msra.mxu0 %v4350
    %4498 = vmatpush.bf16.msra.mxu0 %v4346
    %4499 = vmatpush.bf16.msra.mxu0 %v4342
    %4500 = vmatpush.bf16.msra.mxu0 %v4338
    %4501 = vmatmul.bf16.gmra.mxu0 %v4067
    %v4502 = vpop.f32.mrf.mxu0
    %v4503 = vadd.f32 %v4138, %v4502
    %v4504 = vpop.f32.mrf.mxu0
    %v4505 = vadd.f32 %v4138, %v4504
    %4506 = vdwg.mxu0
    %4507 = vmatpush.bf16.msra.mxu0 %v4398
    %4508 = vmatpush.bf16.msra.mxu0 %v4394
    %4509 = vmatpush.bf16.msra.mxu0 %v4390
    %4510 = vmatpush.bf16.msra.mxu0 %v4386
    %4511 = vmatpush.bf16.msra.mxu0 %v4382
    %4512 = vmatpush.bf16.msra.mxu0 %v4378
    %4513 = vmatpush.bf16.msra.mxu0 %v4374
    %4514 = vmatpush.bf16.msra.mxu0 %v4370
    %4515 = vmatmul.bf16.gmra.mxu0 %v4068
    %v4516 = vpop.f32.mrf.mxu0
    %v4517 = vadd.f32 %v4503, %v4516
    %v4518 = vpop.f32.mrf.mxu0
    %v4519 = vadd.f32 %v4505, %v4518
    %4520 = vdwg.mxu0
    %4521 = vmatpush.bf16.msra.mxu0 %v4367
    %4522 = vmatpush.bf16.msra.mxu0 %v4363
    %4523 = vmatpush.bf16.msra.mxu0 %v4359
    %4524 = vmatpush.bf16.msra.mxu0 %v4355
    %4525 = vmatpush.bf16.msra.mxu0 %v4351
    %4526 = vmatpush.bf16.msra.mxu0 %v4347
    %4527 = vmatpush.bf16.msra.mxu0 %v4343
    %4528 = vmatpush.bf16.msra.mxu0 %v4339
    %4529 = vmatmul.bf16.gmra.mxu0 %v4067
    %v4530 = vpop.f32.mrf.mxu0
    %v4531 = vadd.f32 %v4139, %v4530
    %v4532 = vpop.f32.mrf.mxu0
    %v4533 = vadd.f32 %v4139, %v4532
    %4534 = vdwg.mxu0
    %4535 = vmatpush.bf16.msra.mxu0 %v4399
    %4536 = vmatpush.bf16.msra.mxu0 %v4395
    %4537 = vmatpush.bf16.msra.mxu0 %v4391
    %4538 = vmatpush.bf16.msra.mxu0 %v4387
    %4539 = vmatpush.bf16.msra.mxu0 %v4383
    %4540 = vmatpush.bf16.msra.mxu0 %v4379
    %4541 = vmatpush.bf16.msra.mxu0 %v4375
    %4542 = vmatpush.bf16.msra.mxu0 %v4371
    %4543 = vmatmul.bf16.gmra.mxu0 %v4068
    %v4544 = vpop.f32.mrf.mxu0
    %v4545 = vadd.f32 %v4531, %v4544
    %v4546 = vpop.f32.mrf.mxu0
    %v4547 = vadd.f32 %v4533, %v4546
    %4548 = vdwg.mxu0
    %4549 = vmatpush.bf16.msra.mxu0 %v4368
    %4550 = vmatpush.bf16.msra.mxu0 %v4364
    %4551 = vmatpush.bf16.msra.mxu0 %v4360
    %4552 = vmatpush.bf16.msra.mxu0 %v4356
    %4553 = vmatpush.bf16.msra.mxu0 %v4352
    %4554 = vmatpush.bf16.msra.mxu0 %v4348
    %4555 = vmatpush.bf16.msra.mxu0 %v4344
    %4556 = vmatpush.bf16.msra.mxu0 %v4340
    %4557 = vmatmul.bf16.gmra.mxu0 %v4067
    %v4558 = vpop.f32.mrf.mxu0
    %v4559 = vadd.f32 %v4140, %v4558
    %v4560 = vpop.f32.mrf.mxu0
    %v4561 = vadd.f32 %v4140, %v4560
    %4562 = vdwg.mxu0
    %4563 = vmatpush.bf16.msra.mxu0 %v4400
    %4564 = vmatpush.bf16.msra.mxu0 %v4396
    %4565 = vmatpush.bf16.msra.mxu0 %v4392
    %4566 = vmatpush.bf16.msra.mxu0 %v4388
    %4567 = vmatpush.bf16.msra.mxu0 %v4384
    %4568 = vmatpush.bf16.msra.mxu0 %v4380
    %4569 = vmatpush.bf16.msra.mxu0 %v4376
    %4570 = vmatpush.bf16.msra.mxu0 %v4372
    %4571 = vmatmul.bf16.gmra.mxu0 %v4068
    %v4572 = vpop.f32.mrf.mxu0
    %v4573 = vadd.f32 %v4559, %v4572
    %v4574 = vpop.f32.mrf.mxu0
    %v4575 = vadd.f32 %v4561, %v4574
    %4576 = vdwg.mxu0
    %v4577 = vmul.f32 %v4489, 0.5
    %v4578 = vmul.f32 %v4517, 0.5
    %v4579 = vmul.f32 %v4545, 0.5
    %v4580 = vmul.f32 %v4573, 0.5
    %v4581 = vmul.f32 %v4491, 0.5
    %v4582 = vmul.f32 %v4519, 0.5
    %v4583 = vmul.f32 %v4547, 0.5
    %v4584 = vmul.f32 %v4575, 0.5
    %v4585 = vmul.f32 %v4489, 0.044715
    %v4586 = vmul.f32 %v4517, 0.044715
    %v4587 = vmul.f32 %v4545, 0.044715
    %v4588 = vmul.f32 %v4573, 0.044715
    %v4589 = vmul.f32 %v4491, 0.044715
    %v4590 = vmul.f32 %v4519, 0.044715
    %v4591 = vmul.f32 %v4547, 0.044715
    %v4592 = vmul.f32 %v4575, 0.044715
    %v4593 = vmul.f32 %v4585, %v4489
    %v4594 = vmul.f32 %v4586, %v4517
    %v4595 = vmul.f32 %v4587, %v4545
    %v4596 = vmul.f32 %v4588, %v4573
    %v4597 = vmul.f32 %v4589, %v4491
    %v4598 = vmul.f32 %v4590, %v4519
    %v4599 = vmul.f32 %v4591, %v4547
    %v4600 = vmul.f32 %v4592, %v4575
    %v4601 = vmul.f32 %v4593, %v4489
    %v4602 = vmul.f32 %v4594, %v4517
    %v4603 = vmul.f32 %v4595, %v4545
    %v4604 = vmul.f32 %v4596, %v4573
    %v4605 = vmul.f32 %v4597, %v4491
    %v4606 = vmul.f32 %v4598, %v4519
    %v4607 = vmul.f32 %v4599, %v4547
    %v4608 = vmul.f32 %v4600, %v4575
    %v4609 = vadd.f32 %v4489, %v4601
    %v4610 = vadd.f32 %v4517, %v4602
    %v4611 = vadd.f32 %v4545, %v4603
    %v4612 = vadd.f32 %v4573, %v4604
    %v4613 = vadd.f32 %v4491, %v4605
    %v4614 = vadd.f32 %v4519, %v4606
    %v4615 = vadd.f32 %v4547, %v4607
    %v4616 = vadd.f32 %v4575, %v4608
    %v4617 = vmul.f32 %v4609, 0.7978846
    %v4618 = vmul.f32 %v4610, 0.7978846
    %v4619 = vmul.f32 %v4611, 0.7978846
    %v4620 = vmul.f32 %v4612, 0.7978846
    %v4621 = vmul.f32 %v4613, 0.7978846
    %v4622 = vmul.f32 %v4614, 0.7978846
    %v4623 = vmul.f32 %v4615, 0.7978846
    %v4624 = vmul.f32 %v4616, 0.7978846
    %v4625 = vtanh.pop %v4617
    %v4626 = vtanh.pop %v4618
    %v4627 = vtanh.pop %v4619
    %v4628 = vtanh.pop %v4620
    %v4629 = vtanh.pop %v4621
    %v4630 = vtanh.pop %v4622
    %v4631 = vtanh.pop %v4623
    %v4632 = vtanh.pop %v4624
    %v4633 = vadd.f32 %v4625, 1.0
    %v4634 = vadd.f32 %v4626, 1.0
    %v4635 = vadd.f32 %v4627, 1.0
    %v4636 = vadd.f32 %v4628, 1.0
    %v4637 = vadd.f32 %v4629, 1.0
    %v4638 = vadd.f32 %v4630, 1.0
    %v4639 = vadd.f32 %v4631, 1.0
    %v4640 = vadd.f32 %v4632, 1.0
    %v4641 = vmul.f32 %v4577, %v4633
    %v4642 = vmul.f32 %v4578, %v4634
    %v4643 = vmul.f32 %v4579, %v4635
    %v4644 = vmul.f32 %v4580, %v4636
    %v4645 = vmul.f32 %v4581, %v4637
    %v4646 = vmul.f32 %v4582, %v4638
    %v4647 = vmul.f32 %v4583, %v4639
    %v4648 = vmul.f32 %v4584, %v4640
    %v4649 = vpack.c.bf16 %v4645, %v4641
    %v4650 = vpack.c.bf16 %v4646, %v4642
    %v4651 = vpack.c.bf16 %v4647, %v4643
    %v4652 = vpack.c.bf16 %v4648, %v4644
    %s4653 = scalar_lea.vmem [#allocation8], 512
    %v4654 = vld [vmem:[%s4653] sm:$0xff]
    %v4655 = vld [vmem:[%s4653 + $0x8] sm:$0xff]
    %v4656 = vld [vmem:[%s4653 + $0x10] sm:$0xff]
    %v4657 = vld [vmem:[%s4653 + $0x18] sm:$0xff]
    %v4658 = vld [vmem:[%s4653 + $0x20] sm:$0xff]
    %v4659 = vld [vmem:[%s4653 + $0x28] sm:$0xff]
    %v4660 = vld [vmem:[%s4653 + $0x30] sm:$0xff]
    %v4661 = vld [vmem:[%s4653 + $0x38] sm:$0xff]
    %v4662 = vld [vmem:[%s4653 + $0x40] sm:$0xff]
    %v4663 = vld [vmem:[%s4653 + $0x48] sm:$0xff]
    %v4664 = vld [vmem:[%s4653 + $0x50] sm:$0xff]
    %v4665 = vld [vmem:[%s4653 + $0x58] sm:$0xff]
    %v4666 = vld [vmem:[%s4653 + $0x60] sm:$0xff]
    %v4667 = vld [vmem:[%s4653 + $0x68] sm:$0xff]
    %v4668 = vld [vmem:[%s4653 + $0x70] sm:$0xff]
    %v4669 = vld [vmem:[%s4653 + $0x78] sm:$0xff]
    %v4670 = vld [vmem:[%s4653 + $0x80] sm:$0xff]
    %v4671 = vld [vmem:[%s4653 + $0x88] sm:$0xff]
    %v4672 = vld [vmem:[%s4653 + $0x90] sm:$0xff]
    %v4673 = vld [vmem:[%s4653 + $0x98] sm:$0xff]
    %v4674 = vld [vmem:[%s4653 + $0xa0] sm:$0xff]
    %v4675 = vld [vmem:[%s4653 + $0xa8] sm:$0xff]
    %v4676 = vld [vmem:[%s4653 + $0xb0] sm:$0xff]
    %v4677 = vld [vmem:[%s4653 + $0xb8] sm:$0xff]
    %v4678 = vld [vmem:[%s4653 + $0xc0] sm:$0xff]
    %v4679 = vld [vmem:[%s4653 + $0xc8] sm:$0xff]
    %v4680 = vld [vmem:[%s4653 + $0xd0] sm:$0xff]
    %v4681 = vld [vmem:[%s4653 + $0xd8] sm:$0xff]
    %v4682 = vld [vmem:[%s4653 + $0xe0] sm:$0xff]
    %v4683 = vld [vmem:[%s4653 + $0xe8] sm:$0xff]
    %v4684 = vld [vmem:[%s4653 + $0xf0] sm:$0xff]
    %v4685 = vld [vmem:[%s4653 + $0xf8] sm:$0xff]
    %v4686 = vld [vmem:[%s4653 + $0x100] sm:$0xff]
    %v4687 = vld [vmem:[%s4653 + $0x108] sm:$0xff]
    %v4688 = vld [vmem:[%s4653 + $0x110] sm:$0xff]
    %v4689 = vld [vmem:[%s4653 + $0x118] sm:$0xff]
    %v4690 = vld [vmem:[%s4653 + $0x120] sm:$0xff]
    %v4691 = vld [vmem:[%s4653 + $0x128] sm:$0xff]
    %v4692 = vld [vmem:[%s4653 + $0x130] sm:$0xff]
    %v4693 = vld [vmem:[%s4653 + $0x138] sm:$0xff]
    %v4694 = vld [vmem:[%s4653 + $0x140] sm:$0xff]
    %v4695 = vld [vmem:[%s4653 + $0x148] sm:$0xff]
    %v4696 = vld [vmem:[%s4653 + $0x150] sm:$0xff]
    %v4697 = vld [vmem:[%s4653 + $0x158] sm:$0xff]
    %v4698 = vld [vmem:[%s4653 + $0x160] sm:$0xff]
    %v4699 = vld [vmem:[%s4653 + $0x168] sm:$0xff]
    %v4700 = vld [vmem:[%s4653 + $0x170] sm:$0xff]
    %v4701 = vld [vmem:[%s4653 + $0x178] sm:$0xff]
    %v4702 = vld [vmem:[%s4653 + $0x180] sm:$0xff]
    %v4703 = vld [vmem:[%s4653 + $0x188] sm:$0xff]
    %v4704 = vld [vmem:[%s4653 + $0x190] sm:$0xff]
    %v4705 = vld [vmem:[%s4653 + $0x198] sm:$0xff]
    %v4706 = vld [vmem:[%s4653 + $0x1a0] sm:$0xff]
    %v4707 = vld [vmem:[%s4653 + $0x1a8] sm:$0xff]
    %v4708 = vld [vmem:[%s4653 + $0x1b0] sm:$0xff]
    %v4709 = vld [vmem:[%s4653 + $0x1b8] sm:$0xff]
    %v4710 = vld [vmem:[%s4653 + $0x1c0] sm:$0xff]
    %v4711 = vld [vmem:[%s4653 + $0x1c8] sm:$0xff]
    %v4712 = vld [vmem:[%s4653 + $0x1d0] sm:$0xff]
    %v4713 = vld [vmem:[%s4653 + $0x1d8] sm:$0xff]
    %v4714 = vld [vmem:[%s4653 + $0x1e0] sm:$0xff]
    %v4715 = vld [vmem:[%s4653 + $0x1e8] sm:$0xff]
    %v4716 = vld [vmem:[%s4653 + $0x1f0] sm:$0xff]
    %v4717 = vld [vmem:[%s4653 + $0x1f8] sm:$0xff]
    %s4718 = scalar_lea.vmem %s13, 2
    %v4719 = vld [vmem:[%s4718] sm:$0x3]
    %v4721 = vperm.slane %v4719, 0
    %v4722 = vperm.slane %v4719, 1
    %v4789 = vunpack.c.l.b16 %v4654
    %v4790 = vunpack.c.h.b16 %v4654
    %v4791 = vunpack.c.l.b16 %v4655
    %v4792 = vunpack.c.h.b16 %v4655
    %v4793 = vunpack.c.l.b16 %v4656
    %v4794 = vunpack.c.h.b16 %v4656
    %v4795 = vunpack.c.l.b16 %v4657
    %v4796 = vunpack.c.h.b16 %v4657
    %v4797 = vunpack.c.l.b16 %v4658
    %v4798 = vunpack.c.h.b16 %v4658
    %v4799 = vunpack.c.l.b16 %v4659
    %v4800 = vunpack.c.h.b16 %v4659
    %v4801 = vunpack.c.l.b16 %v4660
    %v4802 = vunpack.c.h.b16 %v4660
    %v4803 = vunpack.c.l.b16 %v4661
    %v4804 = vunpack.c.h.b16 %v4661
    %v4805 = vunpack.c.l.b16 %v4662
    %v4806 = vunpack.c.h.b16 %v4662
    %v4807 = vunpack.c.l.b16 %v4663
    %v4808 = vunpack.c.h.b16 %v4663
    %v4809 = vunpack.c.l.b16 %v4664
    %v4810 = vunpack.c.h.b16 %v4664
    %v4811 = vunpack.c.l.b16 %v4665
    %v4812 = vunpack.c.h.b16 %v4665
    %v4813 = vunpack.c.l.b16 %v4666
    %v4814 = vunpack.c.h.b16 %v4666
    %v4815 = vunpack.c.l.b16 %v4667
    %v4816 = vunpack.c.h.b16 %v4667
    %v4817 = vunpack.c.l.b16 %v4668
    %v4818 = vunpack.c.h.b16 %v4668
    %v4819 = vunpack.c.l.b16 %v4669
    %v4820 = vunpack.c.h.b16 %v4669
    %v4821 = vunpack.c.l.b16 %v4670
    %v4822 = vunpack.c.h.b16 %v4670
    %v4823 = vunpack.c.l.b16 %v4671
    %v4824 = vunpack.c.h.b16 %v4671
    %v4825 = vunpack.c.l.b16 %v4672
    %v4826 = vunpack.c.h.b16 %v4672
    %v4827 = vunpack.c.l.b16 %v4673
    %v4828 = vunpack.c.h.b16 %v4673
    %v4829 = vunpack.c.l.b16 %v4674
    %v4830 = vunpack.c.h.b16 %v4674
    %v4831 = vunpack.c.l.b16 %v4675
    %v4832 = vunpack.c.h.b16 %v4675
    %v4833 = vunpack.c.l.b16 %v4676
    %v4834 = vunpack.c.h.b16 %v4676
    %v4835 = vunpack.c.l.b16 %v4677
    %v4836 = vunpack.c.h.b16 %v4677
    %v4837 = vunpack.c.l.b16 %v4678
    %v4838 = vunpack.c.h.b16 %v4678
    %v4839 = vunpack.c.l.b16 %v4679
    %v4840 = vunpack.c.h.b16 %v4679
    %v4841 = vunpack.c.l.b16 %v4680
    %v4842 = vunpack.c.h.b16 %v4680
    %v4843 = vunpack.c.l.b16 %v4681
    %v4844 = vunpack.c.h.b16 %v4681
    %v4845 = vunpack.c.l.b16 %v4682
    %v4846 = vunpack.c.h.b16 %v4682
    %v4847 = vunpack.c.l.b16 %v4683
    %v4848 = vunpack.c.h.b16 %v4683
    %v4849 = vunpack.c.l.b16 %v4684
    %v4850 = vunpack.c.h.b16 %v4684
    %v4851 = vunpack.c.l.b16 %v4685
    %v4852 = vunpack.c.h.b16 %v4685
    %v4853 = vunpack.c.l.b16 %v4686
    %v4854 = vunpack.c.h.b16 %v4686
    %v4855 = vunpack.c.l.b16 %v4687
    %v4856 = vunpack.c.h.b16 %v4687
    %v4857 = vunpack.c.l.b16 %v4688
    %v4858 = vunpack.c.h.b16 %v4688
    %v4859 = vunpack.c.l.b16 %v4689
    %v4860 = vunpack.c.h.b16 %v4689
    %v4861 = vunpack.c.l.b16 %v4690
    %v4862 = vunpack.c.h.b16 %v4690
    %v4863 = vunpack.c.l.b16 %v4691
    %v4864 = vunpack.c.h.b16 %v4691
    %v4865 = vunpack.c.l.b16 %v4692
    %v4866 = vunpack.c.h.b16 %v4692
    %v4867 = vunpack.c.l.b16 %v4693
    %v4868 = vunpack.c.h.b16 %v4693
    %v4869 = vunpack.c.l.b16 %v4694
    %v4870 = vunpack.c.h.b16 %v4694
    %v4871 = vunpack.c.l.b16 %v4695
    %v4872 = vunpack.c.h.b16 %v4695
    %v4873 = vunpack.c.l.b16 %v4696
    %v4874 = vunpack.c.h.b16 %v4696
    %v4875 = vunpack.c.l.b16 %v4697
    %v4876 = vunpack.c.h.b16 %v4697
    %v4877 = vunpack.c.l.b16 %v4698
    %v4878 = vunpack.c.h.b16 %v4698
    %v4879 = vunpack.c.l.b16 %v4699
    %v4880 = vunpack.c.h.b16 %v4699
    %v4881 = vunpack.c.l.b16 %v4700
    %v4882 = vunpack.c.h.b16 %v4700
    %v4883 = vunpack.c.l.b16 %v4701
    %v4884 = vunpack.c.h.b16 %v4701
    %v4885 = vunpack.c.l.b16 %v4702
    %v4886 = vunpack.c.h.b16 %v4702
    %v4887 = vunpack.c.l.b16 %v4703
    %v4888 = vunpack.c.h.b16 %v4703
    %v4889 = vunpack.c.l.b16 %v4704
    %v4890 = vunpack.c.h.b16 %v4704
    %v4891 = vunpack.c.l.b16 %v4705
    %v4892 = vunpack.c.h.b16 %v4705
    %v4893 = vunpack.c.l.b16 %v4706
    %v4894 = vunpack.c.h.b16 %v4706
    %v4895 = vunpack.c.l.b16 %v4707
    %v4896 = vunpack.c.h.b16 %v4707
    %v4897 = vunpack.c.l.b16 %v4708
    %v4898 = vunpack.c.h.b16 %v4708
    %v4899 = vunpack.c.l.b16 %v4709
    %v4900 = vunpack.c.h.b16 %v4709
    %v4901 = vunpack.c.l.b16 %v4710
    %v4902 = vunpack.c.h.b16 %v4710
    %v4903 = vunpack.c.l.b16 %v4711
    %v4904 = vunpack.c.h.b16 %v4711
    %v4905 = vunpack.c.l.b16 %v4712
    %v4906 = vunpack.c.h.b16 %v4712
    %v4907 = vunpack.c.l.b16 %v4713
    %v4908 = vunpack.c.h.b16 %v4713
    %v4909 = vunpack.c.l.b16 %v4714
    %v4910 = vunpack.c.h.b16 %v4714
    %v4911 = vunpack.c.l.b16 %v4715
    %v4912 = vunpack.c.h.b16 %v4715
    %v4913 = vunpack.c.l.b16 %v4716
    %v4914 = vunpack.c.h.b16 %v4716
    %v4915 = vunpack.c.l.b16 %v4717
    %v4916 = vunpack.c.h.b16 %v4717
    %v4917 = vpack.c.b16 %v4791, %v4789
    %v4918 = vpack.c.b16 %v4792, %v4790
    %v4919 = vpack.c.b16 %v4795, %v4793
    %v4920 = vpack.c.b16 %v4796, %v4794
    %v4921 = vpack.c.b16 %v4799, %v4797
    %v4922 = vpack.c.b16 %v4800, %v4798
    %v4923 = vpack.c.b16 %v4803, %v4801
    %v4924 = vpack.c.b16 %v4804, %v4802
    %v4925 = vpack.c.b16 %v4807, %v4805
    %v4926 = vpack.c.b16 %v4808, %v4806
    %v4927 = vpack.c.b16 %v4811, %v4809
    %v4928 = vpack.c.b16 %v4812, %v4810
    %v4929 = vpack.c.b16 %v4815, %v4813
    %v4930 = vpack.c.b16 %v4816, %v4814
    %v4931 = vpack.c.b16 %v4819, %v4817
    %v4932 = vpack.c.b16 %v4820, %v4818
    %v4933 = vpack.c.b16 %v4823, %v4821
    %v4934 = vpack.c.b16 %v4824, %v4822
    %v4935 = vpack.c.b16 %v4827, %v4825
    %v4936 = vpack.c.b16 %v4828, %v4826
    %v4937 = vpack.c.b16 %v4831, %v4829
    %v4938 = vpack.c.b16 %v4832, %v4830
    %v4939 = vpack.c.b16 %v4835, %v4833
    %v4940 = vpack.c.b16 %v4836, %v4834
    %v4941 = vpack.c.b16 %v4839, %v4837
    %v4942 = vpack.c.b16 %v4840, %v4838
    %v4943 = vpack.c.b16 %v4843, %v4841
    %v4944 = vpack.c.b16 %v4844, %v4842
    %v4945 = vpack.c.b16 %v4847, %v4845
    %v4946 = vpack.c.b16 %v4848, %v4846
    %v4947 = vpack.c.b16 %v4851, %v4849
    %v4948 = vpack.c.b16 %v4852, %v4850
    %v4949 = vpack.c.b16 %v4855, %v4853
    %v4950 = vpack.c.b16 %v4856, %v4854
    %v4951 = vpack.c.b16 %v4859, %v4857
    %v4952 = vpack.c.b16 %v4860, %v4858
    %v4953 = vpack.c.b16 %v4863, %v4861
    %v4954 = vpack.c.b16 %v4864, %v4862
    %v4955 = vpack.c.b16 %v4867, %v4865
    %v4956 = vpack.c.b16 %v4868, %v4866
    %v4957 = vpack.c.b16 %v4871, %v4869
    %v4958 = vpack.c.b16 %v4872, %v4870
    %v4959 = vpack.c.b16 %v4875, %v4873
    %v4960 = vpack.c.b16 %v4876, %v4874
    %v4961 = vpack.c.b16 %v4879, %v4877
    %v4962 = vpack.c.b16 %v4880, %v4878
    %v4963 = vpack.c.b16 %v4883, %v4881
    %v4964 = vpack.c.b16 %v4884, %v4882
    %v4965 = vpack.c.b16 %v4887, %v4885
    %v4966 = vpack.c.b16 %v4888, %v4886
    %v4967 = vpack.c.b16 %v4891, %v4889
    %v4968 = vpack.c.b16 %v4892, %v4890
    %v4969 = vpack.c.b16 %v4895, %v4893
    %v4970 = vpack.c.b16 %v4896, %v4894
    %v4971 = vpack.c.b16 %v4899, %v4897
    %v4972 = vpack.c.b16 %v4900, %v4898
    %v4973 = vpack.c.b16 %v4903, %v4901
    %v4974 = vpack.c.b16 %v4904, %v4902
    %v4975 = vpack.c.b16 %v4907, %v4905
    %v4976 = vpack.c.b16 %v4908, %v4906
    %v4977 = vpack.c.b16 %v4911, %v4909
    %v4978 = vpack.c.b16 %v4912, %v4910
    %v4979 = vpack.c.b16 %v4915, %v4913
    %v4980 = vpack.c.b16 %v4916, %v4914
    %5045 = vmatpush.bf16.msra.mxu0 %v4931
    %5046 = vmatpush.bf16.msra.mxu0 %v4929
    %5047 = vmatpush.bf16.msra.mxu0 %v4927
    %5048 = vmatpush.bf16.msra.mxu0 %v4925
    %5049 = vmatpush.bf16.msra.mxu0 %v4923
    %5050 = vmatpush.bf16.msra.mxu0 %v4921
    %5051 = vmatpush.bf16.msra.mxu0 %v4919
    %5052 = vmatpush.bf16.msra.mxu0 %v4917
    %5053 = vmatmul.bf16.gmra.mxu0 %v4649
    %v5054 = vpop.f32.mrf.mxu0
    %v5055 = vadd.f32 %v4721, %v5054
    %v5056 = vpop.f32.mrf.mxu0
    %v5057 = vadd.f32 %v4721, %v5056
    %5058 = vdwg.mxu0
    %5059 = vmatpush.bf16.msra.mxu0 %v4947
    %5060 = vmatpush.bf16.msra.mxu0 %v4945
    %5061 = vmatpush.bf16.msra.mxu0 %v4943
    %5062 = vmatpush.bf16.msra.mxu0 %v4941
    %5063 = vmatpush.bf16.msra.mxu0 %v4939
    %5064 = vmatpush.bf16.msra.mxu0 %v4937
    %5065 = vmatpush.bf16.msra.mxu0 %v4935
    %5066 = vmatpush.bf16.msra.mxu0 %v4933
    %5067 = vmatmul.bf16.gmra.mxu0 %v4650
    %v5068 = vpop.f32.mrf.mxu0
    %v5069 = vadd.f32 %v5055, %v5068
    %v5070 = vpop.f32.mrf.mxu0
    %v5071 = vadd.f32 %v5057, %v5070
    %5072 = vdwg.mxu0
    %5073 = vmatpush.bf16.msra.mxu0 %v4963
    %5074 = vmatpush.bf16.msra.mxu0 %v4961
    %5075 = vmatpush.bf16.msra.mxu0 %v4959
    %5076 = vmatpush.bf16.msra.mxu0 %v4957
    %5077 = vmatpush.bf16.msra.mxu0 %v4955
    %5078 = vmatpush.bf16.msra.mxu0 %v4953
    %5079 = vmatpush.bf16.msra.mxu0 %v4951
    %5080 = vmatpush.bf16.msra.mxu0 %v4949
    %5081 = vmatmul.bf16.gmra.mxu0 %v4651
    %v5082 = vpop.f32.mrf.mxu0
    %v5083 = vadd.f32 %v5069, %v5082
    %v5084 = vpop.f32.mrf.mxu0
    %v5085 = vadd.f32 %v5071, %v5084
    %5086 = vdwg.mxu0
    %5087 = vmatpush.bf16.msra.mxu0 %v4979
    %5088 = vmatpush.bf16.msra.mxu0 %v4977
    %5089 = vmatpush.bf16.msra.mxu0 %v4975
    %5090 = vmatpush.bf16.msra.mxu0 %v4973
    %5091 = vmatpush.bf16.msra.mxu0 %v4971
    %5092 = vmatpush.bf16.msra.mxu0 %v4969
    %5093 = vmatpush.bf16.msra.mxu0 %v4967
    %5094 = vmatpush.bf16.msra.mxu0 %v4965
    %5095 = vmatmul.bf16.gmra.mxu0 %v4652
    %v5096 = vpop.f32.mrf.mxu0
    %v5097 = vadd.f32 %v5083, %v5096
    %v5098 = vpop.f32.mrf.mxu0
    %v5099 = vadd.f32 %v5085, %v5098
    %5100 = vdwg.mxu0
    %5101 = vmatpush.bf16.msra.mxu0 %v4932
    %5102 = vmatpush.bf16.msra.mxu0 %v4930
    %5103 = vmatpush.bf16.msra.mxu0 %v4928
    %5104 = vmatpush.bf16.msra.mxu0 %v4926
    %5105 = vmatpush.bf16.msra.mxu0 %v4924
    %5106 = vmatpush.bf16.msra.mxu0 %v4922
    %5107 = vmatpush.bf16.msra.mxu0 %v4920
    %5108 = vmatpush.bf16.msra.mxu0 %v4918
    %5109 = vmatmul.bf16.gmra.mxu0 %v4649
    %v5110 = vpop.f32.mrf.mxu0
    %v5111 = vadd.f32 %v4722, %v5110
    %v5112 = vpop.f32.mrf.mxu0
    %v5113 = vadd.f32 %v4722, %v5112
    %5114 = vdwg.mxu0
    %5115 = vmatpush.bf16.msra.mxu0 %v4948
    %5116 = vmatpush.bf16.msra.mxu0 %v4946
    %5117 = vmatpush.bf16.msra.mxu0 %v4944
    %5118 = vmatpush.bf16.msra.mxu0 %v4942
    %5119 = vmatpush.bf16.msra.mxu0 %v4940
    %5120 = vmatpush.bf16.msra.mxu0 %v4938
    %5121 = vmatpush.bf16.msra.mxu0 %v4936
    %5122 = vmatpush.bf16.msra.mxu0 %v4934
    %5123 = vmatmul.bf16.gmra.mxu0 %v4650
    %v5124 = vpop.f32.mrf.mxu0
    %v5125 = vadd.f32 %v5111, %v5124
    %v5126 = vpop.f32.mrf.mxu0
    %v5127 = vadd.f32 %v5113, %v5126
    %5128 = vdwg.mxu0
    %5129 = vmatpush.bf16.msra.mxu0 %v4964
    %5130 = vmatpush.bf16.msra.mxu0 %v4962
    %5131 = vmatpush.bf16.msra.mxu0 %v4960
    %5132 = vmatpush.bf16.msra.mxu0 %v4958
    %5133 = vmatpush.bf16.msra.mxu0 %v4956
    %5134 = vmatpush.bf16.msra.mxu0 %v4954
    %5135 = vmatpush.bf16.msra.mxu0 %v4952
    %5136 = vmatpush.bf16.msra.mxu0 %v4950
    %5137 = vmatmul.bf16.gmra.mxu0 %v4651
    %v5138 = vpop.f32.mrf.mxu0
    %v5139 = vadd.f32 %v5125, %v5138
    %v5140 = vpop.f32.mrf.mxu0
    %v5141 = vadd.f32 %v5127, %v5140
    %5142 = vdwg.mxu0
    %5143 = vmatpush.bf16.msra.mxu0 %v4980
    %5144 = vmatpush.bf16.msra.mxu0 %v4978
    %5145 = vmatpush.bf16.msra.mxu0 %v4976
    %5146 = vmatpush.bf16.msra.mxu0 %v4974
    %5147 = vmatpush.bf16.msra.mxu0 %v4972
    %5148 = vmatpush.bf16.msra.mxu0 %v4970
    %5149 = vmatpush.bf16.msra.mxu0 %v4968
    %5150 = vmatpush.bf16.msra.mxu0 %v4966
    %5151 = vmatmul.bf16.gmra.mxu0 %v4652
    %v5152 = vpop.f32.mrf.mxu0
    %v5153 = vadd.f32 %v5139, %v5152
    %v5154 = vpop.f32.mrf.mxu0
    %v5155 = vadd.f32 %v5141, %v5154
    %5156 = vdwg.mxu0
    %v5157 = vadd.f32 %v5097, %v4063
    %v5158 = vadd.f32 %v5153, %v4064
    %v5159 = vadd.f32 %v5099, %v4065
    %v5160 = vadd.f32 %v5155, %v4066
    %s5161 = scalar_lea.vmem %s14, 2
    %v5162 = vld [vmem:[%s5161] sm:$0x3]
    %s5163 = scalar_lea.vmem %s15, 2
    %v5164 = vld [vmem:[%s5163] sm:$0x3]
    %v5165 = vadd.f32 %v5157, %v5158
    %5166 = vadd.xlane.f32.xlu0 %v5165
    %v5167 = vpop.xlane.xlu0 %5166
    %v5168 = vadd.f32 %v5159, %v5160
    %5169 = vadd.xlane.f32.xlu0 %v5168
    %v5170 = vpop.xlane.xlu0 %5169
    %v5171 = vmul.f32 %v5167, %v160
    %v5172 = vmul.f32 %v5170, %v160
    %v5173 = vsub.f32 %v5157, %v5171
    %v5174 = vsub.f32 %v5158, %v5171
    %v5175 = vsub.f32 %v5159, %v5172
    %v5176 = vsub.f32 %v5160, %v5172
    %v5177 = vmul.f32 %v5173, %v5173
    %v5178 = vmul.f32 %v5174, %v5174
    %v5179 = vmul.f32 %v5175, %v5175
    %v5180 = vmul.f32 %v5176, %v5176
    %v5181 = vadd.f32 %v5177, %v5178
    %5182 = vadd.xlane.f32.xlu0 %v5181
    %v5183 = vpop.xlane.xlu0 %5182
    %v5184 = vadd.f32 %v5179, %v5180
    %5185 = vadd.xlane.f32.xlu0 %v5184
    %v5186 = vpop.xlane.xlu0 %5185
    %v5187 = vmul.f32 %v5183, %v160
    %v5188 = vmul.f32 %v5186, %v160
    %v5189 = vadd.f32 %v5187, 1e-12
    %v5190 = vadd.f32 %v5188, 1e-12
    %v5191 = vrsqrt.pop %v5189
    %v5192 = vmul.f32 %v5191, %v5189
    %v5193 = vmul.f32 %v5192, %v5191
    %v5194 = vmul.f32 0.5, %v5193
    %v5195 = vsub.f32 1.5, %v5194
    %v5196 = vmul.f32 %v5191, %v5195
    %vm5197 = vweird.f32 %v5189
    %vm5198 = vweird.f32 %v5191
    %vm5199 = vmor %vm5197, %vm5198
    %v5200 = vsel %vm5199, %v5191, %v5196
    %v5201 = vrsqrt.pop %v5190
    %v5202 = vmul.f32 %v5201, %v5190
    %v5203 = vmul.f32 %v5202, %v5201
    %v5204 = vmul.f32 0.5, %v5203
    %v5205 = vsub.f32 1.5, %v5204
    %v5206 = vmul.f32 %v5201, %v5205
    %vm5207 = vweird.f32 %v5190
    %vm5208 = vweird.f32 %v5201
    %vm5209 = vmor %vm5207, %vm5208
    %v5210 = vsel %vm5209, %v5201, %v5206
    %v5211 = vmul.f32 %v5173, %v5200
    %v5212 = vmul.f32 %v5174, %v5200
    %v5213 = vmul.f32 %v5175, %v5210
    %v5214 = vmul.f32 %v5176, %v5210
    %v5216 = vperm.slane %v5162, 0
    %v5217 = vperm.slane %v5162, 1
    %v5220 = vmul.f32 %v5211, %v5216
    %v5221 = vmul.f32 %v5212, %v5217
    %v5222 = vmul.f32 %v5213, %v5216
    %v5223 = vmul.f32 %v5214, %v5217
    %v5225 = vperm.slane %v5164, 0
    %v5226 = vperm.slane %v5164, 1
    %v5229 = vadd.f32 %v5220, %v5225
    %v5230 = vadd.f32 %v5221, %v5226
    %v5231 = vadd.f32 %v5222, %v5225
    %v5232 = vadd.f32 %v5223, %v5226
    %v5233 = vpack.c.bf16 %v5229, %v5229
    %v5234 = vpack.c.bf16 %v5230, %v5230
    %v5235 = vpack.c.bf16 %v5231, %v5231
    %v5236 = vpack.c.bf16 %v5232, %v5232
    %v5237 = vld [vmem:[%s16] sm:$0xff]
    %v5238 = vld [vmem:[%s16 + $0x8] sm:$0xff]
    %v5239 = vld [vmem:[%s16 + $0x10] sm:$0xff]
    %v5240 = vld [vmem:[%s16 + $0x18] sm:$0xff]
    %v5241 = vld [vmem:[%s16 + $0x20] sm:$0xff]
    %v5242 = vld [vmem:[%s16 + $0x28] sm:$0xff]
    %v5243 = vld [vmem:[%s16 + $0x30] sm:$0xff]
    %v5244 = vld [vmem:[%s16 + $0x38] sm:$0xff]
    %v5245 = vld [vmem:[%s16 + $0x40] sm:$0xff]
    %v5246 = vld [vmem:[%s16 + $0x48] sm:$0xff]
    %v5247 = vld [vmem:[%s16 + $0x50] sm:$0xff]
    %v5248 = vld [vmem:[%s16 + $0x58] sm:$0xff]
    %v5249 = vld [vmem:[%s16 + $0x60] sm:$0xff]
    %v5250 = vld [vmem:[%s16 + $0x68] sm:$0xff]
    %v5251 = vld [vmem:[%s16 + $0x70] sm:$0xff]
    %v5252 = vld [vmem:[%s16 + $0x78] sm:$0xff]
    %v5253 = vld [vmem:[%s16 + $0x80] sm:$0xff]
    %v5254 = vld [vmem:[%s16 + $0x88] sm:$0xff]
    %v5255 = vld [vmem:[%s16 + $0x90] sm:$0xff]
    %v5256 = vld [vmem:[%s16 + $0x98] sm:$0xff]
    %v5257 = vld [vmem:[%s16 + $0xa0] sm:$0xff]
    %v5258 = vld [vmem:[%s16 + $0xa8] sm:$0xff]
    %v5259 = vld [vmem:[%s16 + $0xb0] sm:$0xff]
    %v5260 = vld [vmem:[%s16 + $0xb8] sm:$0xff]
    %v5261 = vld [vmem:[%s16 + $0xc0] sm:$0xff]
    %v5262 = vld [vmem:[%s16 + $0xc8] sm:$0xff]
    %v5263 = vld [vmem:[%s16 + $0xd0] sm:$0xff]
    %v5264 = vld [vmem:[%s16 + $0xd8] sm:$0xff]
    %v5265 = vld [vmem:[%s16 + $0xe0] sm:$0xff]
    %v5266 = vld [vmem:[%s16 + $0xe8] sm:$0xff]
    %v5267 = vld [vmem:[%s16 + $0xf0] sm:$0xff]
    %v5268 = vld [vmem:[%s16 + $0xf8] sm:$0xff]
    %v5269 = vld [vmem:[%s17] sm:$0x3]
    %v5271 = vperm.slane %v5269, 0
    %v5272 = vperm.slane %v5269, 1
    %v5279 = vunpack.c.l.b16 %v5233
    %v5280 = vunpack.c.l.b16 %v5234
    %v5281 = vunpack.c.l.b16 %v5235
    %v5282 = vunpack.c.l.b16 %v5236
    %v5283 = vrot.slane %v5281, 7
    %vm5284 = vcmask 1041409
    %v5285 = vsel %vm5284, %v5283, %v5279
    %v5286 = vrot.slane %v5282, 7
    %v5287 = vsel %vm5284, %v5286, %v5280
    %v5288 = vpack.c.b16 %v5285, %v5285
    %v5289 = vpack.c.b16 %v5287, %v5287
    %v5324 = vunpack.c.l.b16 %v5237
    %v5325 = vunpack.c.h.b16 %v5237
    %v5326 = vunpack.c.l.b16 %v5238
    %v5327 = vunpack.c.h.b16 %v5238
    %v5328 = vunpack.c.l.b16 %v5239
    %v5329 = vunpack.c.h.b16 %v5239
    %v5330 = vunpack.c.l.b16 %v5240
    %v5331 = vunpack.c.h.b16 %v5240
    %v5332 = vunpack.c.l.b16 %v5241
    %v5333 = vunpack.c.h.b16 %v5241
    %v5334 = vunpack.c.l.b16 %v5242
    %v5335 = vunpack.c.h.b16 %v5242
    %v5336 = vunpack.c.l.b16 %v5243
    %v5337 = vunpack.c.h.b16 %v5243
    %v5338 = vunpack.c.l.b16 %v5244
    %v5339 = vunpack.c.h.b16 %v5244
    %v5340 = vunpack.c.l.b16 %v5245
    %v5341 = vunpack.c.h.b16 %v5245
    %v5342 = vunpack.c.l.b16 %v5246
    %v5343 = vunpack.c.h.b16 %v5246
    %v5344 = vunpack.c.l.b16 %v5247
    %v5345 = vunpack.c.h.b16 %v5247
    %v5346 = vunpack.c.l.b16 %v5248
    %v5347 = vunpack.c.h.b16 %v5248
    %v5348 = vunpack.c.l.b16 %v5249
    %v5349 = vunpack.c.h.b16 %v5249
    %v5350 = vunpack.c.l.b16 %v5250
    %v5351 = vunpack.c.h.b16 %v5250
    %v5352 = vunpack.c.l.b16 %v5251
    %v5353 = vunpack.c.h.b16 %v5251
    %v5354 = vunpack.c.l.b16 %v5252
    %v5355 = vunpack.c.h.b16 %v5252
    %v5356 = vunpack.c.l.b16 %v5253
    %v5357 = vunpack.c.h.b16 %v5253
    %v5358 = vunpack.c.l.b16 %v5254
    %v5359 = vunpack.c.h.b16 %v5254
    %v5360 = vunpack.c.l.b16 %v5255
    %v5361 = vunpack.c.h.b16 %v5255
    %v5362 = vunpack.c.l.b16 %v5256
    %v5363 = vunpack.c.h.b16 %v5256
    %v5364 = vunpack.c.l.b16 %v5257
    %v5365 = vunpack.c.h.b16 %v5257
    %v5366 = vunpack.c.l.b16 %v5258
    %v5367 = vunpack.c.h.b16 %v5258
    %v5368 = vunpack.c.l.b16 %v5259
    %v5369 = vunpack.c.h.b16 %v5259
    %v5370 = vunpack.c.l.b16 %v5260
    %v5371 = vunpack.c.h.b16 %v5260
    %v5372 = vunpack.c.l.b16 %v5261
    %v5373 = vunpack.c.h.b16 %v5261
    %v5374 = vunpack.c.l.b16 %v5262
    %v5375 = vunpack.c.h.b16 %v5262
    %v5376 = vunpack.c.l.b16 %v5263
    %v5377 = vunpack.c.h.b16 %v5263
    %v5378 = vunpack.c.l.b16 %v5264
    %v5379 = vunpack.c.h.b16 %v5264
    %v5380 = vunpack.c.l.b16 %v5265
    %v5381 = vunpack.c.h.b16 %v5265
    %v5382 = vunpack.c.l.b16 %v5266
    %v5383 = vunpack.c.h.b16 %v5266
    %v5384 = vunpack.c.l.b16 %v5267
    %v5385 = vunpack.c.h.b16 %v5267
    %v5386 = vunpack.c.l.b16 %v5268
    %v5387 = vunpack.c.h.b16 %v5268
    %v5388 = vpack.c.b16 %v5326, %v5324
    %v5389 = vpack.c.b16 %v5327, %v5325
    %v5390 = vpack.c.b16 %v5330, %v5328
    %v5391 = vpack.c.b16 %v5331, %v5329
    %v5392 = vpack.c.b16 %v5334, %v5332
    %v5393 = vpack.c.b16 %v5335, %v5333
    %v5394 = vpack.c.b16 %v5338, %v5336
    %v5395 = vpack.c.b16 %v5339, %v5337
    %v5396 = vpack.c.b16 %v5342, %v5340
    %v5397 = vpack.c.b16 %v5343, %v5341
    %v5398 = vpack.c.b16 %v5346, %v5344
    %v5399 = vpack.c.b16 %v5347, %v5345
    %v5400 = vpack.c.b16 %v5350, %v5348
    %v5401 = vpack.c.b16 %v5351, %v5349
    %v5402 = vpack.c.b16 %v5354, %v5352
    %v5403 = vpack.c.b16 %v5355, %v5353
    %v5404 = vpack.c.b16 %v5358, %v5356
    %v5405 = vpack.c.b16 %v5359, %v5357
    %v5406 = vpack.c.b16 %v5362, %v5360
    %v5407 = vpack.c.b16 %v5363, %v5361
    %v5408 = vpack.c.b16 %v5366, %v5364
    %v5409 = vpack.c.b16 %v5367, %v5365
    %v5410 = vpack.c.b16 %v5370, %v5368
    %v5411 = vpack.c.b16 %v5371, %v5369
    %v5412 = vpack.c.b16 %v5374, %v5372
    %v5413 = vpack.c.b16 %v5375, %v5373
    %v5414 = vpack.c.b16 %v5378, %v5376
    %v5415 = vpack.c.b16 %v5379, %v5377
    %v5416 = vpack.c.b16 %v5382, %v5380
    %v5417 = vpack.c.b16 %v5383, %v5381
    %v5418 = vpack.c.b16 %v5386, %v5384
    %v5419 = vpack.c.b16 %v5387, %v5385
    %5452 = vmatpush.bf16.msra.mxu0 %v5402
    %5453 = vmatpush.bf16.msra.mxu0 %v5400
    %5454 = vmatpush.bf16.msra.mxu0 %v5398
    %5455 = vmatpush.bf16.msra.mxu0 %v5396
    %5456 = vmatpush.bf16.msra.mxu0 %v5394
    %5457 = vmatpush.bf16.msra.mxu0 %v5392
    %5458 = vmatpush.bf16.msra.mxu0 %v5390
    %5459 = vmatpush.bf16.msra.mxu0 %v5388
    %5460 = vmatmul.bf16.gmra.mxu0 %v5288
    %v5461 = vpop.f32.mrf.mxu0
    %v5462 = vadd.f32 %v5271, %v5461
    %v5463 = vpop.f32.mrf.mxu0
    %5464 = vdwg.mxu0
    %5465 = vmatpush.bf16.msra.mxu0 %v5418
    %5466 = vmatpush.bf16.msra.mxu0 %v5416
    %5467 = vmatpush.bf16.msra.mxu0 %v5414
    %5468 = vmatpush.bf16.msra.mxu0 %v5412
    %5469 = vmatpush.bf16.msra.mxu0 %v5410
    %5470 = vmatpush.bf16.msra.mxu0 %v5408
    %5471 = vmatpush.bf16.msra.mxu0 %v5406
    %5472 = vmatpush.bf16.msra.mxu0 %v5404
    %5473 = vmatmul.bf16.gmra.mxu0 %v5289
    %v5474 = vpop.f32.mrf.mxu0
    %v5475 = vadd.f32 %v5462, %v5474
    %v5476 = vpop.f32.mrf.mxu0
    %5477 = vdwg.mxu0
    %5478 = vmatpush.bf16.msra.mxu0 %v5403
    %5479 = vmatpush.bf16.msra.mxu0 %v5401
    %5480 = vmatpush.bf16.msra.mxu0 %v5399
    %5481 = vmatpush.bf16.msra.mxu0 %v5397
    %5482 = vmatpush.bf16.msra.mxu0 %v5395
    %5483 = vmatpush.bf16.msra.mxu0 %v5393
    %5484 = vmatpush.bf16.msra.mxu0 %v5391
    %5485 = vmatpush.bf16.msra.mxu0 %v5389
    %5486 = vmatmul.bf16.gmra.mxu0 %v5288
    %v5487 = vpop.f32.mrf.mxu0
    %v5488 = vadd.f32 %v5272, %v5487
    %v5489 = vpop.f32.mrf.mxu0
    %5490 = vdwg.mxu0
    %5491 = vmatpush.bf16.msra.mxu0 %v5419
    %5492 = vmatpush.bf16.msra.mxu0 %v5417
    %5493 = vmatpush.bf16.msra.mxu0 %v5415
    %5494 = vmatpush.bf16.msra.mxu0 %v5413
    %5495 = vmatpush.bf16.msra.mxu0 %v5411
    %5496 = vmatpush.bf16.msra.mxu0 %v5409
    %5497 = vmatpush.bf16.msra.mxu0 %v5407
    %5498 = vmatpush.bf16.msra.mxu0 %v5405
    %5499 = vmatmul.bf16.gmra.mxu0 %v5289
    %v5500 = vpop.f32.mrf.mxu0
    %v5501 = vadd.f32 %v5488, %v5500
    %v5502 = vpop.f32.mrf.mxu0
    %5503 = vdwg.mxu0
    %v5504 = vmul.f32 %v5475, 0.5
    %v5505 = vmul.f32 %v5501, 0.5
    %v5506 = vmul.f32 %v5475, 0.044715
    %v5507 = vmul.f32 %v5501, 0.044715
    %v5508 = vmul.f32 %v5506, %v5475
    %v5509 = vmul.f32 %v5507, %v5501
    %v5510 = vmul.f32 %v5508, %v5475
    %v5511 = vmul.f32 %v5509, %v5501
    %v5512 = vadd.f32 %v5475, %v5510
    %v5513 = vadd.f32 %v5501, %v5511
    %v5514 = vmul.f32 %v5512, 0.7978846
    %v5515 = vmul.f32 %v5513, 0.7978846
    %v5516 = vtanh.pop %v5514
    %v5517 = vtanh.pop %v5515
    %v5518 = vadd.f32 %v5516, 1.0
    %v5519 = vadd.f32 %v5517, 1.0
    %v5520 = vmul.f32 %v5504, %v5518
    %v5521 = vmul.f32 %v5505, %v5519
    %v5522 = vld [vmem:[%s18] sm:$0x3]
    %v5523 = vld [vmem:[%s19] sm:$0x3]
    %vm5524 = vcmask 1041408
    %v5525 = vsel %vm5524, %v5520, 0.0
    %v5526 = vsel %vm5524, %v5521, 0.0
    %v5527 = vadd.f32 %v5525, %v5526
    %5528 = vadd.xlane.f32.xlu0 %v5527
    %v5529 = vpop.xlane.xlu0 %5528
    %v5530 = vmul.f32 %v5529, %v160
    %v5531 = vsub.f32 %v5520, %v5530
    %v5532 = vsub.f32 %v5521, %v5530
    %v5533 = vmul.f32 %v5531, %v5531
    %v5534 = vmul.f32 %v5532, %v5532
    %v5535 = vsel %vm5524, %v5533, 0.0
    %v5536 = vsel %vm5524, %v5534, 0.0
    %v5537 = vadd.f32 %v5535, %v5536
    %5538 = vadd.xlane.f32.xlu0 %v5537
    %v5539 = vpop.xlane.xlu0 %5538
    %v5540 = vmul.f32 %v5539, %v160
    %v5541 = vadd.f32 %v5540, 1e-12
    %v5542 = vrsqrt.pop %v5541
    %v5543 = vmul.f32 %v5542, %v5541
    %v5544 = vmul.f32 %v5543, %v5542
    %v5545 = vmul.f32 0.5, %v5544
    %v5546 = vsub.f32 1.5, %v5545
    %v5547 = vmul.f32 %v5542, %v5546
    %vm5548 = vweird.f32 %v5541
    %vm5549 = vweird.f32 %v5542
    %vm5550 = vmor %vm5548, %vm5549
    %v5551 = vsel %vm5550, %v5542, %v5547
    %v5552 = vmul.f32 %v5531, %v5551
    %v5553 = vmul.f32 %v5532, %v5551
    %v5555 = vperm.slane %v5522, 0
    %v5556 = vperm.slane %v5522, 1
    %v5559 = vmul.f32 %v5552, %v5555
    %v5560 = vmul.f32 %v5553, %v5556
    %v5562 = vperm.slane %v5523, 0
    %v5563 = vperm.slane %v5523, 1
    %v5566 = vadd.f32 %v5559, %v5562
    %v5567 = vadd.f32 %v5560, %v5563
    %v5568 = vpack.c.bf16 %v5566, %v5566
    %v5569 = vpack.c.bf16 %v5567, %v5567
    %v5570 = vld [vmem:[%s20] sm:$0xff]
    %v5571 = vld [vmem:[%s20 + $0x8] sm:$0xff]
    %v5572 = vld [vmem:[%s20 + $0x10] sm:$0xff]
    %v5573 = vld [vmem:[%s20 + $0x18] sm:$0xff]
    %v5574 = vld [vmem:[%s20 + $0x20] sm:$0xff]
    %v5575 = vld [vmem:[%s20 + $0x28] sm:$0xff]
    %v5576 = vld [vmem:[%s20 + $0x30] sm:$0xff]
    %v5577 = vld [vmem:[%s20 + $0x38] sm:$0xff]
    %v5578 = vld [vmem:[%s20 + $0x40] sm:$0xff]
    %v5579 = vld [vmem:[%s20 + $0x48] sm:$0xff]
    %v5580 = vld [vmem:[%s20 + $0x50] sm:$0xff]
    %v5581 = vld [vmem:[%s20 + $0x58] sm:$0xff]
    %v5582 = vld [vmem:[%s20 + $0x60] sm:$0xff]
    %v5583 = vld [vmem:[%s20 + $0x68] sm:$0xff]
    %v5584 = vld [vmem:[%s20 + $0x70] sm:$0xff]
    %v5585 = vld [vmem:[%s20 + $0x78] sm:$0xff]
    %v5586 = vld [vmem:[%s20 + $0x80] sm:$0xff]
    %v5587 = vld [vmem:[%s20 + $0x88] sm:$0xff]
    %v5588 = vld [vmem:[%s20 + $0x90] sm:$0xff]
    %v5589 = vld [vmem:[%s20 + $0x98] sm:$0xff]
    %v5590 = vld [vmem:[%s20 + $0xa0] sm:$0xff]
    %v5591 = vld [vmem:[%s20 + $0xa8] sm:$0xff]
    %v5592 = vld [vmem:[%s20 + $0xb0] sm:$0xff]
    %v5593 = vld [vmem:[%s20 + $0xb8] sm:$0xff]
    %v5594 = vld [vmem:[%s20 + $0xc0] sm:$0xff]
    %v5595 = vld [vmem:[%s20 + $0xc8] sm:$0xff]
    %v5596 = vld [vmem:[%s20 + $0xd0] sm:$0xff]
    %v5597 = vld [vmem:[%s20 + $0xd8] sm:$0xff]
    %v5598 = vld [vmem:[%s20 + $0xe0] sm:$0xff]
    %v5599 = vld [vmem:[%s20 + $0xe8] sm:$0xff]
    %v5600 = vld [vmem:[%s20 + $0xf0] sm:$0xff]
    %v5601 = vld [vmem:[%s20 + $0xf8] sm:$0xff]
    %v5602 = vld [vmem:[%s21] sm:$0x3]
    %v5604 = vperm.slane %v5602, 0
    %v5605 = vperm.slane %v5602, 1
    %v5640 = vunpack.c.l.b16 %v5570
    %v5641 = vunpack.c.h.b16 %v5570
    %v5642 = vunpack.c.l.b16 %v5571
    %v5643 = vunpack.c.h.b16 %v5571
    %v5644 = vunpack.c.l.b16 %v5572
    %v5645 = vunpack.c.h.b16 %v5572
    %v5646 = vunpack.c.l.b16 %v5573
    %v5647 = vunpack.c.h.b16 %v5573
    %v5648 = vunpack.c.l.b16 %v5574
    %v5649 = vunpack.c.h.b16 %v5574
    %v5650 = vunpack.c.l.b16 %v5575
    %v5651 = vunpack.c.h.b16 %v5575
    %v5652 = vunpack.c.l.b16 %v5576
    %v5653 = vunpack.c.h.b16 %v5576
    %v5654 = vunpack.c.l.b16 %v5577
    %v5655 = vunpack.c.h.b16 %v5577
    %v5656 = vunpack.c.l.b16 %v5578
    %v5657 = vunpack.c.h.b16 %v5578
    %v5658 = vunpack.c.l.b16 %v5579
    %v5659 = vunpack.c.h.b16 %v5579
    %v5660 = vunpack.c.l.b16 %v5580
    %v5661 = vunpack.c.h.b16 %v5580
    %v5662 = vunpack.c.l.b16 %v5581
    %v5663 = vunpack.c.h.b16 %v5581
    %v5664 = vunpack.c.l.b16 %v5582
    %v5665 = vunpack.c.h.b16 %v5582
    %v5666 = vunpack.c.l.b16 %v5583
    %v5667 = vunpack.c.h.b16 %v5583
    %v5668 = vunpack.c.l.b16 %v5584
    %v5669 = vunpack.c.h.b16 %v5584
    %v5670 = vunpack.c.l.b16 %v5585
    %v5671 = vunpack.c.h.b16 %v5585
    %v5672 = vunpack.c.l.b16 %v5586
    %v5673 = vunpack.c.h.b16 %v5586
    %v5674 = vunpack.c.l.b16 %v5587
    %v5675 = vunpack.c.h.b16 %v5587
    %v5676 = vunpack.c.l.b16 %v5588
    %v5677 = vunpack.c.h.b16 %v5588
    %v5678 = vunpack.c.l.b16 %v5589
    %v5679 = vunpack.c.h.b16 %v5589
    %v5680 = vunpack.c.l.b16 %v5590
    %v5681 = vunpack.c.h.b16 %v5590
    %v5682 = vunpack.c.l.b16 %v5591
    %v5683 = vunpack.c.h.b16 %v5591
    %v5684 = vunpack.c.l.b16 %v5592
    %v5685 = vunpack.c.h.b16 %v5592
    %v5686 = vunpack.c.l.b16 %v5593
    %v5687 = vunpack.c.h.b16 %v5593
    %v5688 = vunpack.c.l.b16 %v5594
    %v5689 = vunpack.c.h.b16 %v5594
    %v5690 = vunpack.c.l.b16 %v5595
    %v5691 = vunpack.c.h.b16 %v5595
    %v5692 = vunpack.c.l.b16 %v5596
    %v5693 = vunpack.c.h.b16 %v5596
    %v5694 = vunpack.c.l.b16 %v5597
    %v5695 = vunpack.c.h.b16 %v5597
    %v5696 = vunpack.c.l.b16 %v5598
    %v5697 = vunpack.c.h.b16 %v5598
    %v5698 = vunpack.c.l.b16 %v5599
    %v5699 = vunpack.c.h.b16 %v5599
    %v5700 = vunpack.c.l.b16 %v5600
    %v5701 = vunpack.c.h.b16 %v5600
    %v5702 = vunpack.c.l.b16 %v5601
    %v5703 = vunpack.c.h.b16 %v5601
    %v5704 = vpack.c.b16 %v5642, %v5640
    %v5705 = vpack.c.b16 %v5643, %v5641
    %v5706 = vpack.c.b16 %v5646, %v5644
    %v5707 = vpack.c.b16 %v5647, %v5645
    %v5708 = vpack.c.b16 %v5650, %v5648
    %v5709 = vpack.c.b16 %v5651, %v5649
    %v5710 = vpack.c.b16 %v5654, %v5652
    %v5711 = vpack.c.b16 %v5655, %v5653
    %v5712 = vpack.c.b16 %v5658, %v5656
    %v5713 = vpack.c.b16 %v5659, %v5657
    %v5714 = vpack.c.b16 %v5662, %v5660
    %v5715 = vpack.c.b16 %v5663, %v5661
    %v5716 = vpack.c.b16 %v5666, %v5664
    %v5717 = vpack.c.b16 %v5667, %v5665
    %v5718 = vpack.c.b16 %v5670, %v5668
    %v5719 = vpack.c.b16 %v5671, %v5669
    %v5720 = vpack.c.b16 %v5674, %v5672
    %v5721 = vpack.c.b16 %v5675, %v5673
    %v5722 = vpack.c.b16 %v5678, %v5676
    %v5723 = vpack.c.b16 %v5679, %v5677
    %v5724 = vpack.c.b16 %v5682, %v5680
    %v5725 = vpack.c.b16 %v5683, %v5681
    %v5726 = vpack.c.b16 %v5686, %v5684
    %v5727 = vpack.c.b16 %v5687, %v5685
    %v5728 = vpack.c.b16 %v5690, %v5688
    %v5729 = vpack.c.b16 %v5691, %v5689
    %v5730 = vpack.c.b16 %v5694, %v5692
    %v5731 = vpack.c.b16 %v5695, %v5693
    %v5732 = vpack.c.b16 %v5698, %v5696
    %v5733 = vpack.c.b16 %v5699, %v5697
    %v5734 = vpack.c.b16 %v5702, %v5700
    %v5735 = vpack.c.b16 %v5703, %v5701
    %5768 = vmatpush.bf16.msra.mxu0 %v5718
    %5769 = vmatpush.bf16.msra.mxu0 %v5716
    %5770 = vmatpush.bf16.msra.mxu0 %v5714
    %5771 = vmatpush.bf16.msra.mxu0 %v5712
    %5772 = vmatpush.bf16.msra.mxu0 %v5710
    %5773 = vmatpush.bf16.msra.mxu0 %v5708
    %5774 = vmatpush.bf16.msra.mxu0 %v5706
    %5775 = vmatpush.bf16.msra.mxu0 %v5704
    %5776 = vmatmul.bf16.gmra.mxu0 %v5568
    %v5777 = vpop.f32.mrf.mxu0
    %v5778 = vadd.f32 %v5604, %v5777
    %v5779 = vpop.f32.mrf.mxu0
    %5780 = vdwg.mxu0
    %5781 = vmatpush.bf16.msra.mxu0 %v5734
    %5782 = vmatpush.bf16.msra.mxu0 %v5732
    %5783 = vmatpush.bf16.msra.mxu0 %v5730
    %5784 = vmatpush.bf16.msra.mxu0 %v5728
    %5785 = vmatpush.bf16.msra.mxu0 %v5726
    %5786 = vmatpush.bf16.msra.mxu0 %v5724
    %5787 = vmatpush.bf16.msra.mxu0 %v5722
    %5788 = vmatpush.bf16.msra.mxu0 %v5720
    %5789 = vmatmul.bf16.gmra.mxu0 %v5569
    %v5790 = vpop.f32.mrf.mxu0
    %v5791 = vadd.f32 %v5778, %v5790
    %v5792 = vpop.f32.mrf.mxu0
    %5793 = vdwg.mxu0
    %5794 = vmatpush.bf16.msra.mxu0 %v5719
    %5795 = vmatpush.bf16.msra.mxu0 %v5717
    %5796 = vmatpush.bf16.msra.mxu0 %v5715
    %5797 = vmatpush.bf16.msra.mxu0 %v5713
    %5798 = vmatpush.bf16.msra.mxu0 %v5711
    %5799 = vmatpush.bf16.msra.mxu0 %v5709
    %5800 = vmatpush.bf16.msra.mxu0 %v5707
    %5801 = vmatpush.bf16.msra.mxu0 %v5705
    %5802 = vmatmul.bf16.gmra.mxu0 %v5568
    %v5803 = vpop.f32.mrf.mxu0
    %v5804 = vadd.f32 %v5605, %v5803
    %v5805 = vpop.f32.mrf.mxu0
    %5806 = vdwg.mxu0
    %5807 = vmatpush.bf16.msra.mxu0 %v5735
    %5808 = vmatpush.bf16.msra.mxu0 %v5733
    %5809 = vmatpush.bf16.msra.mxu0 %v5731
    %5810 = vmatpush.bf16.msra.mxu0 %v5729
    %5811 = vmatpush.bf16.msra.mxu0 %v5727
    %5812 = vmatpush.bf16.msra.mxu0 %v5725
    %5813 = vmatpush.bf16.msra.mxu0 %v5723
    %5814 = vmatpush.bf16.msra.mxu0 %v5721
    %5815 = vmatmul.bf16.gmra.mxu0 %v5569
    %v5816 = vpop.f32.mrf.mxu0
    %v5817 = vadd.f32 %v5804, %v5816
    %v5818 = vpop.f32.mrf.mxu0
    %5819 = vdwg.mxu0
    %v5820 = vpack.c.bf16 %v5791, %v5791
    %v5821 = vpack.c.bf16 %v5817, %v5817
    %v5822 = vld [vmem:[%s22] sm:$0xf]
    %v5823 = vld [vmem:[%s22 + $0x4] sm:$0xf]
    %v5824 = vld [vmem:[%s22 + $0x8] sm:$0xf]
    %v5825 = vld [vmem:[%s22 + $0xc] sm:$0xf]
    %v5826 = vld [vmem:[%s22 + $0x10] sm:$0xf]
    %v5827 = vld [vmem:[%s22 + $0x14] sm:$0xf]
    %v5828 = vld [vmem:[%s22 + $0x18] sm:$0xf]
    %v5829 = vld [vmem:[%s22 + $0x1c] sm:$0xf]
    %v5830 = vld [vmem:[%s22 + $0x20] sm:$0xf]
    %v5831 = vld [vmem:[%s22 + $0x24] sm:$0xf]
    %v5832 = vld [vmem:[%s22 + $0x28] sm:$0xf]
    %v5833 = vld [vmem:[%s22 + $0x2c] sm:$0xf]
    %v5834 = vld [vmem:[%s22 + $0x30] sm:$0xf]
    %v5835 = vld [vmem:[%s22 + $0x34] sm:$0xf]
    %v5836 = vld [vmem:[%s22 + $0x38] sm:$0xf]
    %v5837 = vld [vmem:[%s22 + $0x3c] sm:$0xf]
    %v5838 = vld [vmem:[%s22 + $0x40] sm:$0xf]
    %v5839 = vld [vmem:[%s22 + $0x44] sm:$0xf]
    %v5840 = vld [vmem:[%s22 + $0x48] sm:$0xf]
    %v5841 = vld [vmem:[%s22 + $0x4c] sm:$0xf]
    %v5842 = vld [vmem:[%s22 + $0x50] sm:$0xf]
    %v5843 = vld [vmem:[%s22 + $0x54] sm:$0xf]
    %v5844 = vld [vmem:[%s22 + $0x58] sm:$0xf]
    %v5845 = vld [vmem:[%s22 + $0x5c] sm:$0xf]
    %v5846 = vld [vmem:[%s22 + $0x60] sm:$0xf]
    %v5847 = vld [vmem:[%s22 + $0x64] sm:$0xf]
    %v5848 = vld [vmem:[%s22 + $0x68] sm:$0xf]
    %v5849 = vld [vmem:[%s22 + $0x6c] sm:$0xf]
    %v5850 = vld [vmem:[%s22 + $0x70] sm:$0xf]
    %v5851 = vld [vmem:[%s22 + $0x74] sm:$0xf]
    %v5852 = vld [vmem:[%s22 + $0x78] sm:$0xf]
    %v5853 = vld [vmem:[%s22 + $0x7c] sm:$0xf]
    %v5854 = vld [vmem:[%s23] sm:$0x1]
    %v5856 = vperm.slane %v5854, 0
    %v5890 = vunpack.c.l.b16 %v5822
    %v5891 = vunpack.c.l.b16 %v5823
    %v5892 = vunpack.c.l.b16 %v5824
    %v5893 = vunpack.c.l.b16 %v5825
    %v5894 = vunpack.c.l.b16 %v5826
    %v5895 = vunpack.c.l.b16 %v5827
    %v5896 = vunpack.c.l.b16 %v5828
    %v5897 = vunpack.c.l.b16 %v5829
    %v5898 = vunpack.c.l.b16 %v5830
    %v5899 = vunpack.c.l.b16 %v5831
    %v5900 = vunpack.c.l.b16 %v5832
    %v5901 = vunpack.c.l.b16 %v5833
    %v5902 = vunpack.c.l.b16 %v5834
    %v5903 = vunpack.c.l.b16 %v5835
    %v5904 = vunpack.c.l.b16 %v5836
    %v5905 = vunpack.c.l.b16 %v5837
    %v5906 = vunpack.c.l.b16 %v5838
    %v5907 = vunpack.c.l.b16 %v5839
    %v5908 = vunpack.c.l.b16 %v5840
    %v5909 = vunpack.c.l.b16 %v5841
    %v5910 = vunpack.c.l.b16 %v5842
    %v5911 = vunpack.c.l.b16 %v5843
    %v5912 = vunpack.c.l.b16 %v5844
    %v5913 = vunpack.c.l.b16 %v5845
    %v5914 = vunpack.c.l.b16 %v5846
    %v5915 = vunpack.c.l.b16 %v5847
    %v5916 = vunpack.c.l.b16 %v5848
    %v5917 = vunpack.c.l.b16 %v5849
    %v5918 = vunpack.c.l.b16 %v5850
    %v5919 = vunpack.c.l.b16 %v5851
    %v5920 = vunpack.c.l.b16 %v5852
    %v5921 = vunpack.c.l.b16 %v5853
    %v5922 = vpack.c.b16 %v5891, %v5890
    %v5923 = vpack.c.b16 %v5893, %v5892
    %v5924 = vpack.c.b16 %v5895, %v5894
    %v5925 = vpack.c.b16 %v5897, %v5896
    %v5926 = vpack.c.b16 %v5899, %v5898
    %v5927 = vpack.c.b16 %v5901, %v5900
    %v5928 = vpack.c.b16 %v5903, %v5902
    %v5929 = vpack.c.b16 %v5905, %v5904
    %v5930 = vpack.c.b16 %v5907, %v5906
    %v5931 = vpack.c.b16 %v5909, %v5908
    %v5932 = vpack.c.b16 %v5911, %v5910
    %v5933 = vpack.c.b16 %v5913, %v5912
    %v5934 = vpack.c.b16 %v5915, %v5914
    %v5935 = vpack.c.b16 %v5917, %v5916
    %v5936 = vpack.c.b16 %v5919, %v5918
    %v5937 = vpack.c.b16 %v5921, %v5920
    %5954 = vmatpush.bf16.msra.mxu0 %v5929
    %5955 = vmatpush.bf16.msra.mxu0 %v5928
    %5956 = vmatpush.bf16.msra.mxu0 %v5927
    %5957 = vmatpush.bf16.msra.mxu0 %v5926
    %5958 = vmatpush.bf16.msra.mxu0 %v5925
    %5959 = vmatpush.bf16.msra.mxu0 %v5924
    %5960 = vmatpush.bf16.msra.mxu0 %v5923
    %5961 = vmatpush.bf16.msra.mxu0 %v5922
    %5962 = vmatmul.bf16.gmra.mxu0 %v5820
    %v5963 = vpop.f32.mrf.mxu0
    %v5964 = vadd.f32 %v5856, %v5963
    %v5965 = vpop.f32.mrf.mxu0
    %5966 = vdwg.mxu0
    %5967 = vmatpush.bf16.msra.mxu0 %v5937
    %5968 = vmatpush.bf16.msra.mxu0 %v5936
    %5969 = vmatpush.bf16.msra.mxu0 %v5935
    %5970 = vmatpush.bf16.msra.mxu0 %v5934
    %5971 = vmatpush.bf16.msra.mxu0 %v5933
    %5972 = vmatpush.bf16.msra.mxu0 %v5932
    %5973 = vmatpush.bf16.msra.mxu0 %v5931
    %5974 = vmatpush.bf16.msra.mxu0 %v5930
    %5975 = vmatmul.bf16.gmra.mxu0 %v5821
    %v5976 = vpop.f32.mrf.mxu0
    %v5977 = vadd.f32 %v5964, %v5976
    %v5978 = vpop.f32.mrf.mxu0
    %5979 = vdwg.mxu0
    %v5980 = vsel %vm5524, %v5977, -inf
    %5981 = vmax.xlane.f32.xlu0 %v5980
    %v5982 = vpop.xlane.xlu0 %5981
    %v5983 = vsub.f32 %v5977, %v5982
    %v5984 = vmul.f32 %v5983, 1.442695
    %v5985 = vpow.pop %v5984
    %v5986 = vsel %vm5524, %v5985, 0.0
    %5987 = vadd.xlane.f32.xlu0 %v5986
    %v5988 = vpop.xlane.xlu0 %5987
    %v5989 = vlog2.pop %v5988
    %v5990 = vmul.f32 %v5989, 0.6931472
    %v5991 = vsub.f32 %v5983, %v5990
    %5992 = vst [vmem:[#allocation10] sm:$0x3] %v5991
    // Predicated region
    $region114: #{bert_forward.1} parent=1 // pred_check
      _
    $region115: #{bert_forward.1} parent=1 // pred_check_branch
      %5994 = sbr.rel (0) target = $region117
    $region116: #{bert_forward.1} parent=1 // pred_region
      %5996 = vsyncadd [#allocation4], 0
      %s5998 = sshll.u32 [#allocation10], 4
      %s5999 = int_to_ptr.vmem [resolvable:$true] %s5998
      %s6000 = sshll.u32 %s24, 4
      %s6001 = int_to_ptr.hbm [resolvable:$true] %s6000
      %6003 = dma.vmem_to_hbm [thread:$0]  %s5999, 32, %s6001, [#allocation4]
    $region117: #{bert_forward.1} parent=1 // pred_fallthru
      _
    // Predicated region
    $region118: #{bert_forward.1} parent=1 // pred_check
      _
    $region119: #{bert_forward.1} parent=1 // pred_check_branch
      %6005 = sbr.rel (0) target = $region121
    $region120: #{bert_forward.1} parent=1 // pred_region
      %6007 = dma.done [#allocation4], 32
    $region121: #{bert_forward.1} parent=1 // pred_fallthru
      _
    %6008 = vsyncpa [#allocation3], 1
    %6009 = vsyncpa [#allocation6], 1
    %6010 = vsyncpa [#allocation9], 1
    %6011 = vsyncpa [#allocation4], 1

</llo_original>
